<compile_context>
chip_gen: v6e
topology: v6e:2x2x1
jax: 0.10.0
libtpu: 0.0.40
codegen_flags: <defaults>
</compile_context>

<pallas_src>
import math
from functools import partial

import jax
import jax.numpy as jnp
from jax import lax
from jax.experimental import pallas as pl
from jax.experimental.pallas import tpu as pltpu


def _systematic_resample_kernel(off_ref, w_ref, st_ref, out_ref, *, n_chunk):
    """Resamples TB batches per grid step; everything stays in native (B, N, D) layout."""
    TB, N = w_ref.shape

    # ---- 1. inclusive prefix sum of exp(log w) via log2(N) roll-scan (XLU + VPU) ----
    probs = jnp.exp(w_ref[...].astype(jnp.float32))                      # (TB, N)
    lane = lax.broadcasted_iota(jnp.int32, (TB, N), 1)

    cum = probs
    shift = 1
    while shift < N:                                                      # Hillis-Steele add-scan
        rolled = pltpu.roll(cum, shift=shift, axis=1)
        cum = cum + jnp.where(lane >= shift, rolled, jnp.float32(0.0))
        shift *= 2
    shift = 1
    while shift < N:                                                      # running-max scan
        rolled = pltpu.roll(cum, shift=shift, axis=1)
        cum = jnp.where(lane >= shift, jnp.maximum(cum, rolled), cum)
        shift *= 2

    cum = jnp.minimum(cum, jnp.float32(1.0))                              # where(cum > 1, 1, cum)
    cum = jnp.where(lane == N - 1, jnp.float32(1.0), cum)                 # cum[:, -1] = 1

    # ---- 2. systematic resampling thresholds ----------------------------------------
    # searchsorted_left(cum*N, n + off)  ==  first j with  cum[j]*N - off >= n
    scaled = cum * jnp.float32(N) - off_ref[...]                          # (TB, N)
    prev = pltpu.roll(scaled, shift=1, axis=1)                            # scaled[j-1]
    prev = jnp.where(lane == 0, jnp.float32(-1.0), prev)                  # implicit edge < 0

    scaled3 = scaled[:, None, :]                                          # (TB, 1, N)
    prev3 = prev[:, None, :]                                              # (TB, 1, N)
    thr_base = lax.broadcasted_iota(jnp.int32, (1, n_chunk, N), 1).astype(jnp.float32)

    st = st_ref[...]                                                      # (TB, N, D)

    # ---- 3. chunked one-hot gather on the MXU ----------------------------------------
    # onehot has exactly one 1 per (b, n) row (scaled is monotone and scaled[-1] > N-1),
    # so the matmul is an exact copy of the selected particle.
    for n0 in range(0, N, n_chunk):
        thr = thr_base + jnp.float32(n0)                                  # (1, tn, N)
        hit = jnp.logical_and(scaled3 >= thr, prev3 < thr)                # (TB, tn, N)
        onehot = hit.astype(st.dtype)
        chunk = jnp.einsum("bnj,bjd->bnd", onehot, st,
                           preferred_element_type=jnp.float32)            # (TB, tn, D)
        out_ref[:, n0:n0 + n_chunk, :] = chunk.astype(out_ref.dtype)


def systematic_resample(state, weight, offset, *, batch_tile=64, n_chunk=16):
    """state: (B, N, D); weight: (B, N) normalized log-weights; offset: (B,) in [0,1)."""
    B, N, D = state.shape

    # Batch tiling: TB batches per grid step; TB kept a multiple of 8 (sublane rule).
    batch_tile = max(8, (batch_tile // 8) * 8)
    B_pad = ((B + 7) // 8) * 8
    TB = min(batch_tile, B_pad)
    B_pad = ((B_pad + TB - 1) // TB) * TB
    if B_pad != B:
        pad = B_pad - B
        state = jnp.pad(state, ((0, pad), (0, 0), (0, 0)))
        weight = jnp.pad(weight, ((0, pad), (0, 0)))          # exp(0)=1 is harmless padding
        offset = jnp.pad(offset, ((0, pad),))

    # n-axis chunk: must divide N; bounds the (TB, tn, N) one-hot temporary.
    tn = math.gcd(N, max(1, n_chunk))
    if tn < min(8, N):
        tn = N

    off2d = offset.astype(jnp.float32).reshape(B_pad, 1)

    # Explicit scoped-VMEM budget (v5e default is only 16 MiB; v7x physical is 64 MiB).
    itemsize = jnp.dtype(state.dtype).itemsize
    blk_state = TB * N * D * itemsize
    blk_out = TB * N * D * itemsize
    blk_w = TB * N * 4
    temps = 2 * TB * tn * N * 4 + 12 * TB * N * 4
    est = 2 * (blk_state + blk_out + blk_w + TB * 4) + temps
    vmem_limit = int(min(64 * 2**20, max(32 * 2**20, 2 * est)))

    out = pl.pallas_call(
        partial(_systematic_resample_kernel, n_chunk=tn),
        out_shape=jax.ShapeDtypeStruct((B_pad, N, D), state.dtype),
        grid=(B_pad // TB,),
        in_specs=[
            pl.BlockSpec((TB, 1), lambda i: (i, 0)),          # per-batch uniform offsets
            pl.BlockSpec((TB, N), lambda i: (i, 0)),          # log-weights
            pl.BlockSpec((TB, N, D), lambda i: (i, 0, 0)),    # state, native layout
        ],
        out_specs=pl.BlockSpec((TB, N, D), lambda i: (i, 0, 0)),
        compiler_params=pltpu.CompilerParams(
            dimension_semantics=("parallel",),                # batches are independent
            vmem_limit_bytes=vmem_limit),
    )(off2d, weight, state)

    out_state = out[:B]
    # The resampled weights are a compile-time constant; producing them in the wrapper
    # saves an output DMA stream + VMEM buffers in the kernel.
    out_weight = jnp.full((B, N), -math.log(N), dtype=weight.dtype)
    return out_state, out_weight


if __name__ == "__main__":
    B, N, D = 2, 128, 16
    key = jax.random.PRNGKey(0)
    k1, k2, k3 = jax.random.split(key, 3)

    state = jax.random.normal(k1, (B, N, D), dtype=jnp.float32)
    weight = jax.nn.log_softmax(jax.random.normal(k2, (B, N), dtype=jnp.float32), axis=1)
    # TODO(synk): torch.Generator state tracking has no direct equivalent; offset drawn with jax.random.
    offset = jax.random.uniform(k3, (B,), dtype=jnp.float32)

    out_state, out_w = systematic_resample(state, weight, offset)
    jax.block_until_ready((out_state, out_w))

    # Pure-JAX reference of the torch forward.
    cum = jnp.cumsum(jnp.exp(weight), axis=1)
    cum = jnp.where(cum > 1.0, 1.0, cum)
    cum = cum.at[:, -1].set(1.0)
    points = jnp.arange(N, dtype=jnp.float32)[None, :] + offset[:, None]
    idx = jax.vmap(lambda c, p: jnp.searchsorted(c * N, p))(cum, points)
    ref_state = jnp.take_along_axis(state, idx[..., None], axis=1)
    ref_w = jnp.full((B, N), -math.log(N), dtype=weight.dtype)

    assert out_state.shape == (B, N, D) and out_w.shape == (B, N)
    assert jnp.allclose(out_state, ref_state), "resampled state mismatch"
    assert jnp.allclose(out_w, ref_w), "weight output mismatch"
    print("KERNEL_OK")
</pallas_src>

<mosaic_0001>
module attributes {stable_mosaic.version = 11 : i64} {
  func.func @_systematic_resample_kernel(%arg0: i32, %arg1: memref<8x1xf32, #tpu.memory_space<vmem>>, %arg2: memref<8x128xf32, #tpu.memory_space<vmem>>, %arg3: memref<8x128x16xf32, #tpu.memory_space<vmem>>, %arg4: memref<8x128x16xf32, #tpu.memory_space<vmem>>) attributes {dimension_semantics = [#tpu.dimension_semantics<parallel>], iteration_bounds = array<i64: 1>, scalar_prefetch = 0 : i64, scratch_operands = 0 : i64, tpu.core_type = #tpu.core_type<tc>, window_params = [{transform_indices = @transform_0, window_bounds = array<i64: 8, 1>}, {transform_indices = @transform_1, window_bounds = array<i64: 8, 128>}, {transform_indices = @transform_2, window_bounds = array<i64: 8, 128, 16>}, {transform_indices = @transform_3, window_bounds = array<i64: 8, 128, 16>}]} {
    %c0 = arith.constant 0 : index
    %c0_0 = arith.constant 0 : index
    %0 = vector.load %arg2[%c0, %c0_0] : memref<8x128xf32, #tpu.memory_space<vmem>>, vector<8x128xf32>
    %1 = math.exp %0 : vector<8x128xf32>
    %2 = tpu.iota {dimensions = array<i32: 1>} : vector<8x128xi32>
    %c1_i32 = arith.constant 1 : i32
    %3 = tpu.dynamic_rotate %1 by %c1_i32 dim 1 : vector<8x128xf32>, i32 -> vector<8x128xf32>
    %c1_i32_1 = arith.constant 1 : i32
    %4 = vector.broadcast %c1_i32_1 : i32 to vector<8x128xi32>
    %5 = arith.cmpi sge, %2, %4 : vector<8x128xi32>
    %cst = arith.constant 0.000000e+00 : f32
    %6 = vector.broadcast %cst : f32 to vector<8x128xf32>
    %7 = arith.select %5, %3, %6 : vector<8x128xi1>, vector<8x128xf32>
    %8 = arith.addf %1, %7 : vector<8x128xf32>
    %c2_i32 = arith.constant 2 : i32
    %9 = tpu.dynamic_rotate %8 by %c2_i32 dim 1 : vector<8x128xf32>, i32 -> vector<8x128xf32>
    %c2_i32_2 = arith.constant 2 : i32
    %10 = vector.broadcast %c2_i32_2 : i32 to vector<8x128xi32>
    %11 = arith.cmpi sge, %2, %10 : vector<8x128xi32>
    %cst_3 = arith.constant 0.000000e+00 : f32
    %12 = vector.broadcast %cst_3 : f32 to vector<8x128xf32>
    %13 = arith.select %11, %9, %12 : vector<8x128xi1>, vector<8x128xf32>
    %14 = arith.addf %8, %13 : vector<8x128xf32>
    %c4_i32 = arith.constant 4 : i32
    %15 = tpu.dynamic_rotate %14 by %c4_i32 dim 1 : vector<8x128xf32>, i32 -> vector<8x128xf32>
    %c4_i32_4 = arith.constant 4 : i32
    %16 = vector.broadcast %c4_i32_4 : i32 to vector<8x128xi32>
    %17 = arith.cmpi sge, %2, %16 : vector<8x128xi32>
    %cst_5 = arith.constant 0.000000e+00 : f32
    %18 = vector.broadcast %cst_5 : f32 to vector<8x128xf32>
    %19 = arith.select %17, %15, %18 : vector<8x128xi1>, vector<8x128xf32>
    %20 = arith.addf %14, %19 : vector<8x128xf32>
    %c8_i32 = arith.constant 8 : i32
    %21 = tpu.dynamic_rotate %20 by %c8_i32 dim 1 : vector<8x128xf32>, i32 -> vector<8x128xf32>
    %c8_i32_6 = arith.constant 8 : i32
    %22 = vector.broadcast %c8_i32_6 : i32 to vector<8x128xi32>
    %23 = arith.cmpi sge, %2, %22 : vector<8x128xi32>
    %cst_7 = arith.constant 0.000000e+00 : f32
    %24 = vector.broadcast %cst_7 : f32 to vector<8x128xf32>
    %25 = arith.select %23, %21, %24 : vector<8x128xi1>, vector<8x128xf32>
    %26 = arith.addf %20, %25 : vector<8x128xf32>
    %c16_i32 = arith.constant 16 : i32
    %27 = tpu.dynamic_rotate %26 by %c16_i32 dim 1 : vector<8x128xf32>, i32 -> vector<8x128xf32>
    %c16_i32_8 = arith.constant 16 : i32
    %28 = vector.broadcast %c16_i32_8 : i32 to vector<8x128xi32>
    %29 = arith.cmpi sge, %2, %28 : vector<8x128xi32>
    %cst_9 = arith.constant 0.000000e+00 : f32
    %30 = vector.broadcast %cst_9 : f32 to vector<8x128xf32>
    %31 = arith.select %29, %27, %30 : vector<8x128xi1>, vector<8x128xf32>
    %32 = arith.addf %26, %31 : vector<8x128xf32>
    %c32_i32 = arith.constant 32 : i32
    %33 = tpu.dynamic_rotate %32 by %c32_i32 dim 1 : vector<8x128xf32>, i32 -> vector<8x128xf32>
    %c32_i32_10 = arith.constant 32 : i32
    %34 = vector.broadcast %c32_i32_10 : i32 to vector<8x128xi32>
    %35 = arith.cmpi sge, %2, %34 : vector<8x128xi32>
    %cst_11 = arith.constant 0.000000e+00 : f32
    %36 = vector.broadcast %cst_11 : f32 to vector<8x128xf32>
    %37 = arith.select %35, %33, %36 : vector<8x128xi1>, vector<8x128xf32>
    %38 = arith.addf %32, %37 : vector<8x128xf32>
    %c64_i32 = arith.constant 64 : i32
    %39 = tpu.dynamic_rotate %38 by %c64_i32 dim 1 : vector<8x128xf32>, i32 -> vector<8x128xf32>
    %c64_i32_12 = arith.constant 64 : i32
    %40 = vector.broadcast %c64_i32_12 : i32 to vector<8x128xi32>
    %41 = arith.cmpi sge, %2, %40 : vector<8x128xi32>
    %cst_13 = arith.constant 0.000000e+00 : f32
    %42 = vector.broadcast %cst_13 : f32 to vector<8x128xf32>
    %43 = arith.select %41, %39, %42 : vector<8x128xi1>, vector<8x128xf32>
    %44 = arith.addf %38, %43 : vector<8x128xf32>
    %c1_i32_14 = arith.constant 1 : i32
    %45 = tpu.dynamic_rotate %44 by %c1_i32_14 dim 1 : vector<8x128xf32>, i32 -> vector<8x128xf32>
    %c1_i32_15 = arith.constant 1 : i32
    %46 = vector.broadcast %c1_i32_15 : i32 to vector<8x128xi32>
    %47 = arith.cmpi sge, %2, %46 : vector<8x128xi32>
    %48 = arith.maximumf %44, %45 : vector<8x128xf32>
    %49 = arith.select %47, %48, %44 : vector<8x128xi1>, vector<8x128xf32>
    %c2_i32_16 = arith.constant 2 : i32
    %50 = tpu.dynamic_rotate %49 by %c2_i32_16 dim 1 : vector<8x128xf32>, i32 -> vector<8x128xf32>
    %c2_i32_17 = arith.constant 2 : i32
    %51 = vector.broadcast %c2_i32_17 : i32 to vector<8x128xi32>
    %52 = arith.cmpi sge, %2, %51 : vector<8x128xi32>
    %53 = arith.maximumf %49, %50 : vector<8x128xf32>
    %54 = arith.select %52, %53, %49 : vector<8x128xi1>, vector<8x128xf32>
    %c4_i32_18 = arith.constant 4 : i32
    %55 = tpu.dynamic_rotate %54 by %c4_i32_18 dim 1 : vector<8x128xf32>, i32 -> vector<8x128xf32>
    %c4_i32_19 = arith.constant 4 : i32
    %56 = vector.broadcast %c4_i32_19 : i32 to vector<8x128xi32>
    %57 = arith.cmpi sge, %2, %56 : vector<8x128xi32>
    %58 = arith.maximumf %54, %55 : vector<8x128xf32>
    %59 = arith.select %57, %58, %54 : vector<8x128xi1>, vector<8x128xf32>
    %c8_i32_20 = arith.constant 8 : i32
    %60 = tpu.dynamic_rotate %59 by %c8_i32_20 dim 1 : vector<8x128xf32>, i32 -> vector<8x128xf32>
    %c8_i32_21 = arith.constant 8 : i32
    %61 = vector.broadcast %c8_i32_21 : i32 to vector<8x128xi32>
    %62 = arith.cmpi sge, %2, %61 : vector<8x128xi32>
    %63 = arith.maximumf %59, %60 : vector<8x128xf32>
    %64 = arith.select %62, %63, %59 : vector<8x128xi1>, vector<8x128xf32>
    %c16_i32_22 = arith.constant 16 : i32
    %65 = tpu.dynamic_rotate %64 by %c16_i32_22 dim 1 : vector<8x128xf32>, i32 -> vector<8x128xf32>
    %c16_i32_23 = arith.constant 16 : i32
    %66 = vector.broadcast %c16_i32_23 : i32 to vector<8x128xi32>
    %67 = arith.cmpi sge, %2, %66 : vector<8x128xi32>
    %68 = arith.maximumf %64, %65 : vector<8x128xf32>
    %69 = arith.select %67, %68, %64 : vector<8x128xi1>, vector<8x128xf32>
    %c32_i32_24 = arith.constant 32 : i32
    %70 = tpu.dynamic_rotate %69 by %c32_i32_24 dim 1 : vector<8x128xf32>, i32 -> vector<8x128xf32>
    %c32_i32_25 = arith.constant 32 : i32
    %71 = vector.broadcast %c32_i32_25 : i32 to vector<8x128xi32>
    %72 = arith.cmpi sge, %2, %71 : vector<8x128xi32>
    %73 = arith.maximumf %69, %70 : vector<8x128xf32>
    %74 = arith.select %72, %73, %69 : vector<8x128xi1>, vector<8x128xf32>
    %c64_i32_26 = arith.constant 64 : i32
    %75 = tpu.dynamic_rotate %74 by %c64_i32_26 dim 1 : vector<8x128xf32>, i32 -> vector<8x128xf32>
    %c64_i32_27 = arith.constant 64 : i32
    %76 = vector.broadcast %c64_i32_27 : i32 to vector<8x128xi32>
    %77 = arith.cmpi sge, %2, %76 : vector<8x128xi32>
    %78 = arith.maximumf %74, %75 : vector<8x128xf32>
    %79 = arith.select %77, %78, %74 : vector<8x128xi1>, vector<8x128xf32>
    %cst_28 = arith.constant 1.000000e+00 : f32
    %80 = vector.broadcast %cst_28 : f32 to vector<8x128xf32>
    %81 = arith.minimumf %79, %80 : vector<8x128xf32>
    %c127_i32 = arith.constant 127 : i32
    %82 = vector.broadcast %c127_i32 : i32 to vector<8x128xi32>
    %83 = arith.cmpi eq, %2, %82 : vector<8x128xi32>
    %cst_29 = arith.constant 1.000000e+00 : f32
    %84 = vector.broadcast %cst_29 : f32 to vector<8x128xf32>
    %85 = arith.select %83, %84, %81 : vector<8x128xi1>, vector<8x128xf32>
    %cst_30 = arith.constant 1.280000e+02 : f32
    %86 = vector.broadcast %cst_30 : f32 to vector<8x128xf32>
    %87 = arith.mulf %85, %86 : vector<8x128xf32>
    %c0_31 = arith.constant 0 : index
    %c0_32 = arith.constant 0 : index
    %88 = vector.load %arg1[%c0_31, %c0_32] : memref<8x1xf32, #tpu.memory_space<vmem>>, vector<8x1xf32>
    %89 = vector.broadcast %88 : vector<8x1xf32> to vector<8x128xf32>
    %90 = arith.subf %87, %89 : vector<8x128xf32>
    %c1_i32_33 = arith.constant 1 : i32
    %91 = tpu.dynamic_rotate %90 by %c1_i32_33 dim 1 : vector<8x128xf32>, i32 -> vector<8x128xf32>
    %c0_i32 = arith.constant 0 : i32
    %92 = vector.broadcast %c0_i32 : i32 to vector<8x128xi32>
    %93 = arith.cmpi eq, %2, %92 : vector<8x128xi32>
    %cst_34 = arith.constant -1.000000e+00 : f32
    %94 = vector.broadcast %cst_34 : f32 to vector<8x128xf32>
    %95 = arith.select %93, %94, %91 : vector<8x128xi1>, vector<8x128xf32>
    %96 = vector.shape_cast %90 : vector<8x128xf32> to vector<8x1x128xf32>
    %97 = vector.shape_cast %95 : vector<8x128xf32> to vector<8x1x128xf32>
    %98 = tpu.iota {dimensions = array<i32: 1>} : vector<1x16x128xi32>
    %99 = arith.sitofp %98 : vector<1x16x128xi32> to vector<1x16x128xf32>
    %c0_35 = arith.constant 0 : index
    %c0_36 = arith.constant 0 : index
    %c0_37 = arith.constant 0 : index
    %100 = vector.load %arg3[%c0_35, %c0_36, %c0_37] : memref<8x128x16xf32, #tpu.memory_space<vmem>>, vector<8x128x16xf32>
    %cst_38 = arith.constant 0.000000e+00 : f32
    %101 = vector.broadcast %cst_38 : f32 to vector<1x16x128xf32>
    %102 = arith.addf %99, %101 : vector<1x16x128xf32>
    %103 = vector.broadcast %96 : vector<8x1x128xf32> to vector<8x16x128xf32>
    %104 = vector.broadcast %102 : vector<1x16x128xf32> to vector<8x16x128xf32>
    %105 = arith.cmpf oge, %103, %104 : vector<8x16x128xf32>
    %106 = vector.broadcast %97 : vector<8x1x128xf32> to vector<8x16x128xf32>
    %107 = vector.broadcast %102 : vector<1x16x128xf32> to vector<8x16x128xf32>
    %108 = arith.cmpf olt, %106, %107 : vector<8x16x128xf32>
    %109 = arith.andi %105, %108 : vector<8x16x128xi1>
    %110 = arith.extui %109 : vector<8x16x128xi1> to vector<8x16x128xi32>
    %111 = arith.sitofp %110 : vector<8x16x128xi32> to vector<8x16x128xf32>
    "tpu.trace_start"() <{level = 10 : i32, message = "bnj,bjd->bnd"}> : () -> ()
    %cst_39 = arith.constant dense<0.000000e+00> : vector<8x16x16xf32>
    %112 = tpu.matmul %111, %100, %cst_39 {dimension_numbers = #tpu.dot_dimension_numbers<[2], [1], [1], [2], [0, 0, 0, 1, 1, 2], [0], [0]>} : vector<8x16x128xf32>, vector<8x128x16xf32>, vector<8x16x16xf32> -> vector<8x16x16xf32>
    "tpu.trace_stop"() : () -> ()
    %c0_40 = arith.constant 0 : index
    %c0_41 = arith.constant 0 : index
    %c0_42 = arith.constant 0 : index
    %113 = vector.load %arg4[%c0_40, %c0_41, %c0_42] : memref<8x128x16xf32, #tpu.memory_space<vmem>>, vector<8x16x16xf32>
    tpu.vector_store %arg4[%c0_40, %c0_41, %c0_42], %112 {strides = array<i32>} : memref<8x128x16xf32, #tpu.memory_space<vmem>>, vector<8x16x16xf32>,
    %cst_43 = arith.constant 1.600000e+01 : f32
    %114 = vector.broadcast %cst_43 : f32 to vector<1x16x128xf32>
    %115 = arith.addf %99, %114 : vector<1x16x128xf32>
    %116 = vector.broadcast %96 : vector<8x1x128xf32> to vector<8x16x128xf32>
    %117 = vector.broadcast %115 : vector<1x16x128xf32> to vector<8x16x128xf32>
    %118 = arith.cmpf oge, %116, %117 : vector<8x16x128xf32>
    %119 = vector.broadcast %97 : vector<8x1x128xf32> to vector<8x16x128xf32>
    %120 = vector.broadcast %115 : vector<1x16x128xf32> to vector<8x16x128xf32>
    %121 = arith.cmpf olt, %119, %120 : vector<8x16x128xf32>
    %122 = arith.andi %118, %121 : vector<8x16x128xi1>
    %123 = arith.extui %122 : vector<8x16x128xi1> to vector<8x16x128xi32>
    %124 = arith.sitofp %123 : vector<8x16x128xi32> to vector<8x16x128xf32>
    "tpu.trace_start"() <{level = 10 : i32, message = "bnj,bjd->bnd"}> : () -> ()
    %cst_44 = arith.constant dense<0.000000e+00> : vector<8x16x16xf32>
    %125 = tpu.matmul %124, %100, %cst_44 {dimension_numbers = #tpu.dot_dimension_numbers<[2], [1], [1], [2], [0, 0, 0, 1, 1, 2], [0], [0]>} : vector<8x16x128xf32>, vector<8x128x16xf32>, vector<8x16x16xf32> -> vector<8x16x16xf32>
    "tpu.trace_stop"() : () -> ()
    %c0_45 = arith.constant 0 : index
    %c16 = arith.constant 16 : index
    %c0_46 = arith.constant 0 : index
    %126 = vector.load %arg4[%c0_45, %c16, %c0_46] : memref<8x128x16xf32, #tpu.memory_space<vmem>>, vector<8x16x16xf32>
    tpu.vector_store %arg4[%c0_45, %c16, %c0_46], %125 {strides = array<i32>} : memref<8x128x16xf32, #tpu.memory_space<vmem>>, vector<8x16x16xf32>,
    %cst_47 = arith.constant 3.200000e+01 : f32
    %127 = vector.broadcast %cst_47 : f32 to vector<1x16x128xf32>
    %128 = arith.addf %99, %127 : vector<1x16x128xf32>
    %129 = vector.broadcast %96 : vector<8x1x128xf32> to vector<8x16x128xf32>
    %130 = vector.broadcast %128 : vector<1x16x128xf32> to vector<8x16x128xf32>
    %131 = arith.cmpf oge, %129, %130 : vector<8x16x128xf32>
    %132 = vector.broadcast %97 : vector<8x1x128xf32> to vector<8x16x128xf32>
    %133 = vector.broadcast %128 : vector<1x16x128xf32> to vector<8x16x128xf32>
    %134 = arith.cmpf olt, %132, %133 : vector<8x16x128xf32>
    %135 = arith.andi %131, %134 : vector<8x16x128xi1>
    %136 = arith.extui %135 : vector<8x16x128xi1> to vector<8x16x128xi32>
    %137 = arith.sitofp %136 : vector<8x16x128xi32> to vector<8x16x128xf32>
    "tpu.trace_start"() <{level = 10 : i32, message = "bnj,bjd->bnd"}> : () -> ()
    %cst_48 = arith.constant dense<0.000000e+00> : vector<8x16x16xf32>
    %138 = tpu.matmul %137, %100, %cst_48 {dimension_numbers = #tpu.dot_dimension_numbers<[2], [1], [1], [2], [0, 0, 0, 1, 1, 2], [0], [0]>} : vector<8x16x128xf32>, vector<8x128x16xf32>, vector<8x16x16xf32> -> vector<8x16x16xf32>
    "tpu.trace_stop"() : () -> ()
    %c0_49 = arith.constant 0 : index
    %c32 = arith.constant 32 : index
    %c0_50 = arith.constant 0 : index
    %139 = vector.load %arg4[%c0_49, %c32, %c0_50] : memref<8x128x16xf32, #tpu.memory_space<vmem>>, vector<8x16x16xf32>
    tpu.vector_store %arg4[%c0_49, %c32, %c0_50], %138 {strides = array<i32>} : memref<8x128x16xf32, #tpu.memory_space<vmem>>, vector<8x16x16xf32>,
    %cst_51 = arith.constant 4.800000e+01 : f32
    %140 = vector.broadcast %cst_51 : f32 to vector<1x16x128xf32>
    %141 = arith.addf %99, %140 : vector<1x16x128xf32>
    %142 = vector.broadcast %96 : vector<8x1x128xf32> to vector<8x16x128xf32>
    %143 = vector.broadcast %141 : vector<1x16x128xf32> to vector<8x16x128xf32>
    %144 = arith.cmpf oge, %142, %143 : vector<8x16x128xf32>
    %145 = vector.broadcast %97 : vector<8x1x128xf32> to vector<8x16x128xf32>
    %146 = vector.broadcast %141 : vector<1x16x128xf32> to vector<8x16x128xf32>
    %147 = arith.cmpf olt, %145, %146 : vector<8x16x128xf32>
    %148 = arith.andi %144, %147 : vector<8x16x128xi1>
    %149 = arith.extui %148 : vector<8x16x128xi1> to vector<8x16x128xi32>
    %150 = arith.sitofp %149 : vector<8x16x128xi32> to vector<8x16x128xf32>
    "tpu.trace_start"() <{level = 10 : i32, message = "bnj,bjd->bnd"}> : () -> ()
    %cst_52 = arith.constant dense<0.000000e+00> : vector<8x16x16xf32>
    %151 = tpu.matmul %150, %100, %cst_52 {dimension_numbers = #tpu.dot_dimension_numbers<[2], [1], [1], [2], [0, 0, 0, 1, 1, 2], [0], [0]>} : vector<8x16x128xf32>, vector<8x128x16xf32>, vector<8x16x16xf32> -> vector<8x16x16xf32>
    "tpu.trace_stop"() : () -> ()
    %c0_53 = arith.constant 0 : index
    %c48 = arith.constant 48 : index
    %c0_54 = arith.constant 0 : index
    %152 = vector.load %arg4[%c0_53, %c48, %c0_54] : memref<8x128x16xf32, #tpu.memory_space<vmem>>, vector<8x16x16xf32>
    tpu.vector_store %arg4[%c0_53, %c48, %c0_54], %151 {strides = array<i32>} : memref<8x128x16xf32, #tpu.memory_space<vmem>>, vector<8x16x16xf32>,
    %cst_55 = arith.constant 6.400000e+01 : f32
    %153 = vector.broadcast %cst_55 : f32 to vector<1x16x128xf32>
    %154 = arith.addf %99, %153 : vector<1x16x128xf32>
    %155 = vector.broadcast %96 : vector<8x1x128xf32> to vector<8x16x128xf32>
    %156 = vector.broadcast %154 : vector<1x16x128xf32> to vector<8x16x128xf32>
    %157 = arith.cmpf oge, %155, %156 : vector<8x16x128xf32>
    %158 = vector.broadcast %97 : vector<8x1x128xf32> to vector<8x16x128xf32>
    %159 = vector.broadcast %154 : vector<1x16x128xf32> to vector<8x16x128xf32>
    %160 = arith.cmpf olt, %158, %159 : vector<8x16x128xf32>
    %161 = arith.andi %157, %160 : vector<8x16x128xi1>
    %162 = arith.extui %161 : vector<8x16x128xi1> to vector<8x16x128xi32>
    %163 = arith.sitofp %162 : vector<8x16x128xi32> to vector<8x16x128xf32>
    "tpu.trace_start"() <{level = 10 : i32, message = "bnj,bjd->bnd"}> : () -> ()
    %cst_56 = arith.constant dense<0.000000e+00> : vector<8x16x16xf32>
    %164 = tpu.matmul %163, %100, %cst_56 {dimension_numbers = #tpu.dot_dimension_numbers<[2], [1], [1], [2], [0, 0, 0, 1, 1, 2], [0], [0]>} : vector<8x16x128xf32>, vector<8x128x16xf32>, vector<8x16x16xf32> -> vector<8x16x16xf32>
    "tpu.trace_stop"() : () -> ()
    %c0_57 = arith.constant 0 : index
    %c64 = arith.constant 64 : index
    %c0_58 = arith.constant 0 : index
    %165 = vector.load %arg4[%c0_57, %c64, %c0_58] : memref<8x128x16xf32, #tpu.memory_space<vmem>>, vector<8x16x16xf32>
    tpu.vector_store %arg4[%c0_57, %c64, %c0_58], %164 {strides = array<i32>} : memref<8x128x16xf32, #tpu.memory_space<vmem>>, vector<8x16x16xf32>,
    %cst_59 = arith.constant 8.000000e+01 : f32
    %166 = vector.broadcast %cst_59 : f32 to vector<1x16x128xf32>
    %167 = arith.addf %99, %166 : vector<1x16x128xf32>
    %168 = vector.broadcast %96 : vector<8x1x128xf32> to vector<8x16x128xf32>
    %169 = vector.broadcast %167 : vector<1x16x128xf32> to vector<8x16x128xf32>
    %170 = arith.cmpf oge, %168, %169 : vector<8x16x128xf32>
    %171 = vector.broadcast %97 : vector<8x1x128xf32> to vector<8x16x128xf32>
    %172 = vector.broadcast %167 : vector<1x16x128xf32> to vector<8x16x128xf32>
    %173 = arith.cmpf olt, %171, %172 : vector<8x16x128xf32>
    %174 = arith.andi %170, %173 : vector<8x16x128xi1>
    %175 = arith.extui %174 : vector<8x16x128xi1> to vector<8x16x128xi32>
    %176 = arith.sitofp %175 : vector<8x16x128xi32> to vector<8x16x128xf32>
    "tpu.trace_start"() <{level = 10 : i32, message = "bnj,bjd->bnd"}> : () -> ()
    %cst_60 = arith.constant dense<0.000000e+00> : vector<8x16x16xf32>
    %177 = tpu.matmul %176, %100, %cst_60 {dimension_numbers = #tpu.dot_dimension_numbers<[2], [1], [1], [2], [0, 0, 0, 1, 1, 2], [0], [0]>} : vector<8x16x128xf32>, vector<8x128x16xf32>, vector<8x16x16xf32> -> vector<8x16x16xf32>
    "tpu.trace_stop"() : () -> ()
    %c0_61 = arith.constant 0 : index
    %c80 = arith.constant 80 : index
    %c0_62 = arith.constant 0 : index
    %178 = vector.load %arg4[%c0_61, %c80, %c0_62] : memref<8x128x16xf32, #tpu.memory_space<vmem>>, vector<8x16x16xf32>
    tpu.vector_store %arg4[%c0_61, %c80, %c0_62], %177 {strides = array<i32>} : memref<8x128x16xf32, #tpu.memory_space<vmem>>, vector<8x16x16xf32>,
    %cst_63 = arith.constant 9.600000e+01 : f32
    %179 = vector.broadcast %cst_63 : f32 to vector<1x16x128xf32>
    %180 = arith.addf %99, %179 : vector<1x16x128xf32>
    %181 = vector.broadcast %96 : vector<8x1x128xf32> to vector<8x16x128xf32>
    %182 = vector.broadcast %180 : vector<1x16x128xf32> to vector<8x16x128xf32>
    %183 = arith.cmpf oge, %181, %182 : vector<8x16x128xf32>
    %184 = vector.broadcast %97 : vector<8x1x128xf32> to vector<8x16x128xf32>
    %185 = vector.broadcast %180 : vector<1x16x128xf32> to vector<8x16x128xf32>
    %186 = arith.cmpf olt, %184, %185 : vector<8x16x128xf32>
    %187 = arith.andi %183, %186 : vector<8x16x128xi1>
    %188 = arith.extui %187 : vector<8x16x128xi1> to vector<8x16x128xi32>
    %189 = arith.sitofp %188 : vector<8x16x128xi32> to vector<8x16x128xf32>
    "tpu.trace_start"() <{level = 10 : i32, message = "bnj,bjd->bnd"}> : () -> ()
    %cst_64 = arith.constant dense<0.000000e+00> : vector<8x16x16xf32>
    %190 = tpu.matmul %189, %100, %cst_64 {dimension_numbers = #tpu.dot_dimension_numbers<[2], [1], [1], [2], [0, 0, 0, 1, 1, 2], [0], [0]>} : vector<8x16x128xf32>, vector<8x128x16xf32>, vector<8x16x16xf32> -> vector<8x16x16xf32>
    "tpu.trace_stop"() : () -> ()
    %c0_65 = arith.constant 0 : index
    %c96 = arith.constant 96 : index
    %c0_66 = arith.constant 0 : index
    %191 = vector.load %arg4[%c0_65, %c96, %c0_66] : memref<8x128x16xf32, #tpu.memory_space<vmem>>, vector<8x16x16xf32>
    tpu.vector_store %arg4[%c0_65, %c96, %c0_66], %190 {strides = array<i32>} : memref<8x128x16xf32, #tpu.memory_space<vmem>>, vector<8x16x16xf32>,
    %cst_67 = arith.constant 1.120000e+02 : f32
    %192 = vector.broadcast %cst_67 : f32 to vector<1x16x128xf32>
    %193 = arith.addf %99, %192 : vector<1x16x128xf32>
    %194 = vector.broadcast %96 : vector<8x1x128xf32> to vector<8x16x128xf32>
    %195 = vector.broadcast %193 : vector<1x16x128xf32> to vector<8x16x128xf32>
    %196 = arith.cmpf oge, %194, %195 : vector<8x16x128xf32>
    %197 = vector.broadcast %97 : vector<8x1x128xf32> to vector<8x16x128xf32>
    %198 = vector.broadcast %193 : vector<1x16x128xf32> to vector<8x16x128xf32>
    %199 = arith.cmpf olt, %197, %198 : vector<8x16x128xf32>
    %200 = arith.andi %196, %199 : vector<8x16x128xi1>
    %201 = arith.extui %200 : vector<8x16x128xi1> to vector<8x16x128xi32>
    %202 = arith.sitofp %201 : vector<8x16x128xi32> to vector<8x16x128xf32>
    "tpu.trace_start"() <{level = 10 : i32, message = "bnj,bjd->bnd"}> : () -> ()
    %cst_68 = arith.constant dense<0.000000e+00> : vector<8x16x16xf32>
    %203 = tpu.matmul %202, %100, %cst_68 {dimension_numbers = #tpu.dot_dimension_numbers<[2], [1], [1], [2], [0, 0, 0, 1, 1, 2], [0], [0]>} : vector<8x16x128xf32>, vector<8x128x16xf32>, vector<8x16x16xf32> -> vector<8x16x16xf32>
    "tpu.trace_stop"() : () -> ()
    %c0_69 = arith.constant 0 : index
    %c112 = arith.constant 112 : index
    %c0_70 = arith.constant 0 : index
    %204 = vector.load %arg4[%c0_69, %c112, %c0_70] : memref<8x128x16xf32, #tpu.memory_space<vmem>>, vector<8x16x16xf32>
    tpu.vector_store %arg4[%c0_69, %c112, %c0_70], %203 {strides = array<i32>} : memref<8x128x16xf32, #tpu.memory_space<vmem>>, vector<8x16x16xf32>,
    return
  }
  func.func @transform_0(%arg0: i32) -> (i32, i32) {
    %c0_i32 = arith.constant 0 : i32
    %c0_i32_0 = arith.constant 0 : i32
    return %arg0, %c0_i32 : i32, i32
  }
  func.func @transform_1(%arg0: i32) -> (i32, i32) {
    %c0_i32 = arith.constant 0 : i32
    %c0_i32_0 = arith.constant 0 : i32
    return %arg0, %c0_i32 : i32, i32
  }
  func.func @transform_2(%arg0: i32) -> (i32, i32, i32) {
    %c0_i32 = arith.constant 0 : i32
    %c0_i32_0 = arith.constant 0 : i32
    %c0_i32_1 = arith.constant 0 : i32
    return %arg0, %c0_i32, %c0_i32_0 : i32, i32, i32
  }
  func.func @transform_3(%arg0: i32) -> (i32, i32, i32) {
    %c0_i32 = arith.constant 0 : i32
    %c0_i32_0 = arith.constant 0 : i32
    %c0_i32_1 = arith.constant 0 : i32
    return %arg0, %c0_i32, %c0_i32_0 : i32, i32, i32
  }
}

</mosaic_0001>

<llo_original>
// kernel: tpu_custom_call.1
$region0: #{tpu_custom_call.1}
  #allocation0 [shape = 'u32[]', space=smem, size = 0x4, offset = 0x4, fixed_abs, tag = 'smem constant byte address 0x4 - core index']
  #allocation1 [shape = 'u32[144,128]{1,0:T(1,128)}', space=vmem, size = 0x12000, scoped, tag = 'internal scratch']
  %s0 = inlined_call_operand.vmem [shape: f32[8,1], index: 0, kind: input, shape index: {}]
  %s1 = inlined_call_operand.vmem [shape: f32[8,128], index: 1, kind: input, shape index: {}]
  %s2 = inlined_call_operand.vmem [shape: f32[8,128,16], index: 2, kind: input, shape index: {}]
  %s3 = inlined_call_operand.vmem [shape: f32[8,128,16], index: 3, kind: output, shape index: {}]
  %s4 = sld [smem:[#allocation0]]
  $region22: #{tpu_custom_call.1} parent=0
    _
  %s6 = ssub.s32 1, %s4
  %s7 = scalar_select 0, %s6, %s4
  // Predicated region
  $region2: #{tpu_custom_call.1} parent=0 // pred_check
    _
  $region3: #{tpu_custom_call.1} parent=0 // pred_check_branch
    %9 = sbr.rel (0) target = $region5
  $region4: #{tpu_custom_call.1} parent=0 // pred_region
    _
  $region5: #{tpu_custom_call.1} parent=0 // pred_fallthru
    _
  // Predicated region
  $region6: #{tpu_custom_call.1} parent=0 // pred_check
    _
  $region7: #{tpu_custom_call.1} parent=0 // pred_check_branch
    %11 = sbr.rel (0) target = $region9
  $region8: #{tpu_custom_call.1} parent=0 // pred_region
    _
  $region9: #{tpu_custom_call.1} parent=0 // pred_fallthru
    _
  // Predicated region
  $region10: #{tpu_custom_call.1} parent=0 // pred_check
    _
  $region11: #{tpu_custom_call.1} parent=0 // pred_check_branch
    %13 = sbr.rel (0) target = $region13
  $region12: #{tpu_custom_call.1} parent=0 // pred_region
    _
  $region13: #{tpu_custom_call.1} parent=0 // pred_fallthru
    _
  %v14 = vld [vmem:[%s1] sm:$0xff]
  %v15 = vmul.f32 %v14, 1.442695
  %v16 = vpow.pop %v15
  %v17 = vlaneseq
  %v18 = vand.u32 %v17, 127
  %19 = vrot.lane.b32.xlu0 %v16, 1
  %v20 = vpop.permute.xlu0 %19
  %vm21 = vcmp.ge.s32.totalorder %v18, 1
  %v22 = vsel %vm21, %v20, 0.0
  %v23 = vadd.f32 %v16, %v22
  %24 = vrot.lane.b32.xlu0 %v23, 2
  %v25 = vpop.permute.xlu0 %24
  %vm26 = vcmp.ge.s32.totalorder %v18, 2
  %v27 = vsel %vm26, %v25, 0.0
  %v28 = vadd.f32 %v23, %v27
  %29 = vrot.lane.b32.xlu0 %v28, 4
  %v30 = vpop.permute.xlu0 %29
  %vm31 = vcmp.ge.s32.totalorder %v18, 4
  %v32 = vsel %vm31, %v30, 0.0
  %v33 = vadd.f32 %v28, %v32
  %34 = vrot.lane.b32.xlu0 %v33, 8
  %v35 = vpop.permute.xlu0 %34
  %vm36 = vcmp.ge.s32.totalorder %v18, 8
  %v37 = vsel %vm36, %v35, 0.0
  %v38 = vadd.f32 %v33, %v37
  %39 = vrot.lane.b32.xlu0 %v38, 16
  %v40 = vpop.permute.xlu0 %39
  %vm41 = vcmp.ge.s32.totalorder %v18, 16
  %v42 = vsel %vm41, %v40, 0.0
  %v43 = vadd.f32 %v38, %v42
  %44 = vrot.lane.b32.xlu0 %v43, 32
  %v45 = vpop.permute.xlu0 %44
  %vm46 = vcmp.ge.s32.totalorder %v18, 32
  %v47 = vsel %vm46, %v45, 0.0
  %v48 = vadd.f32 %v43, %v47
  %49 = vrot.lane.b32.xlu0 %v48, 64
  %v50 = vpop.permute.xlu0 %49
  %vm51 = vcmp.ge.s32.totalorder %v18, 64
  %v52 = vsel %vm51, %v50, 0.0
  %v53 = vadd.f32 %v48, %v52
  %54 = vrot.lane.b32.xlu0 %v53, 1
  %v55 = vpop.permute.xlu0 %54
  %v56 = vmax.f32 %v53, %v55
  %v57 = vsel %vm21, %v56, %v53
  %58 = vrot.lane.b32.xlu0 %v57, 2
  %v59 = vpop.permute.xlu0 %58
  %v60 = vmax.f32 %v57, %v59
  %v61 = vsel %vm26, %v60, %v57
  %62 = vrot.lane.b32.xlu0 %v61, 4
  %v63 = vpop.permute.xlu0 %62
  %v64 = vmax.f32 %v61, %v63
  %v65 = vsel %vm31, %v64, %v61
  %66 = vrot.lane.b32.xlu0 %v65, 8
  %v67 = vpop.permute.xlu0 %66
  %v68 = vmax.f32 %v65, %v67
  %v69 = vsel %vm36, %v68, %v65
  %70 = vrot.lane.b32.xlu0 %v69, 16
  %v71 = vpop.permute.xlu0 %70
  %v72 = vmax.f32 %v69, %v71
  %v73 = vsel %vm41, %v72, %v69
  %74 = vrot.lane.b32.xlu0 %v73, 32
  %v75 = vpop.permute.xlu0 %74
  %v76 = vmax.f32 %v73, %v75
  %v77 = vsel %vm46, %v76, %v73
  %78 = vrot.lane.b32.xlu0 %v77, 64
  %v79 = vpop.permute.xlu0 %78
  %v80 = vmax.f32 %v77, %v79
  %v81 = vsel %vm51, %v80, %v77
  %v82 = vmin.f32 %v81, 1.0
  %vm83 = vcmp.eq.s32.totalorder %v18, 127
  %v84 = vsel %vm83, 1.0, %v82
  %v85 = vmul.f32 %v84, 128.0
  %v86 = vld [vmem:[%s0] sm:$0xff]
  %88 = vset.pattern.permute.xlu0 0
  %89 = vperm.xlu0 %88, %v86
  %v90 = vpop.permute.xlu0 %89
  %v92 = vsub.f32 %v85, %v90
  %93 = vrot.lane.b32.xlu0 %v92, 1
  %v94 = vpop.permute.xlu0 %93
  %vm95 = vcmp.eq.s32.totalorder %v18, 0
  %v96 = vsel %vm95, -1.0, %v94
  %v98 = vcombine.high %v92, %v92
  %v100 = vunpack.c.l.s4 1966171168
  %v101 = vunpack.c.0.s8 %v100
  %v102 = vlaneseq
  %v103 = vshrl.u32 %v102, 7
  %v104 = vsub.s32 %v101, %v103
  %v105 = vrot.slane %v92, %v104
  %v107 = vunpack.c.l.s4 1966171168
  %v108 = vunpack.c.0.s8 %v107
  %v109 = vlaneseq
  %v110 = vshrl.u32 %v109, 7
  %v111 = vsub.s32 %v108, %v110
  %v112 = vrot.slane %v98, %v111
  %v113 = vcombine.high %v105, %v105
  %v114 = vcombine.high %v112, %v112
  %v116 = vunpack.c.l.s4 1966171168
  %v117 = vunpack.c.0.s8 %v116
  %v118 = vlaneseq
  %v119 = vshrl.u32 %v118, 7
  %v120 = vsub.s32 %v117, %v119
  %v121 = vrot.slane %v105, %v120
  %v123 = vunpack.c.l.s4 1966171168
  %v124 = vunpack.c.0.s8 %v123
  %v125 = vlaneseq
  %v126 = vshrl.u32 %v125, 7
  %v127 = vsub.s32 %v124, %v126
  %v128 = vrot.slane %v112, %v127
  %v130 = vunpack.c.l.s4 1966171168
  %v131 = vunpack.c.0.s8 %v130
  %v132 = vlaneseq
  %v133 = vshrl.u32 %v132, 7
  %v134 = vsub.s32 %v131, %v133
  %v135 = vrot.slane %v113, %v134
  %v137 = vunpack.c.l.s4 1966171168
  %v138 = vunpack.c.0.s8 %v137
  %v139 = vlaneseq
  %v140 = vshrl.u32 %v139, 7
  %v141 = vsub.s32 %v138, %v140
  %v142 = vrot.slane %v114, %v141
  %v143 = vcombine.high %v121, %v121
  %v144 = vcombine.high %v128, %v128
  %v145 = vcombine.high %v135, %v135
  %v146 = vcombine.high %v142, %v142
  %v148 = vcombine.high %v96, %v96
  %v150 = vunpack.c.l.s4 1966171168
  %v151 = vunpack.c.0.s8 %v150
  %v152 = vlaneseq
  %v153 = vshrl.u32 %v152, 7
  %v154 = vsub.s32 %v151, %v153
  %v155 = vrot.slane %v96, %v154
  %v157 = vunpack.c.l.s4 1966171168
  %v158 = vunpack.c.0.s8 %v157
  %v159 = vlaneseq
  %v160 = vshrl.u32 %v159, 7
  %v161 = vsub.s32 %v158, %v160
  %v162 = vrot.slane %v148, %v161
  %v163 = vcombine.high %v155, %v155
  %v164 = vcombine.high %v162, %v162
  %v166 = vunpack.c.l.s4 1966171168
  %v167 = vunpack.c.0.s8 %v166
  %v168 = vlaneseq
  %v169 = vshrl.u32 %v168, 7
  %v170 = vsub.s32 %v167, %v169
  %v171 = vrot.slane %v155, %v170
  %v173 = vunpack.c.l.s4 1966171168
  %v174 = vunpack.c.0.s8 %v173
  %v175 = vlaneseq
  %v176 = vshrl.u32 %v175, 7
  %v177 = vsub.s32 %v174, %v176
  %v178 = vrot.slane %v162, %v177
  %v180 = vunpack.c.l.s4 1966171168
  %v181 = vunpack.c.0.s8 %v180
  %v182 = vlaneseq
  %v183 = vshrl.u32 %v182, 7
  %v184 = vsub.s32 %v181, %v183
  %v185 = vrot.slane %v163, %v184
  %v187 = vunpack.c.l.s4 1966171168
  %v188 = vunpack.c.0.s8 %v187
  %v189 = vlaneseq
  %v190 = vshrl.u32 %v189, 7
  %v191 = vsub.s32 %v188, %v190
  %v192 = vrot.slane %v164, %v191
  %v193 = vcombine.high %v171, %v171
  %v194 = vcombine.high %v178, %v178
  %v195 = vcombine.high %v185, %v185
  %v196 = vcombine.high %v192, %v192
  %v197 = vlaneseq
  %v198 = vshrl.u32 %v197, 7
  %v199 = vadd.s32 %v198, 8
  %v200 = vcvt.s32.f32 %v198
  %v201 = vcvt.s32.f32 %v199
  %v202 = vld [vmem:[%s2] sm:$0xff]
  %v203 = vld [vmem:[%s2 + $0x8] sm:$0xff]
  %v204 = vld [vmem:[%s2 + $0x10] sm:$0xff]
  %v205 = vld [vmem:[%s2 + $0x18] sm:$0xff]
  %v206 = vld [vmem:[%s2 + $0x20] sm:$0xff]
  %v207 = vld [vmem:[%s2 + $0x28] sm:$0xff]
  %v208 = vld [vmem:[%s2 + $0x30] sm:$0xff]
  %v209 = vld [vmem:[%s2 + $0x38] sm:$0xff]
  %v210 = vld [vmem:[%s2 + $0x40] sm:$0xff]
  %v211 = vld [vmem:[%s2 + $0x48] sm:$0xff]
  %v212 = vld [vmem:[%s2 + $0x50] sm:$0xff]
  %v213 = vld [vmem:[%s2 + $0x58] sm:$0xff]
  %v214 = vld [vmem:[%s2 + $0x60] sm:$0xff]
  %v215 = vld [vmem:[%s2 + $0x68] sm:$0xff]
  %v216 = vld [vmem:[%s2 + $0x70] sm:$0xff]
  %v217 = vld [vmem:[%s2 + $0x78] sm:$0xff]
  %v218 = vld [vmem:[%s2 + $0x80] sm:$0xff]
  %v219 = vld [vmem:[%s2 + $0x88] sm:$0xff]
  %v220 = vld [vmem:[%s2 + $0x90] sm:$0xff]
  %v221 = vld [vmem:[%s2 + $0x98] sm:$0xff]
  %v222 = vld [vmem:[%s2 + $0xa0] sm:$0xff]
  %v223 = vld [vmem:[%s2 + $0xa8] sm:$0xff]
  %v224 = vld [vmem:[%s2 + $0xb0] sm:$0xff]
  %v225 = vld [vmem:[%s2 + $0xb8] sm:$0xff]
  %v226 = vld [vmem:[%s2 + $0xc0] sm:$0xff]
  %v227 = vld [vmem:[%s2 + $0xc8] sm:$0xff]
  %v228 = vld [vmem:[%s2 + $0xd0] sm:$0xff]
  %v229 = vld [vmem:[%s2 + $0xd8] sm:$0xff]
  %v230 = vld [vmem:[%s2 + $0xe0] sm:$0xff]
  %v231 = vld [vmem:[%s2 + $0xe8] sm:$0xff]
  %v232 = vld [vmem:[%s2 + $0xf0] sm:$0xff]
  %v233 = vld [vmem:[%s2 + $0xf8] sm:$0xff]
  %v234 = vld [vmem:[%s2 + $0x100] sm:$0xff]
  %v235 = vld [vmem:[%s2 + $0x108] sm:$0xff]
  %v236 = vld [vmem:[%s2 + $0x110] sm:$0xff]
  %v237 = vld [vmem:[%s2 + $0x118] sm:$0xff]
  %v238 = vld [vmem:[%s2 + $0x120] sm:$0xff]
  %v239 = vld [vmem:[%s2 + $0x128] sm:$0xff]
  %v240 = vld [vmem:[%s2 + $0x130] sm:$0xff]
  %v241 = vld [vmem:[%s2 + $0x138] sm:$0xff]
  %v242 = vld [vmem:[%s2 + $0x140] sm:$0xff]
  %v243 = vld [vmem:[%s2 + $0x148] sm:$0xff]
  %v244 = vld [vmem:[%s2 + $0x150] sm:$0xff]
  %v245 = vld [vmem:[%s2 + $0x158] sm:$0xff]
  %v246 = vld [vmem:[%s2 + $0x160] sm:$0xff]
  %v247 = vld [vmem:[%s2 + $0x168] sm:$0xff]
  %v248 = vld [vmem:[%s2 + $0x170] sm:$0xff]
  %v249 = vld [vmem:[%s2 + $0x178] sm:$0xff]
  %v250 = vld [vmem:[%s2 + $0x180] sm:$0xff]
  %v251 = vld [vmem:[%s2 + $0x188] sm:$0xff]
  %v252 = vld [vmem:[%s2 + $0x190] sm:$0xff]
  %v253 = vld [vmem:[%s2 + $0x198] sm:$0xff]
  %v254 = vld [vmem:[%s2 + $0x1a0] sm:$0xff]
  %v255 = vld [vmem:[%s2 + $0x1a8] sm:$0xff]
  %v256 = vld [vmem:[%s2 + $0x1b0] sm:$0xff]
  %v257 = vld [vmem:[%s2 + $0x1b8] sm:$0xff]
  %v258 = vld [vmem:[%s2 + $0x1c0] sm:$0xff]
  %v259 = vld [vmem:[%s2 + $0x1c8] sm:$0xff]
  %v260 = vld [vmem:[%s2 + $0x1d0] sm:$0xff]
  %v261 = vld [vmem:[%s2 + $0x1d8] sm:$0xff]
  %v262 = vld [vmem:[%s2 + $0x1e0] sm:$0xff]
  %v263 = vld [vmem:[%s2 + $0x1e8] sm:$0xff]
  %v264 = vld [vmem:[%s2 + $0x1f0] sm:$0xff]
  %v265 = vld [vmem:[%s2 + $0x1f8] sm:$0xff]
  %v266 = vld [vmem:[%s2 + $0x200] sm:$0xff]
  %v267 = vld [vmem:[%s2 + $0x208] sm:$0xff]
  %v268 = vld [vmem:[%s2 + $0x210] sm:$0xff]
  %v269 = vld [vmem:[%s2 + $0x218] sm:$0xff]
  %v270 = vld [vmem:[%s2 + $0x220] sm:$0xff]
  %v271 = vld [vmem:[%s2 + $0x228] sm:$0xff]
  %v272 = vld [vmem:[%s2 + $0x230] sm:$0xff]
  %v273 = vld [vmem:[%s2 + $0x238] sm:$0xff]
  %v274 = vld [vmem:[%s2 + $0x240] sm:$0xff]
  %v275 = vld [vmem:[%s2 + $0x248] sm:$0xff]
  %v276 = vld [vmem:[%s2 + $0x250] sm:$0xff]
  %v277 = vld [vmem:[%s2 + $0x258] sm:$0xff]
  %v278 = vld [vmem:[%s2 + $0x260] sm:$0xff]
  %v279 = vld [vmem:[%s2 + $0x268] sm:$0xff]
  %v280 = vld [vmem:[%s2 + $0x270] sm:$0xff]
  %v281 = vld [vmem:[%s2 + $0x278] sm:$0xff]
  %v282 = vld [vmem:[%s2 + $0x280] sm:$0xff]
  %v283 = vld [vmem:[%s2 + $0x288] sm:$0xff]
  %v284 = vld [vmem:[%s2 + $0x290] sm:$0xff]
  %v285 = vld [vmem:[%s2 + $0x298] sm:$0xff]
  %v286 = vld [vmem:[%s2 + $0x2a0] sm:$0xff]
  %v287 = vld [vmem:[%s2 + $0x2a8] sm:$0xff]
  %v288 = vld [vmem:[%s2 + $0x2b0] sm:$0xff]
  %v289 = vld [vmem:[%s2 + $0x2b8] sm:$0xff]
  %v290 = vld [vmem:[%s2 + $0x2c0] sm:$0xff]
  %v291 = vld [vmem:[%s2 + $0x2c8] sm:$0xff]
  %v292 = vld [vmem:[%s2 + $0x2d0] sm:$0xff]
  %v293 = vld [vmem:[%s2 + $0x2d8] sm:$0xff]
  %v294 = vld [vmem:[%s2 + $0x2e0] sm:$0xff]
  %v295 = vld [vmem:[%s2 + $0x2e8] sm:$0xff]
  %v296 = vld [vmem:[%s2 + $0x2f0] sm:$0xff]
  %v297 = vld [vmem:[%s2 + $0x2f8] sm:$0xff]
  %v298 = vld [vmem:[%s2 + $0x300] sm:$0xff]
  %v299 = vld [vmem:[%s2 + $0x308] sm:$0xff]
  %v300 = vld [vmem:[%s2 + $0x310] sm:$0xff]
  %v301 = vld [vmem:[%s2 + $0x318] sm:$0xff]
  %v302 = vld [vmem:[%s2 + $0x320] sm:$0xff]
  %v303 = vld [vmem:[%s2 + $0x328] sm:$0xff]
  %v304 = vld [vmem:[%s2 + $0x330] sm:$0xff]
  %v305 = vld [vmem:[%s2 + $0x338] sm:$0xff]
  %v306 = vld [vmem:[%s2 + $0x340] sm:$0xff]
  %v307 = vld [vmem:[%s2 + $0x348] sm:$0xff]
  %v308 = vld [vmem:[%s2 + $0x350] sm:$0xff]
  %v309 = vld [vmem:[%s2 + $0x358] sm:$0xff]
  %v310 = vld [vmem:[%s2 + $0x360] sm:$0xff]
  %v311 = vld [vmem:[%s2 + $0x368] sm:$0xff]
  %v312 = vld [vmem:[%s2 + $0x370] sm:$0xff]
  %v313 = vld [vmem:[%s2 + $0x378] sm:$0xff]
  %v314 = vld [vmem:[%s2 + $0x380] sm:$0xff]
  %v315 = vld [vmem:[%s2 + $0x388] sm:$0xff]
  %v316 = vld [vmem:[%s2 + $0x390] sm:$0xff]
  %v317 = vld [vmem:[%s2 + $0x398] sm:$0xff]
  %v318 = vld [vmem:[%s2 + $0x3a0] sm:$0xff]
  %v319 = vld [vmem:[%s2 + $0x3a8] sm:$0xff]
  %v320 = vld [vmem:[%s2 + $0x3b0] sm:$0xff]
  %v321 = vld [vmem:[%s2 + $0x3b8] sm:$0xff]
  %v322 = vld [vmem:[%s2 + $0x3c0] sm:$0xff]
  %v323 = vld [vmem:[%s2 + $0x3c8] sm:$0xff]
  %v324 = vld [vmem:[%s2 + $0x3d0] sm:$0xff]
  %v325 = vld [vmem:[%s2 + $0x3d8] sm:$0xff]
  %v326 = vld [vmem:[%s2 + $0x3e0] sm:$0xff]
  %v327 = vld [vmem:[%s2 + $0x3e8] sm:$0xff]
  %v328 = vld [vmem:[%s2 + $0x3f0] sm:$0xff]
  %v329 = vld [vmem:[%s2 + $0x3f8] sm:$0xff]
  %v330 = vadd.f32 %v200, 0.0
  %v331 = vadd.f32 %v201, 0.0
  %v332 = vlaneseq
  %v333 = vshrl.u32 %v332, 7
  %v334 = vsub.s32 0, %v333
  %v335 = vrot.slane %v121, %v334
  %v336 = vlaneseq
  %v337 = vshrl.u32 %v336, 7
  %v338 = vsub.s32 0, %v337
  %v339 = vrot.slane %v135, %v338
  %v340 = vlaneseq
  %v341 = vshrl.u32 %v340, 7
  %v342 = vsub.s32 0, %v341
  %v343 = vrot.slane %v143, %v342
  %v344 = vlaneseq
  %v345 = vshrl.u32 %v344, 7
  %v346 = vsub.s32 0, %v345
  %v347 = vrot.slane %v145, %v346
  %v348 = vlaneseq
  %v349 = vshrl.u32 %v348, 7
  %v350 = vsub.s32 0, %v349
  %v351 = vrot.slane %v128, %v350
  %v352 = vlaneseq
  %v353 = vshrl.u32 %v352, 7
  %v354 = vsub.s32 0, %v353
  %v355 = vrot.slane %v142, %v354
  %v356 = vlaneseq
  %v357 = vshrl.u32 %v356, 7
  %v358 = vsub.s32 0, %v357
  %v359 = vrot.slane %v144, %v358
  %v360 = vlaneseq
  %v361 = vshrl.u32 %v360, 7
  %v362 = vsub.s32 0, %v361
  %v363 = vrot.slane %v146, %v362
  %vm372 = vcmp.ge.f32.partialorder %v335, %v330
  %vm373 = vcmp.ge.f32.partialorder %v335, %v331
  %vm374 = vcmp.ge.f32.partialorder %v339, %v330
  %vm375 = vcmp.ge.f32.partialorder %v339, %v331
  %vm376 = vcmp.ge.f32.partialorder %v343, %v330
  %vm377 = vcmp.ge.f32.partialorder %v343, %v331
  %vm378 = vcmp.ge.f32.partialorder %v347, %v330
  %vm379 = vcmp.ge.f32.partialorder %v347, %v331
  %vm380 = vcmp.ge.f32.partialorder %v351, %v330
  %vm381 = vcmp.ge.f32.partialorder %v351, %v331
  %vm382 = vcmp.ge.f32.partialorder %v355, %v330
  %vm383 = vcmp.ge.f32.partialorder %v355, %v331
  %vm384 = vcmp.ge.f32.partialorder %v359, %v330
  %vm385 = vcmp.ge.f32.partialorder %v359, %v331
  %vm386 = vcmp.ge.f32.partialorder %v363, %v330
  %vm387 = vcmp.ge.f32.partialorder %v363, %v331
  %v388 = vlaneseq
  %v389 = vshrl.u32 %v388, 7
  %v390 = vsub.s32 0, %v389
  %v391 = vrot.slane %v171, %v390
  %v392 = vlaneseq
  %v393 = vshrl.u32 %v392, 7
  %v394 = vsub.s32 0, %v393
  %v395 = vrot.slane %v185, %v394
  %v396 = vlaneseq
  %v397 = vshrl.u32 %v396, 7
  %v398 = vsub.s32 0, %v397
  %v399 = vrot.slane %v193, %v398
  %v400 = vlaneseq
  %v401 = vshrl.u32 %v400, 7
  %v402 = vsub.s32 0, %v401
  %v403 = vrot.slane %v195, %v402
  %v404 = vlaneseq
  %v405 = vshrl.u32 %v404, 7
  %v406 = vsub.s32 0, %v405
  %v407 = vrot.slane %v178, %v406
  %v408 = vlaneseq
  %v409 = vshrl.u32 %v408, 7
  %v410 = vsub.s32 0, %v409
  %v411 = vrot.slane %v192, %v410
  %v412 = vlaneseq
  %v413 = vshrl.u32 %v412, 7
  %v414 = vsub.s32 0, %v413
  %v415 = vrot.slane %v194, %v414
  %v416 = vlaneseq
  %v417 = vshrl.u32 %v416, 7
  %v418 = vsub.s32 0, %v417
  %v419 = vrot.slane %v196, %v418
  %vm428 = vcmp.lt.f32.partialorder %v391, %v330
  %vm429 = vcmp.lt.f32.partialorder %v391, %v331
  %vm430 = vcmp.lt.f32.partialorder %v395, %v330
  %vm431 = vcmp.lt.f32.partialorder %v395, %v331
  %vm432 = vcmp.lt.f32.partialorder %v399, %v330
  %vm433 = vcmp.lt.f32.partialorder %v399, %v331
  %vm434 = vcmp.lt.f32.partialorder %v403, %v330
  %vm435 = vcmp.lt.f32.partialorder %v403, %v331
  %vm436 = vcmp.lt.f32.partialorder %v407, %v330
  %vm437 = vcmp.lt.f32.partialorder %v407, %v331
  %vm438 = vcmp.lt.f32.partialorder %v411, %v330
  %vm439 = vcmp.lt.f32.partialorder %v411, %v331
  %vm440 = vcmp.lt.f32.partialorder %v415, %v330
  %vm441 = vcmp.lt.f32.partialorder %v415, %v331
  %vm442 = vcmp.lt.f32.partialorder %v419, %v330
  %vm443 = vcmp.lt.f32.partialorder %v419, %v331
  %vm444 = vmand %vm372, %vm428
  %vm445 = vmand %vm373, %vm429
  %vm446 = vmand %vm374, %vm430
  %vm447 = vmand %vm375, %vm431
  %vm448 = vmand %vm376, %vm432
  %vm449 = vmand %vm377, %vm433
  %vm450 = vmand %vm378, %vm434
  %vm451 = vmand %vm379, %vm435
  %vm452 = vmand %vm380, %vm436
  %vm453 = vmand %vm381, %vm437
  %vm454 = vmand %vm382, %vm438
  %vm455 = vmand %vm383, %vm439
  %vm456 = vmand %vm384, %vm440
  %vm457 = vmand %vm385, %vm441
  %vm458 = vmand %vm386, %vm442
  %vm459 = vmand %vm387, %vm443
  %v460 = vsel %vm444, 1, 0
  %v461 = vsel %vm445, 1, 0
  %v462 = vsel %vm446, 1, 0
  %v463 = vsel %vm447, 1, 0
  %v464 = vsel %vm448, 1, 0
  %v465 = vsel %vm449, 1, 0
  %v466 = vsel %vm450, 1, 0
  %v467 = vsel %vm451, 1, 0
  %v468 = vsel %vm452, 1, 0
  %v469 = vsel %vm453, 1, 0
  %v470 = vsel %vm454, 1, 0
  %v471 = vsel %vm455, 1, 0
  %v472 = vsel %vm456, 1, 0
  %v473 = vsel %vm457, 1, 0
  %v474 = vsel %vm458, 1, 0
  %v475 = vsel %vm459, 1, 0
  %v476 = vcvt.s32.f32 %v460
  %v477 = vcvt.s32.f32 %v461
  %v478 = vcvt.s32.f32 %v462
  %v479 = vcvt.s32.f32 %v463
  %v480 = vcvt.s32.f32 %v464
  %v481 = vcvt.s32.f32 %v465
  %v482 = vcvt.s32.f32 %v466
  %v483 = vcvt.s32.f32 %v467
  %v484 = vcvt.s32.f32 %v468
  %v485 = vcvt.s32.f32 %v469
  %v486 = vcvt.s32.f32 %v470
  %v487 = vcvt.s32.f32 %v471
  %v488 = vcvt.s32.f32 %v472
  %v489 = vcvt.s32.f32 %v473
  %v490 = vcvt.s32.f32 %v474
  %v491 = vcvt.s32.f32 %v475
  %492 = vmatprep.subr.mxu0 0.0
  %493 = vmatpush1.msra.mxu0 %v217
  %494 = vmatprep.subr.mxu0 0.0
  %495 = vmatpush1.msra.mxu0 %v216
  %496 = vmatprep.subr.mxu0 0.0
  %497 = vmatpush1.msra.mxu0 %v215
  %498 = vmatprep.subr.mxu0 0.0
  %499 = vmatpush1.msra.mxu0 %v214
  %500 = vmatprep.subr.mxu0 0.0
  %501 = vmatpush1.msra.mxu0 %v213
  %502 = vmatprep.subr.mxu0 0.0
  %503 = vmatpush1.msra.mxu0 %v212
  %504 = vmatprep.subr.mxu0 0.0
  %505 = vmatpush1.msra.mxu0 %v211
  %506 = vmatprep.subr.mxu0 0.0
  %507 = vmatpush1.msra.mxu0 %v210
  %508 = vmatprep.subr.mxu0 0.0
  %509 = vmatpush1.msra.mxu0 %v209
  %510 = vmatprep.subr.mxu0 0.0
  %511 = vmatpush1.msra.mxu0 %v208
  %512 = vmatprep.subr.mxu0 0.0
  %513 = vmatpush1.msra.mxu0 %v207
  %514 = vmatprep.subr.mxu0 0.0
  %515 = vmatpush1.msra.mxu0 %v206
  %516 = vmatprep.subr.mxu0 0.0
  %517 = vmatpush1.msra.mxu0 %v205
  %518 = vmatprep.subr.mxu0 0.0
  %519 = vmatpush1.msra.mxu0 %v204
  %520 = vmatprep.subr.mxu0 0.0
  %521 = vmatpush1.msra.mxu0 %v203
  %522 = vmatprep.subr.mxu0 0.0
  %523 = vmatpush1.msra.mxu0 %v202
  %524 = vmatprep.subr.mxu0 0.0
  %525 = vmatpush2.msra.mxu0 0.0
  %526 = vmatprep.subr.mxu0 0.0
  %527 = vmatpush2.msra.mxu0 0.0
  %528 = vmatprep.subr.mxu0 0.0
  %529 = vmatpush2.msra.mxu0 0.0
  %530 = vmatprep.subr.mxu0 0.0
  %531 = vmatpush2.msra.mxu0 0.0
  %532 = vmatprep.subr.mxu0 0.0
  %533 = vmatpush2.msra.mxu0 0.0
  %534 = vmatprep.subr.mxu0 0.0
  %535 = vmatpush2.msra.mxu0 0.0
  %536 = vmatprep.subr.mxu0 0.0
  %537 = vmatpush2.msra.mxu0 0.0
  %538 = vmatprep.subr.mxu0 0.0
  %539 = vmatpush2.msra.mxu0 0.0
  %540 = vmatprep.subr.mxu0 0.0
  %541 = vmatpush2.msra.mxu0 0.0
  %542 = vmatprep.subr.mxu0 0.0
  %543 = vmatpush2.msra.mxu0 0.0
  %544 = vmatprep.subr.mxu0 0.0
  %545 = vmatpush2.msra.mxu0 0.0
  %546 = vmatprep.subr.mxu0 0.0
  %547 = vmatpush2.msra.mxu0 0.0
  %548 = vmatprep.subr.mxu0 0.0
  %549 = vmatpush2.msra.mxu0 0.0
  %550 = vmatprep.subr.mxu0 0.0
  %551 = vmatpush2.msra.mxu0 0.0
  %552 = vmatprep.subr.mxu0 0.0
  %553 = vmatpush2.msra.mxu0 0.0
  %554 = vmatprep.subr.mxu0 0.0
  %555 = vmatpush2.msra.mxu0 0.0
  %556 = vmatprep.mubr.f32.mxu0 0.0
  %557 = vmatmul.mubr.f32.gmra.mxu0 %v476
  %v558 = vpop.f32.mrf.mxu0
  %v559 = vadd.f32 0.0, %v558
  %v560 = vpop.f32.mrf.mxu0
  %561 = vmatprep.mubr.f32.mxu0 0.0
  %562 = vmatmul.mubr.f32.gmra.mxu0 %v477
  %v563 = vpop.f32.mrf.mxu0
  %v564 = vadd.f32 0.0, %v563
  %v565 = vpop.f32.mrf.mxu0
  %566 = vdwg.mxu0
  %567 = vmatprep.subr.mxu0 0.0
  %568 = vmatpush1.msra.mxu0 %v233
  %569 = vmatprep.subr.mxu0 0.0
  %570 = vmatpush1.msra.mxu0 %v232
  %571 = vmatprep.subr.mxu0 0.0
  %572 = vmatpush1.msra.mxu0 %v231
  %573 = vmatprep.subr.mxu0 0.0
  %574 = vmatpush1.msra.mxu0 %v230
  %575 = vmatprep.subr.mxu0 0.0
  %576 = vmatpush1.msra.mxu0 %v229
  %577 = vmatprep.subr.mxu0 0.0
  %578 = vmatpush1.msra.mxu0 %v228
  %579 = vmatprep.subr.mxu0 0.0
  %580 = vmatpush1.msra.mxu0 %v227
  %581 = vmatprep.subr.mxu0 0.0
  %582 = vmatpush1.msra.mxu0 %v226
  %583 = vmatprep.subr.mxu0 0.0
  %584 = vmatpush1.msra.mxu0 %v225
  %585 = vmatprep.subr.mxu0 0.0
  %586 = vmatpush1.msra.mxu0 %v224
  %587 = vmatprep.subr.mxu0 0.0
  %588 = vmatpush1.msra.mxu0 %v223
  %589 = vmatprep.subr.mxu0 0.0
  %590 = vmatpush1.msra.mxu0 %v222
  %591 = vmatprep.subr.mxu0 0.0
  %592 = vmatpush1.msra.mxu0 %v221
  %593 = vmatprep.subr.mxu0 0.0
  %594 = vmatpush1.msra.mxu0 %v220
  %595 = vmatprep.subr.mxu0 0.0
  %596 = vmatpush1.msra.mxu0 %v219
  %597 = vmatprep.subr.mxu0 0.0
  %598 = vmatpush1.msra.mxu0 %v218
  %599 = vmatprep.subr.mxu0 0.0
  %600 = vmatpush2.msra.mxu0 0.0
  %601 = vmatprep.subr.mxu0 0.0
  %602 = vmatpush2.msra.mxu0 0.0
  %603 = vmatprep.subr.mxu0 0.0
  %604 = vmatpush2.msra.mxu0 0.0
  %605 = vmatprep.subr.mxu0 0.0
  %606 = vmatpush2.msra.mxu0 0.0
  %607 = vmatprep.subr.mxu0 0.0
  %608 = vmatpush2.msra.mxu0 0.0
  %609 = vmatprep.subr.mxu0 0.0
  %610 = vmatpush2.msra.mxu0 0.0
  %611 = vmatprep.subr.mxu0 0.0
  %612 = vmatpush2.msra.mxu0 0.0
  %613 = vmatprep.subr.mxu0 0.0
  %614 = vmatpush2.msra.mxu0 0.0
  %615 = vmatprep.subr.mxu0 0.0
  %616 = vmatpush2.msra.mxu0 0.0
  %617 = vmatprep.subr.mxu0 0.0
  %618 = vmatpush2.msra.mxu0 0.0
  %619 = vmatprep.subr.mxu0 0.0
  %620 = vmatpush2.msra.mxu0 0.0
  %621 = vmatprep.subr.mxu0 0.0
  %622 = vmatpush2.msra.mxu0 0.0
  %623 = vmatprep.subr.mxu0 0.0
  %624 = vmatpush2.msra.mxu0 0.0
  %625 = vmatprep.subr.mxu0 0.0
  %626 = vmatpush2.msra.mxu0 0.0
  %627 = vmatprep.subr.mxu0 0.0
  %628 = vmatpush2.msra.mxu0 0.0
  %629 = vmatprep.subr.mxu0 0.0
  %630 = vmatpush2.msra.mxu0 0.0
  %631 = vmatprep.mubr.f32.mxu0 0.0
  %632 = vmatmul.mubr.f32.gmra.mxu0 %v478
  %v633 = vpop.f32.mrf.mxu0
  %v634 = vadd.f32 0.0, %v633
  %v635 = vpop.f32.mrf.mxu0
  %636 = vmatprep.mubr.f32.mxu0 0.0
  %637 = vmatmul.mubr.f32.gmra.mxu0 %v479
  %v638 = vpop.f32.mrf.mxu0
  %v639 = vadd.f32 0.0, %v638
  %v640 = vpop.f32.mrf.mxu0
  %641 = vdwg.mxu0
  %642 = vmatprep.subr.mxu0 0.0
  %643 = vmatpush1.msra.mxu0 %v249
  %644 = vmatprep.subr.mxu0 0.0
  %645 = vmatpush1.msra.mxu0 %v248
  %646 = vmatprep.subr.mxu0 0.0
  %647 = vmatpush1.msra.mxu0 %v247
  %648 = vmatprep.subr.mxu0 0.0
  %649 = vmatpush1.msra.mxu0 %v246
  %650 = vmatprep.subr.mxu0 0.0
  %651 = vmatpush1.msra.mxu0 %v245
  %652 = vmatprep.subr.mxu0 0.0
  %653 = vmatpush1.msra.mxu0 %v244
  %654 = vmatprep.subr.mxu0 0.0
  %655 = vmatpush1.msra.mxu0 %v243
  %656 = vmatprep.subr.mxu0 0.0
  %657 = vmatpush1.msra.mxu0 %v242
  %658 = vmatprep.subr.mxu0 0.0
  %659 = vmatpush1.msra.mxu0 %v241
  %660 = vmatprep.subr.mxu0 0.0
  %661 = vmatpush1.msra.mxu0 %v240
  %662 = vmatprep.subr.mxu0 0.0
  %663 = vmatpush1.msra.mxu0 %v239
  %664 = vmatprep.subr.mxu0 0.0
  %665 = vmatpush1.msra.mxu0 %v238
  %666 = vmatprep.subr.mxu0 0.0
  %667 = vmatpush1.msra.mxu0 %v237
  %668 = vmatprep.subr.mxu0 0.0
  %669 = vmatpush1.msra.mxu0 %v236
  %670 = vmatprep.subr.mxu0 0.0
  %671 = vmatpush1.msra.mxu0 %v235
  %672 = vmatprep.subr.mxu0 0.0
  %673 = vmatpush1.msra.mxu0 %v234
  %674 = vmatprep.subr.mxu0 0.0
  %675 = vmatpush2.msra.mxu0 0.0
  %676 = vmatprep.subr.mxu0 0.0
  %677 = vmatpush2.msra.mxu0 0.0
  %678 = vmatprep.subr.mxu0 0.0
  %679 = vmatpush2.msra.mxu0 0.0
  %680 = vmatprep.subr.mxu0 0.0
  %681 = vmatpush2.msra.mxu0 0.0
  %682 = vmatprep.subr.mxu0 0.0
  %683 = vmatpush2.msra.mxu0 0.0
  %684 = vmatprep.subr.mxu0 0.0
  %685 = vmatpush2.msra.mxu0 0.0
  %686 = vmatprep.subr.mxu0 0.0
  %687 = vmatpush2.msra.mxu0 0.0
  %688 = vmatprep.subr.mxu0 0.0
  %689 = vmatpush2.msra.mxu0 0.0
  %690 = vmatprep.subr.mxu0 0.0
  %691 = vmatpush2.msra.mxu0 0.0
  %692 = vmatprep.subr.mxu0 0.0
  %693 = vmatpush2.msra.mxu0 0.0
  %694 = vmatprep.subr.mxu0 0.0
  %695 = vmatpush2.msra.mxu0 0.0
  %696 = vmatprep.subr.mxu0 0.0
  %697 = vmatpush2.msra.mxu0 0.0
  %698 = vmatprep.subr.mxu0 0.0
  %699 = vmatpush2.msra.mxu0 0.0
  %700 = vmatprep.subr.mxu0 0.0
  %701 = vmatpush2.msra.mxu0 0.0
  %702 = vmatprep.subr.mxu0 0.0
  %703 = vmatpush2.msra.mxu0 0.0
  %704 = vmatprep.subr.mxu0 0.0
  %705 = vmatpush2.msra.mxu0 0.0
  %706 = vmatprep.mubr.f32.mxu0 0.0
  %707 = vmatmul.mubr.f32.gmra.mxu0 %v480
  %v708 = vpop.f32.mrf.mxu0
  %v709 = vadd.f32 0.0, %v708
  %v710 = vpop.f32.mrf.mxu0
  %711 = vmatprep.mubr.f32.mxu0 0.0
  %712 = vmatmul.mubr.f32.gmra.mxu0 %v481
  %v713 = vpop.f32.mrf.mxu0
  %v714 = vadd.f32 0.0, %v713
  %v715 = vpop.f32.mrf.mxu0
  %716 = vdwg.mxu0
  %717 = vmatprep.subr.mxu0 0.0
  %718 = vmatpush1.msra.mxu0 %v265
  %719 = vmatprep.subr.mxu0 0.0
  %720 = vmatpush1.msra.mxu0 %v264
  %721 = vmatprep.subr.mxu0 0.0
  %722 = vmatpush1.msra.mxu0 %v263
  %723 = vmatprep.subr.mxu0 0.0
  %724 = vmatpush1.msra.mxu0 %v262
  %725 = vmatprep.subr.mxu0 0.0
  %726 = vmatpush1.msra.mxu0 %v261
  %727 = vmatprep.subr.mxu0 0.0
  %728 = vmatpush1.msra.mxu0 %v260
  %729 = vmatprep.subr.mxu0 0.0
  %730 = vmatpush1.msra.mxu0 %v259
  %731 = vmatprep.subr.mxu0 0.0
  %732 = vmatpush1.msra.mxu0 %v258
  %733 = vmatprep.subr.mxu0 0.0
  %734 = vmatpush1.msra.mxu0 %v257
  %735 = vmatprep.subr.mxu0 0.0
  %736 = vmatpush1.msra.mxu0 %v256
  %737 = vmatprep.subr.mxu0 0.0
  %738 = vmatpush1.msra.mxu0 %v255
  %739 = vmatprep.subr.mxu0 0.0
  %740 = vmatpush1.msra.mxu0 %v254
  %741 = vmatprep.subr.mxu0 0.0
  %742 = vmatpush1.msra.mxu0 %v253
  %743 = vmatprep.subr.mxu0 0.0
  %744 = vmatpush1.msra.mxu0 %v252
  %745 = vmatprep.subr.mxu0 0.0
  %746 = vmatpush1.msra.mxu0 %v251
  %747 = vmatprep.subr.mxu0 0.0
  %748 = vmatpush1.msra.mxu0 %v250
  %749 = vmatprep.subr.mxu0 0.0
  %750 = vmatpush2.msra.mxu0 0.0
  %751 = vmatprep.subr.mxu0 0.0
  %752 = vmatpush2.msra.mxu0 0.0
  %753 = vmatprep.subr.mxu0 0.0
  %754 = vmatpush2.msra.mxu0 0.0
  %755 = vmatprep.subr.mxu0 0.0
  %756 = vmatpush2.msra.mxu0 0.0
  %757 = vmatprep.subr.mxu0 0.0
  %758 = vmatpush2.msra.mxu0 0.0
  %759 = vmatprep.subr.mxu0 0.0
  %760 = vmatpush2.msra.mxu0 0.0
  %761 = vmatprep.subr.mxu0 0.0
  %762 = vmatpush2.msra.mxu0 0.0
  %763 = vmatprep.subr.mxu0 0.0
  %764 = vmatpush2.msra.mxu0 0.0
  %765 = vmatprep.subr.mxu0 0.0
  %766 = vmatpush2.msra.mxu0 0.0
  %767 = vmatprep.subr.mxu0 0.0
  %768 = vmatpush2.msra.mxu0 0.0
  %769 = vmatprep.subr.mxu0 0.0
  %770 = vmatpush2.msra.mxu0 0.0
  %771 = vmatprep.subr.mxu0 0.0
  %772 = vmatpush2.msra.mxu0 0.0
  %773 = vmatprep.subr.mxu0 0.0
  %774 = vmatpush2.msra.mxu0 0.0
  %775 = vmatprep.subr.mxu0 0.0
  %776 = vmatpush2.msra.mxu0 0.0
  %777 = vmatprep.subr.mxu0 0.0
  %778 = vmatpush2.msra.mxu0 0.0
  %779 = vmatprep.subr.mxu0 0.0
  %780 = vmatpush2.msra.mxu0 0.0
  %781 = vmatprep.mubr.f32.mxu0 0.0
  %782 = vmatmul.mubr.f32.gmra.mxu0 %v482
  %v783 = vpop.f32.mrf.mxu0
  %v784 = vadd.f32 0.0, %v783
  %v785 = vpop.f32.mrf.mxu0
  %786 = vmatprep.mubr.f32.mxu0 0.0
  %787 = vmatmul.mubr.f32.gmra.mxu0 %v483
  %v788 = vpop.f32.mrf.mxu0
  %v789 = vadd.f32 0.0, %v788
  %v790 = vpop.f32.mrf.mxu0
  %791 = vdwg.mxu0
  %792 = vmatprep.subr.mxu0 0.0
  %793 = vmatpush1.msra.mxu0 %v281
  %794 = vmatprep.subr.mxu0 0.0
  %795 = vmatpush1.msra.mxu0 %v280
  %796 = vmatprep.subr.mxu0 0.0
  %797 = vmatpush1.msra.mxu0 %v279
  %798 = vmatprep.subr.mxu0 0.0
  %799 = vmatpush1.msra.mxu0 %v278
  %800 = vmatprep.subr.mxu0 0.0
  %801 = vmatpush1.msra.mxu0 %v277
  %802 = vmatprep.subr.mxu0 0.0
  %803 = vmatpush1.msra.mxu0 %v276
  %804 = vmatprep.subr.mxu0 0.0
  %805 = vmatpush1.msra.mxu0 %v275
  %806 = vmatprep.subr.mxu0 0.0
  %807 = vmatpush1.msra.mxu0 %v274
  %808 = vmatprep.subr.mxu0 0.0
  %809 = vmatpush1.msra.mxu0 %v273
  %810 = vmatprep.subr.mxu0 0.0
  %811 = vmatpush1.msra.mxu0 %v272
  %812 = vmatprep.subr.mxu0 0.0
  %813 = vmatpush1.msra.mxu0 %v271
  %814 = vmatprep.subr.mxu0 0.0
  %815 = vmatpush1.msra.mxu0 %v270
  %816 = vmatprep.subr.mxu0 0.0
  %817 = vmatpush1.msra.mxu0 %v269
  %818 = vmatprep.subr.mxu0 0.0
  %819 = vmatpush1.msra.mxu0 %v268
  %820 = vmatprep.subr.mxu0 0.0
  %821 = vmatpush1.msra.mxu0 %v267
  %822 = vmatprep.subr.mxu0 0.0
  %823 = vmatpush1.msra.mxu0 %v266
  %824 = vmatprep.subr.mxu0 0.0
  %825 = vmatpush2.msra.mxu0 0.0
  %826 = vmatprep.subr.mxu0 0.0
  %827 = vmatpush2.msra.mxu0 0.0
  %828 = vmatprep.subr.mxu0 0.0
  %829 = vmatpush2.msra.mxu0 0.0
  %830 = vmatprep.subr.mxu0 0.0
  %831 = vmatpush2.msra.mxu0 0.0
  %832 = vmatprep.subr.mxu0 0.0
  %833 = vmatpush2.msra.mxu0 0.0
  %834 = vmatprep.subr.mxu0 0.0
  %835 = vmatpush2.msra.mxu0 0.0
  %836 = vmatprep.subr.mxu0 0.0
  %837 = vmatpush2.msra.mxu0 0.0
  %838 = vmatprep.subr.mxu0 0.0
  %839 = vmatpush2.msra.mxu0 0.0
  %840 = vmatprep.subr.mxu0 0.0
  %841 = vmatpush2.msra.mxu0 0.0
  %842 = vmatprep.subr.mxu0 0.0
  %843 = vmatpush2.msra.mxu0 0.0
  %844 = vmatprep.subr.mxu0 0.0
  %845 = vmatpush2.msra.mxu0 0.0
  %846 = vmatprep.subr.mxu0 0.0
  %847 = vmatpush2.msra.mxu0 0.0
  %848 = vmatprep.subr.mxu0 0.0
  %849 = vmatpush2.msra.mxu0 0.0
  %850 = vmatprep.subr.mxu0 0.0
  %851 = vmatpush2.msra.mxu0 0.0
  %852 = vmatprep.subr.mxu0 0.0
  %853 = vmatpush2.msra.mxu0 0.0
  %854 = vmatprep.subr.mxu0 0.0
  %855 = vmatpush2.msra.mxu0 0.0
  %856 = vmatprep.mubr.f32.mxu0 0.0
  %857 = vmatmul.mubr.f32.gmra.mxu0 %v484
  %v858 = vpop.f32.mrf.mxu0
  %v859 = vadd.f32 0.0, %v858
  %v860 = vpop.f32.mrf.mxu0
  %861 = vmatprep.mubr.f32.mxu0 0.0
  %862 = vmatmul.mubr.f32.gmra.mxu0 %v485
  %v863 = vpop.f32.mrf.mxu0
  %v864 = vadd.f32 0.0, %v863
  %v865 = vpop.f32.mrf.mxu0
  %866 = vdwg.mxu0
  %867 = vmatprep.subr.mxu0 0.0
  %868 = vmatpush1.msra.mxu0 %v297
  %869 = vmatprep.subr.mxu0 0.0
  %870 = vmatpush1.msra.mxu0 %v296
  %871 = vmatprep.subr.mxu0 0.0
  %872 = vmatpush1.msra.mxu0 %v295
  %873 = vmatprep.subr.mxu0 0.0
  %874 = vmatpush1.msra.mxu0 %v294
  %875 = vmatprep.subr.mxu0 0.0
  %876 = vmatpush1.msra.mxu0 %v293
  %877 = vmatprep.subr.mxu0 0.0
  %878 = vmatpush1.msra.mxu0 %v292
  %879 = vmatprep.subr.mxu0 0.0
  %880 = vmatpush1.msra.mxu0 %v291
  %881 = vmatprep.subr.mxu0 0.0
  %882 = vmatpush1.msra.mxu0 %v290
  %883 = vmatprep.subr.mxu0 0.0
  %884 = vmatpush1.msra.mxu0 %v289
  %885 = vmatprep.subr.mxu0 0.0
  %886 = vmatpush1.msra.mxu0 %v288
  %887 = vmatprep.subr.mxu0 0.0
  %888 = vmatpush1.msra.mxu0 %v287
  %889 = vmatprep.subr.mxu0 0.0
  %890 = vmatpush1.msra.mxu0 %v286
  %891 = vmatprep.subr.mxu0 0.0
  %892 = vmatpush1.msra.mxu0 %v285
  %893 = vmatprep.subr.mxu0 0.0
  %894 = vmatpush1.msra.mxu0 %v284
  %895 = vmatprep.subr.mxu0 0.0
  %896 = vmatpush1.msra.mxu0 %v283
  %897 = vmatprep.subr.mxu0 0.0
  %898 = vmatpush1.msra.mxu0 %v282
  %899 = vmatprep.subr.mxu0 0.0
  %900 = vmatpush2.msra.mxu0 0.0
  %901 = vmatprep.subr.mxu0 0.0
  %902 = vmatpush2.msra.mxu0 0.0
  %903 = vmatprep.subr.mxu0 0.0
  %904 = vmatpush2.msra.mxu0 0.0
  %905 = vmatprep.subr.mxu0 0.0
  %906 = vmatpush2.msra.mxu0 0.0
  %907 = vmatprep.subr.mxu0 0.0
  %908 = vmatpush2.msra.mxu0 0.0
  %909 = vmatprep.subr.mxu0 0.0
  %910 = vmatpush2.msra.mxu0 0.0
  %911 = vmatprep.subr.mxu0 0.0
  %912 = vmatpush2.msra.mxu0 0.0
  %913 = vmatprep.subr.mxu0 0.0
  %914 = vmatpush2.msra.mxu0 0.0
  %915 = vmatprep.subr.mxu0 0.0
  %916 = vmatpush2.msra.mxu0 0.0
  %917 = vmatprep.subr.mxu0 0.0
  %918 = vmatpush2.msra.mxu0 0.0
  %919 = vmatprep.subr.mxu0 0.0
  %920 = vmatpush2.msra.mxu0 0.0
  %921 = vmatprep.subr.mxu0 0.0
  %922 = vmatpush2.msra.mxu0 0.0
  %923 = vmatprep.subr.mxu0 0.0
  %924 = vmatpush2.msra.mxu0 0.0
  %925 = vmatprep.subr.mxu0 0.0
  %926 = vmatpush2.msra.mxu0 0.0
  %927 = vmatprep.subr.mxu0 0.0
  %928 = vmatpush2.msra.mxu0 0.0
  %929 = vmatprep.subr.mxu0 0.0
  %930 = vmatpush2.msra.mxu0 0.0
  %931 = vmatprep.mubr.f32.mxu0 0.0
  %932 = vmatmul.mubr.f32.gmra.mxu0 %v486
  %v933 = vpop.f32.mrf.mxu0
  %v934 = vadd.f32 0.0, %v933
  %v935 = vpop.f32.mrf.mxu0
  %936 = vmatprep.mubr.f32.mxu0 0.0
  %937 = vmatmul.mubr.f32.gmra.mxu0 %v487
  %v938 = vpop.f32.mrf.mxu0
  %v939 = vadd.f32 0.0, %v938
  %v940 = vpop.f32.mrf.mxu0
  %941 = vdwg.mxu0
  %942 = vmatprep.subr.mxu0 0.0
  %943 = vmatpush1.msra.mxu0 %v313
  %944 = vmatprep.subr.mxu0 0.0
  %945 = vmatpush1.msra.mxu0 %v312
  %946 = vmatprep.subr.mxu0 0.0
  %947 = vmatpush1.msra.mxu0 %v311
  %948 = vmatprep.subr.mxu0 0.0
  %949 = vmatpush1.msra.mxu0 %v310
  %950 = vmatprep.subr.mxu0 0.0
  %951 = vmatpush1.msra.mxu0 %v309
  %952 = vmatprep.subr.mxu0 0.0
  %953 = vmatpush1.msra.mxu0 %v308
  %954 = vmatprep.subr.mxu0 0.0
  %955 = vmatpush1.msra.mxu0 %v307
  %956 = vmatprep.subr.mxu0 0.0
  %957 = vmatpush1.msra.mxu0 %v306
  %958 = vmatprep.subr.mxu0 0.0
  %959 = vmatpush1.msra.mxu0 %v305
  %960 = vmatprep.subr.mxu0 0.0
  %961 = vmatpush1.msra.mxu0 %v304
  %962 = vmatprep.subr.mxu0 0.0
  %963 = vmatpush1.msra.mxu0 %v303
  %964 = vmatprep.subr.mxu0 0.0
  %965 = vmatpush1.msra.mxu0 %v302
  %966 = vmatprep.subr.mxu0 0.0
  %967 = vmatpush1.msra.mxu0 %v301
  %968 = vmatprep.subr.mxu0 0.0
  %969 = vmatpush1.msra.mxu0 %v300
  %970 = vmatprep.subr.mxu0 0.0
  %971 = vmatpush1.msra.mxu0 %v299
  %972 = vmatprep.subr.mxu0 0.0
  %973 = vmatpush1.msra.mxu0 %v298
  %974 = vmatprep.subr.mxu0 0.0
  %975 = vmatpush2.msra.mxu0 0.0
  %976 = vmatprep.subr.mxu0 0.0
  %977 = vmatpush2.msra.mxu0 0.0
  %978 = vmatprep.subr.mxu0 0.0
  %979 = vmatpush2.msra.mxu0 0.0
  %980 = vmatprep.subr.mxu0 0.0
  %981 = vmatpush2.msra.mxu0 0.0
  %982 = vmatprep.subr.mxu0 0.0
  %983 = vmatpush2.msra.mxu0 0.0
  %984 = vmatprep.subr.mxu0 0.0
  %985 = vmatpush2.msra.mxu0 0.0
  %986 = vmatprep.subr.mxu0 0.0
  %987 = vmatpush2.msra.mxu0 0.0
  %988 = vmatprep.subr.mxu0 0.0
  %989 = vmatpush2.msra.mxu0 0.0
  %990 = vmatprep.subr.mxu0 0.0
  %991 = vmatpush2.msra.mxu0 0.0
  %992 = vmatprep.subr.mxu0 0.0
  %993 = vmatpush2.msra.mxu0 0.0
  %994 = vmatprep.subr.mxu0 0.0
  %995 = vmatpush2.msra.mxu0 0.0
  %996 = vmatprep.subr.mxu0 0.0
  %997 = vmatpush2.msra.mxu0 0.0
  %998 = vmatprep.subr.mxu0 0.0
  %999 = vmatpush2.msra.mxu0 0.0
  %1000 = vmatprep.subr.mxu0 0.0
  %1001 = vmatpush2.msra.mxu0 0.0
  %1002 = vmatprep.subr.mxu0 0.0
  %1003 = vmatpush2.msra.mxu0 0.0
  %1004 = vmatprep.subr.mxu0 0.0
  %1005 = vmatpush2.msra.mxu0 0.0
  %1006 = vmatprep.mubr.f32.mxu0 0.0
  %1007 = vmatmul.mubr.f32.gmra.mxu0 %v488
  %v1008 = vpop.f32.mrf.mxu0
  %v1009 = vadd.f32 0.0, %v1008
  %v1010 = vpop.f32.mrf.mxu0
  %1011 = vmatprep.mubr.f32.mxu0 0.0
  %1012 = vmatmul.mubr.f32.gmra.mxu0 %v489
  %v1013 = vpop.f32.mrf.mxu0
  %v1014 = vadd.f32 0.0, %v1013
  %v1015 = vpop.f32.mrf.mxu0
  %1016 = vdwg.mxu0
  %1017 = vmatprep.subr.mxu0 0.0
  %1018 = vmatpush1.msra.mxu0 %v329
  %1019 = vmatprep.subr.mxu0 0.0
  %1020 = vmatpush1.msra.mxu0 %v328
  %1021 = vmatprep.subr.mxu0 0.0
  %1022 = vmatpush1.msra.mxu0 %v327
  %1023 = vmatprep.subr.mxu0 0.0
  %1024 = vmatpush1.msra.mxu0 %v326
  %1025 = vmatprep.subr.mxu0 0.0
  %1026 = vmatpush1.msra.mxu0 %v325
  %1027 = vmatprep.subr.mxu0 0.0
  %1028 = vmatpush1.msra.mxu0 %v324
  %1029 = vmatprep.subr.mxu0 0.0
  %1030 = vmatpush1.msra.mxu0 %v323
  %1031 = vmatprep.subr.mxu0 0.0
  %1032 = vmatpush1.msra.mxu0 %v322
  %1033 = vmatprep.subr.mxu0 0.0
  %1034 = vmatpush1.msra.mxu0 %v321
  %1035 = vmatprep.subr.mxu0 0.0
  %1036 = vmatpush1.msra.mxu0 %v320
  %1037 = vmatprep.subr.mxu0 0.0
  %1038 = vmatpush1.msra.mxu0 %v319
  %1039 = vmatprep.subr.mxu0 0.0
  %1040 = vmatpush1.msra.mxu0 %v318
  %1041 = vmatprep.subr.mxu0 0.0
  %1042 = vmatpush1.msra.mxu0 %v317
  %1043 = vmatprep.subr.mxu0 0.0
  %1044 = vmatpush1.msra.mxu0 %v316
  %1045 = vmatprep.subr.mxu0 0.0
  %1046 = vmatpush1.msra.mxu0 %v315
  %1047 = vmatprep.subr.mxu0 0.0
  %1048 = vmatpush1.msra.mxu0 %v314
  %1049 = vmatprep.subr.mxu0 0.0
  %1050 = vmatpush2.msra.mxu0 0.0
  %1051 = vmatprep.subr.mxu0 0.0
  %1052 = vmatpush2.msra.mxu0 0.0
  %1053 = vmatprep.subr.mxu0 0.0
  %1054 = vmatpush2.msra.mxu0 0.0
  %1055 = vmatprep.subr.mxu0 0.0
  %1056 = vmatpush2.msra.mxu0 0.0
  %1057 = vmatprep.subr.mxu0 0.0
  %1058 = vmatpush2.msra.mxu0 0.0
  %1059 = vmatprep.subr.mxu0 0.0
  %1060 = vmatpush2.msra.mxu0 0.0
  %1061 = vmatprep.subr.mxu0 0.0
  %1062 = vmatpush2.msra.mxu0 0.0
  %1063 = vmatprep.subr.mxu0 0.0
  %1064 = vmatpush2.msra.mxu0 0.0
  %1065 = vmatprep.subr.mxu0 0.0
  %1066 = vmatpush2.msra.mxu0 0.0
  %1067 = vmatprep.subr.mxu0 0.0
  %1068 = vmatpush2.msra.mxu0 0.0
  %1069 = vmatprep.subr.mxu0 0.0
  %1070 = vmatpush2.msra.mxu0 0.0
  %1071 = vmatprep.subr.mxu0 0.0
  %1072 = vmatpush2.msra.mxu0 0.0
  %1073 = vmatprep.subr.mxu0 0.0
  %1074 = vmatpush2.msra.mxu0 0.0
  %1075 = vmatprep.subr.mxu0 0.0
  %1076 = vmatpush2.msra.mxu0 0.0
  %1077 = vmatprep.subr.mxu0 0.0
  %1078 = vmatpush2.msra.mxu0 0.0
  %1079 = vmatprep.subr.mxu0 0.0
  %1080 = vmatpush2.msra.mxu0 0.0
  %1081 = vmatprep.mubr.f32.mxu0 0.0
  %1082 = vmatmul.mubr.f32.gmra.mxu0 %v490
  %v1083 = vpop.f32.mrf.mxu0
  %v1084 = vadd.f32 0.0, %v1083
  %v1085 = vpop.f32.mrf.mxu0
  %1086 = vmatprep.mubr.f32.mxu0 0.0
  %1087 = vmatmul.mubr.f32.gmra.mxu0 %v491
  %v1088 = vpop.f32.mrf.mxu0
  %v1089 = vadd.f32 0.0, %v1088
  %v1090 = vpop.f32.mrf.mxu0
  %1091 = vdwg.mxu0
  %vm1092 = vcmask 130048
  %1093 = vst.msk [vmem:[%s3] sm:$0xff] %vm1092, %v559
  %1094 = vst.msk [vmem:[%s3 + $0x8] sm:$0xff] %vm1092, %v564
  %1095 = vst.msk [vmem:[%s3 + $0x80] sm:$0xff] %vm1092, %v634
  %1096 = vst.msk [vmem:[%s3 + $0x88] sm:$0xff] %vm1092, %v639
  %1097 = vst.msk [vmem:[%s3 + $0x100] sm:$0xff] %vm1092, %v709
  %1098 = vst.msk [vmem:[%s3 + $0x108] sm:$0xff] %vm1092, %v714
  %1099 = vst.msk [vmem:[%s3 + $0x180] sm:$0xff] %vm1092, %v784
  %1100 = vst.msk [vmem:[%s3 + $0x188] sm:$0xff] %vm1092, %v789
  %1101 = vst.msk [vmem:[%s3 + $0x200] sm:$0xff] %vm1092, %v859
  %1102 = vst.msk [vmem:[%s3 + $0x208] sm:$0xff] %vm1092, %v864
  %1103 = vst.msk [vmem:[%s3 + $0x280] sm:$0xff] %vm1092, %v934
  %1104 = vst.msk [vmem:[%s3 + $0x288] sm:$0xff] %vm1092, %v939
  %1105 = vst.msk [vmem:[%s3 + $0x300] sm:$0xff] %vm1092, %v1009
  %1106 = vst.msk [vmem:[%s3 + $0x308] sm:$0xff] %vm1092, %v1014
  %1107 = vst.msk [vmem:[%s3 + $0x380] sm:$0xff] %vm1092, %v1084
  %1108 = vst.msk [vmem:[%s3 + $0x388] sm:$0xff] %vm1092, %v1089
  %v1109 = vadd.f32 %v200, 16.0
  %v1110 = vadd.f32 %v201, 16.0
  %vm1111 = vcmp.ge.f32.partialorder %v335, %v1109
  %vm1112 = vcmp.ge.f32.partialorder %v335, %v1110
  %vm1113 = vcmp.ge.f32.partialorder %v339, %v1109
  %vm1114 = vcmp.ge.f32.partialorder %v339, %v1110
  %vm1115 = vcmp.ge.f32.partialorder %v343, %v1109
  %vm1116 = vcmp.ge.f32.partialorder %v343, %v1110
  %vm1117 = vcmp.ge.f32.partialorder %v347, %v1109
  %vm1118 = vcmp.ge.f32.partialorder %v347, %v1110
  %vm1119 = vcmp.ge.f32.partialorder %v351, %v1109
  %vm1120 = vcmp.ge.f32.partialorder %v351, %v1110
  %vm1121 = vcmp.ge.f32.partialorder %v355, %v1109
  %vm1122 = vcmp.ge.f32.partialorder %v355, %v1110
  %vm1123 = vcmp.ge.f32.partialorder %v359, %v1109
  %vm1124 = vcmp.ge.f32.partialorder %v359, %v1110
  %vm1125 = vcmp.ge.f32.partialorder %v363, %v1109
  %vm1126 = vcmp.ge.f32.partialorder %v363, %v1110
  %vm1127 = vcmp.lt.f32.partialorder %v391, %v1109
  %vm1128 = vcmp.lt.f32.partialorder %v391, %v1110
  %vm1129 = vcmp.lt.f32.partialorder %v395, %v1109
  %vm1130 = vcmp.lt.f32.partialorder %v395, %v1110
  %vm1131 = vcmp.lt.f32.partialorder %v399, %v1109
  %vm1132 = vcmp.lt.f32.partialorder %v399, %v1110
  %vm1133 = vcmp.lt.f32.partialorder %v403, %v1109
  %vm1134 = vcmp.lt.f32.partialorder %v403, %v1110
  %vm1135 = vcmp.lt.f32.partialorder %v407, %v1109
  %vm1136 = vcmp.lt.f32.partialorder %v407, %v1110
  %vm1137 = vcmp.lt.f32.partialorder %v411, %v1109
  %vm1138 = vcmp.lt.f32.partialorder %v411, %v1110
  %vm1139 = vcmp.lt.f32.partialorder %v415, %v1109
  %vm1140 = vcmp.lt.f32.partialorder %v415, %v1110
  %vm1141 = vcmp.lt.f32.partialorder %v419, %v1109
  %vm1142 = vcmp.lt.f32.partialorder %v419, %v1110
  %vm1143 = vmand %vm1111, %vm1127
  %vm1144 = vmand %vm1112, %vm1128
  %vm1145 = vmand %vm1113, %vm1129
  %vm1146 = vmand %vm1114, %vm1130
  %vm1147 = vmand %vm1115, %vm1131
  %vm1148 = vmand %vm1116, %vm1132
  %vm1149 = vmand %vm1117, %vm1133
  %vm1150 = vmand %vm1118, %vm1134
  %vm1151 = vmand %vm1119, %vm1135
  %vm1152 = vmand %vm1120, %vm1136
  %vm1153 = vmand %vm1121, %vm1137
  %vm1154 = vmand %vm1122, %vm1138
  %vm1155 = vmand %vm1123, %vm1139
  %vm1156 = vmand %vm1124, %vm1140
  %vm1157 = vmand %vm1125, %vm1141
  %vm1158 = vmand %vm1126, %vm1142
  %v1159 = vsel %vm1143, 1, 0
  %v1160 = vsel %vm1144, 1, 0
  %v1161 = vsel %vm1145, 1, 0
  %v1162 = vsel %vm1146, 1, 0
  %v1163 = vsel %vm1147, 1, 0
  %v1164 = vsel %vm1148, 1, 0
  %v1165 = vsel %vm1149, 1, 0
  %v1166 = vsel %vm1150, 1, 0
  %v1167 = vsel %vm1151, 1, 0
  %v1168 = vsel %vm1152, 1, 0
  %v1169 = vsel %vm1153, 1, 0
  %v1170 = vsel %vm1154, 1, 0
  %v1171 = vsel %vm1155, 1, 0
  %v1172 = vsel %vm1156, 1, 0
  %v1173 = vsel %vm1157, 1, 0
  %v1174 = vsel %vm1158, 1, 0
  %v1175 = vcvt.s32.f32 %v1159
  %v1176 = vcvt.s32.f32 %v1160
  %v1177 = vcvt.s32.f32 %v1161
  %v1178 = vcvt.s32.f32 %v1162
  %v1179 = vcvt.s32.f32 %v1163
  %v1180 = vcvt.s32.f32 %v1164
  %v1181 = vcvt.s32.f32 %v1165
  %v1182 = vcvt.s32.f32 %v1166
  %v1183 = vcvt.s32.f32 %v1167
  %v1184 = vcvt.s32.f32 %v1168
  %v1185 = vcvt.s32.f32 %v1169
  %v1186 = vcvt.s32.f32 %v1170
  %v1187 = vcvt.s32.f32 %v1171
  %v1188 = vcvt.s32.f32 %v1172
  %v1189 = vcvt.s32.f32 %v1173
  %v1190 = vcvt.s32.f32 %v1174
  %1191 = vmatprep.subr.mxu0 0.0
  %1192 = vmatpush1.msra.mxu0 %v217
  %1193 = vmatprep.subr.mxu0 0.0
  %1194 = vmatpush1.msra.mxu0 %v216
  %1195 = vmatprep.subr.mxu0 0.0
  %1196 = vmatpush1.msra.mxu0 %v215
  %1197 = vmatprep.subr.mxu0 0.0
  %1198 = vmatpush1.msra.mxu0 %v214
  %1199 = vmatprep.subr.mxu0 0.0
  %1200 = vmatpush1.msra.mxu0 %v213
  %1201 = vmatprep.subr.mxu0 0.0
  %1202 = vmatpush1.msra.mxu0 %v212
  %1203 = vmatprep.subr.mxu0 0.0
  %1204 = vmatpush1.msra.mxu0 %v211
  %1205 = vmatprep.subr.mxu0 0.0
  %1206 = vmatpush1.msra.mxu0 %v210
  %1207 = vmatprep.subr.mxu0 0.0
  %1208 = vmatpush1.msra.mxu0 %v209
  %1209 = vmatprep.subr.mxu0 0.0
  %1210 = vmatpush1.msra.mxu0 %v208
  %1211 = vmatprep.subr.mxu0 0.0
  %1212 = vmatpush1.msra.mxu0 %v207
  %1213 = vmatprep.subr.mxu0 0.0
  %1214 = vmatpush1.msra.mxu0 %v206
  %1215 = vmatprep.subr.mxu0 0.0
  %1216 = vmatpush1.msra.mxu0 %v205
  %1217 = vmatprep.subr.mxu0 0.0
  %1218 = vmatpush1.msra.mxu0 %v204
  %1219 = vmatprep.subr.mxu0 0.0
  %1220 = vmatpush1.msra.mxu0 %v203
  %1221 = vmatprep.subr.mxu0 0.0
  %1222 = vmatpush1.msra.mxu0 %v202
  %1223 = vmatprep.subr.mxu0 0.0
  %1224 = vmatpush2.msra.mxu0 0.0
  %1225 = vmatprep.subr.mxu0 0.0
  %1226 = vmatpush2.msra.mxu0 0.0
  %1227 = vmatprep.subr.mxu0 0.0
  %1228 = vmatpush2.msra.mxu0 0.0
  %1229 = vmatprep.subr.mxu0 0.0
  %1230 = vmatpush2.msra.mxu0 0.0
  %1231 = vmatprep.subr.mxu0 0.0
  %1232 = vmatpush2.msra.mxu0 0.0
  %1233 = vmatprep.subr.mxu0 0.0
  %1234 = vmatpush2.msra.mxu0 0.0
  %1235 = vmatprep.subr.mxu0 0.0
  %1236 = vmatpush2.msra.mxu0 0.0
  %1237 = vmatprep.subr.mxu0 0.0
  %1238 = vmatpush2.msra.mxu0 0.0
  %1239 = vmatprep.subr.mxu0 0.0
  %1240 = vmatpush2.msra.mxu0 0.0
  %1241 = vmatprep.subr.mxu0 0.0
  %1242 = vmatpush2.msra.mxu0 0.0
  %1243 = vmatprep.subr.mxu0 0.0
  %1244 = vmatpush2.msra.mxu0 0.0
  %1245 = vmatprep.subr.mxu0 0.0
  %1246 = vmatpush2.msra.mxu0 0.0
  %1247 = vmatprep.subr.mxu0 0.0
  %1248 = vmatpush2.msra.mxu0 0.0
  %1249 = vmatprep.subr.mxu0 0.0
  %1250 = vmatpush2.msra.mxu0 0.0
  %1251 = vmatprep.subr.mxu0 0.0
  %1252 = vmatpush2.msra.mxu0 0.0
  %1253 = vmatprep.subr.mxu0 0.0
  %1254 = vmatpush2.msra.mxu0 0.0
  %1255 = vmatprep.mubr.f32.mxu0 0.0
  %1256 = vmatmul.mubr.f32.gmra.mxu0 %v1175
  %v1257 = vpop.f32.mrf.mxu0
  %v1258 = vadd.f32 0.0, %v1257
  %v1259 = vpop.f32.mrf.mxu0
  %1260 = vmatprep.mubr.f32.mxu0 0.0
  %1261 = vmatmul.mubr.f32.gmra.mxu0 %v1176
  %v1262 = vpop.f32.mrf.mxu0
  %v1263 = vadd.f32 0.0, %v1262
  %v1264 = vpop.f32.mrf.mxu0
  %1265 = vdwg.mxu0
  %1266 = vmatprep.subr.mxu0 0.0
  %1267 = vmatpush1.msra.mxu0 %v233
  %1268 = vmatprep.subr.mxu0 0.0
  %1269 = vmatpush1.msra.mxu0 %v232
  %1270 = vmatprep.subr.mxu0 0.0
  %1271 = vmatpush1.msra.mxu0 %v231
  %1272 = vmatprep.subr.mxu0 0.0
  %1273 = vmatpush1.msra.mxu0 %v230
  %1274 = vmatprep.subr.mxu0 0.0
  %1275 = vmatpush1.msra.mxu0 %v229
  %1276 = vmatprep.subr.mxu0 0.0
  %1277 = vmatpush1.msra.mxu0 %v228
  %1278 = vmatprep.subr.mxu0 0.0
  %1279 = vmatpush1.msra.mxu0 %v227
  %1280 = vmatprep.subr.mxu0 0.0
  %1281 = vmatpush1.msra.mxu0 %v226
  %1282 = vmatprep.subr.mxu0 0.0
  %1283 = vmatpush1.msra.mxu0 %v225
  %1284 = vmatprep.subr.mxu0 0.0
  %1285 = vmatpush1.msra.mxu0 %v224
  %1286 = vmatprep.subr.mxu0 0.0
  %1287 = vmatpush1.msra.mxu0 %v223
  %1288 = vmatprep.subr.mxu0 0.0
  %1289 = vmatpush1.msra.mxu0 %v222
  %1290 = vmatprep.subr.mxu0 0.0
  %1291 = vmatpush1.msra.mxu0 %v221
  %1292 = vmatprep.subr.mxu0 0.0
  %1293 = vmatpush1.msra.mxu0 %v220
  %1294 = vmatprep.subr.mxu0 0.0
  %1295 = vmatpush1.msra.mxu0 %v219
  %1296 = vmatprep.subr.mxu0 0.0
  %1297 = vmatpush1.msra.mxu0 %v218
  %1298 = vmatprep.subr.mxu0 0.0
  %1299 = vmatpush2.msra.mxu0 0.0
  %1300 = vmatprep.subr.mxu0 0.0
  %1301 = vmatpush2.msra.mxu0 0.0
  %1302 = vmatprep.subr.mxu0 0.0
  %1303 = vmatpush2.msra.mxu0 0.0
  %1304 = vmatprep.subr.mxu0 0.0
  %1305 = vmatpush2.msra.mxu0 0.0
  %1306 = vmatprep.subr.mxu0 0.0
  %1307 = vmatpush2.msra.mxu0 0.0
  %1308 = vmatprep.subr.mxu0 0.0
  %1309 = vmatpush2.msra.mxu0 0.0
  %1310 = vmatprep.subr.mxu0 0.0
  %1311 = vmatpush2.msra.mxu0 0.0
  %1312 = vmatprep.subr.mxu0 0.0
  %1313 = vmatpush2.msra.mxu0 0.0
  %1314 = vmatprep.subr.mxu0 0.0
  %1315 = vmatpush2.msra.mxu0 0.0
  %1316 = vmatprep.subr.mxu0 0.0
  %1317 = vmatpush2.msra.mxu0 0.0
  %1318 = vmatprep.subr.mxu0 0.0
  %1319 = vmatpush2.msra.mxu0 0.0
  %1320 = vmatprep.subr.mxu0 0.0
  %1321 = vmatpush2.msra.mxu0 0.0
  %1322 = vmatprep.subr.mxu0 0.0
  %1323 = vmatpush2.msra.mxu0 0.0
  %1324 = vmatprep.subr.mxu0 0.0
  %1325 = vmatpush2.msra.mxu0 0.0
  %1326 = vmatprep.subr.mxu0 0.0
  %1327 = vmatpush2.msra.mxu0 0.0
  %1328 = vmatprep.subr.mxu0 0.0
  %1329 = vmatpush2.msra.mxu0 0.0
  %1330 = vmatprep.mubr.f32.mxu0 0.0
  %1331 = vmatmul.mubr.f32.gmra.mxu0 %v1177
  %v1332 = vpop.f32.mrf.mxu0
  %v1333 = vadd.f32 0.0, %v1332
  %v1334 = vpop.f32.mrf.mxu0
  %1335 = vmatprep.mubr.f32.mxu0 0.0
  %1336 = vmatmul.mubr.f32.gmra.mxu0 %v1178
  %v1337 = vpop.f32.mrf.mxu0
  %v1338 = vadd.f32 0.0, %v1337
  %v1339 = vpop.f32.mrf.mxu0
  %1340 = vdwg.mxu0
  %1341 = vmatprep.subr.mxu0 0.0
  %1342 = vmatpush1.msra.mxu0 %v249
  %1343 = vmatprep.subr.mxu0 0.0
  %1344 = vmatpush1.msra.mxu0 %v248
  %1345 = vmatprep.subr.mxu0 0.0
  %1346 = vmatpush1.msra.mxu0 %v247
  %1347 = vmatprep.subr.mxu0 0.0
  %1348 = vmatpush1.msra.mxu0 %v246
  %1349 = vmatprep.subr.mxu0 0.0
  %1350 = vmatpush1.msra.mxu0 %v245
  %1351 = vmatprep.subr.mxu0 0.0
  %1352 = vmatpush1.msra.mxu0 %v244
  %1353 = vmatprep.subr.mxu0 0.0
  %1354 = vmatpush1.msra.mxu0 %v243
  %1355 = vmatprep.subr.mxu0 0.0
  %1356 = vmatpush1.msra.mxu0 %v242
  %1357 = vmatprep.subr.mxu0 0.0
  %1358 = vmatpush1.msra.mxu0 %v241
  %1359 = vmatprep.subr.mxu0 0.0
  %1360 = vmatpush1.msra.mxu0 %v240
  %1361 = vmatprep.subr.mxu0 0.0
  %1362 = vmatpush1.msra.mxu0 %v239
  %1363 = vmatprep.subr.mxu0 0.0
  %1364 = vmatpush1.msra.mxu0 %v238
  %1365 = vmatprep.subr.mxu0 0.0
  %1366 = vmatpush1.msra.mxu0 %v237
  %1367 = vmatprep.subr.mxu0 0.0
  %1368 = vmatpush1.msra.mxu0 %v236
  %1369 = vmatprep.subr.mxu0 0.0
  %1370 = vmatpush1.msra.mxu0 %v235
  %1371 = vmatprep.subr.mxu0 0.0
  %1372 = vmatpush1.msra.mxu0 %v234
  %1373 = vmatprep.subr.mxu0 0.0
  %1374 = vmatpush2.msra.mxu0 0.0
  %1375 = vmatprep.subr.mxu0 0.0
  %1376 = vmatpush2.msra.mxu0 0.0
  %1377 = vmatprep.subr.mxu0 0.0
  %1378 = vmatpush2.msra.mxu0 0.0
  %1379 = vmatprep.subr.mxu0 0.0
  %1380 = vmatpush2.msra.mxu0 0.0
  %1381 = vmatprep.subr.mxu0 0.0
  %1382 = vmatpush2.msra.mxu0 0.0
  %1383 = vmatprep.subr.mxu0 0.0
  %1384 = vmatpush2.msra.mxu0 0.0
  %1385 = vmatprep.subr.mxu0 0.0
  %1386 = vmatpush2.msra.mxu0 0.0
  %1387 = vmatprep.subr.mxu0 0.0
  %1388 = vmatpush2.msra.mxu0 0.0
  %1389 = vmatprep.subr.mxu0 0.0
  %1390 = vmatpush2.msra.mxu0 0.0
  %1391 = vmatprep.subr.mxu0 0.0
  %1392 = vmatpush2.msra.mxu0 0.0
  %1393 = vmatprep.subr.mxu0 0.0
  %1394 = vmatpush2.msra.mxu0 0.0
  %1395 = vmatprep.subr.mxu0 0.0
  %1396 = vmatpush2.msra.mxu0 0.0
  %1397 = vmatprep.subr.mxu0 0.0
  %1398 = vmatpush2.msra.mxu0 0.0
  %1399 = vmatprep.subr.mxu0 0.0
  %1400 = vmatpush2.msra.mxu0 0.0
  %1401 = vmatprep.subr.mxu0 0.0
  %1402 = vmatpush2.msra.mxu0 0.0
  %1403 = vmatprep.subr.mxu0 0.0
  %1404 = vmatpush2.msra.mxu0 0.0
  %1405 = vmatprep.mubr.f32.mxu0 0.0
  %1406 = vmatmul.mubr.f32.gmra.mxu0 %v1179
  %v1407 = vpop.f32.mrf.mxu0
  %v1408 = vadd.f32 0.0, %v1407
  %v1409 = vpop.f32.mrf.mxu0
  %1410 = vmatprep.mubr.f32.mxu0 0.0
  %1411 = vmatmul.mubr.f32.gmra.mxu0 %v1180
  %v1412 = vpop.f32.mrf.mxu0
  %v1413 = vadd.f32 0.0, %v1412
  %v1414 = vpop.f32.mrf.mxu0
  %1415 = vdwg.mxu0
  %1416 = vmatprep.subr.mxu0 0.0
  %1417 = vmatpush1.msra.mxu0 %v265
  %1418 = vmatprep.subr.mxu0 0.0
  %1419 = vmatpush1.msra.mxu0 %v264
  %1420 = vmatprep.subr.mxu0 0.0
  %1421 = vmatpush1.msra.mxu0 %v263
  %1422 = vmatprep.subr.mxu0 0.0
  %1423 = vmatpush1.msra.mxu0 %v262
  %1424 = vmatprep.subr.mxu0 0.0
  %1425 = vmatpush1.msra.mxu0 %v261
  %1426 = vmatprep.subr.mxu0 0.0
  %1427 = vmatpush1.msra.mxu0 %v260
  %1428 = vmatprep.subr.mxu0 0.0
  %1429 = vmatpush1.msra.mxu0 %v259
  %1430 = vmatprep.subr.mxu0 0.0
  %1431 = vmatpush1.msra.mxu0 %v258
  %1432 = vmatprep.subr.mxu0 0.0
  %1433 = vmatpush1.msra.mxu0 %v257
  %1434 = vmatprep.subr.mxu0 0.0
  %1435 = vmatpush1.msra.mxu0 %v256
  %1436 = vmatprep.subr.mxu0 0.0
  %1437 = vmatpush1.msra.mxu0 %v255
  %1438 = vmatprep.subr.mxu0 0.0
  %1439 = vmatpush1.msra.mxu0 %v254
  %1440 = vmatprep.subr.mxu0 0.0
  %1441 = vmatpush1.msra.mxu0 %v253
  %1442 = vmatprep.subr.mxu0 0.0
  %1443 = vmatpush1.msra.mxu0 %v252
  %1444 = vmatprep.subr.mxu0 0.0
  %1445 = vmatpush1.msra.mxu0 %v251
  %1446 = vmatprep.subr.mxu0 0.0
  %1447 = vmatpush1.msra.mxu0 %v250
  %1448 = vmatprep.subr.mxu0 0.0
  %1449 = vmatpush2.msra.mxu0 0.0
  %1450 = vmatprep.subr.mxu0 0.0
  %1451 = vmatpush2.msra.mxu0 0.0
  %1452 = vmatprep.subr.mxu0 0.0
  %1453 = vmatpush2.msra.mxu0 0.0
  %1454 = vmatprep.subr.mxu0 0.0
  %1455 = vmatpush2.msra.mxu0 0.0
  %1456 = vmatprep.subr.mxu0 0.0
  %1457 = vmatpush2.msra.mxu0 0.0
  %1458 = vmatprep.subr.mxu0 0.0
  %1459 = vmatpush2.msra.mxu0 0.0
  %1460 = vmatprep.subr.mxu0 0.0
  %1461 = vmatpush2.msra.mxu0 0.0
  %1462 = vmatprep.subr.mxu0 0.0
  %1463 = vmatpush2.msra.mxu0 0.0
  %1464 = vmatprep.subr.mxu0 0.0
  %1465 = vmatpush2.msra.mxu0 0.0
  %1466 = vmatprep.subr.mxu0 0.0
  %1467 = vmatpush2.msra.mxu0 0.0
  %1468 = vmatprep.subr.mxu0 0.0
  %1469 = vmatpush2.msra.mxu0 0.0
  %1470 = vmatprep.subr.mxu0 0.0
  %1471 = vmatpush2.msra.mxu0 0.0
  %1472 = vmatprep.subr.mxu0 0.0
  %1473 = vmatpush2.msra.mxu0 0.0
  %1474 = vmatprep.subr.mxu0 0.0
  %1475 = vmatpush2.msra.mxu0 0.0
  %1476 = vmatprep.subr.mxu0 0.0
  %1477 = vmatpush2.msra.mxu0 0.0
  %1478 = vmatprep.subr.mxu0 0.0
  %1479 = vmatpush2.msra.mxu0 0.0
  %1480 = vmatprep.mubr.f32.mxu0 0.0
  %1481 = vmatmul.mubr.f32.gmra.mxu0 %v1181
  %v1482 = vpop.f32.mrf.mxu0
  %v1483 = vadd.f32 0.0, %v1482
  %v1484 = vpop.f32.mrf.mxu0
  %1485 = vmatprep.mubr.f32.mxu0 0.0
  %1486 = vmatmul.mubr.f32.gmra.mxu0 %v1182
  %v1487 = vpop.f32.mrf.mxu0
  %v1488 = vadd.f32 0.0, %v1487
  %v1489 = vpop.f32.mrf.mxu0
  %1490 = vdwg.mxu0
  %1491 = vmatprep.subr.mxu0 0.0
  %1492 = vmatpush1.msra.mxu0 %v281
  %1493 = vmatprep.subr.mxu0 0.0
  %1494 = vmatpush1.msra.mxu0 %v280
  %1495 = vmatprep.subr.mxu0 0.0
  %1496 = vmatpush1.msra.mxu0 %v279
  %1497 = vmatprep.subr.mxu0 0.0
  %1498 = vmatpush1.msra.mxu0 %v278
  %1499 = vmatprep.subr.mxu0 0.0
  %1500 = vmatpush1.msra.mxu0 %v277
  %1501 = vmatprep.subr.mxu0 0.0
  %1502 = vmatpush1.msra.mxu0 %v276
  %1503 = vmatprep.subr.mxu0 0.0
  %1504 = vmatpush1.msra.mxu0 %v275
  %1505 = vmatprep.subr.mxu0 0.0
  %1506 = vmatpush1.msra.mxu0 %v274
  %1507 = vmatprep.subr.mxu0 0.0
  %1508 = vmatpush1.msra.mxu0 %v273
  %1509 = vmatprep.subr.mxu0 0.0
  %1510 = vmatpush1.msra.mxu0 %v272
  %1511 = vmatprep.subr.mxu0 0.0
  %1512 = vmatpush1.msra.mxu0 %v271
  %1513 = vmatprep.subr.mxu0 0.0
  %1514 = vmatpush1.msra.mxu0 %v270
  %1515 = vmatprep.subr.mxu0 0.0
  %1516 = vmatpush1.msra.mxu0 %v269
  %1517 = vmatprep.subr.mxu0 0.0
  %1518 = vmatpush1.msra.mxu0 %v268
  %1519 = vmatprep.subr.mxu0 0.0
  %1520 = vmatpush1.msra.mxu0 %v267
  %1521 = vmatprep.subr.mxu0 0.0
  %1522 = vmatpush1.msra.mxu0 %v266
  %1523 = vmatprep.subr.mxu0 0.0
  %1524 = vmatpush2.msra.mxu0 0.0
  %1525 = vmatprep.subr.mxu0 0.0
  %1526 = vmatpush2.msra.mxu0 0.0
  %1527 = vmatprep.subr.mxu0 0.0
  %1528 = vmatpush2.msra.mxu0 0.0
  %1529 = vmatprep.subr.mxu0 0.0
  %1530 = vmatpush2.msra.mxu0 0.0
  %1531 = vmatprep.subr.mxu0 0.0
  %1532 = vmatpush2.msra.mxu0 0.0
  %1533 = vmatprep.subr.mxu0 0.0
  %1534 = vmatpush2.msra.mxu0 0.0
  %1535 = vmatprep.subr.mxu0 0.0
  %1536 = vmatpush2.msra.mxu0 0.0
  %1537 = vmatprep.subr.mxu0 0.0
  %1538 = vmatpush2.msra.mxu0 0.0
  %1539 = vmatprep.subr.mxu0 0.0
  %1540 = vmatpush2.msra.mxu0 0.0
  %1541 = vmatprep.subr.mxu0 0.0
  %1542 = vmatpush2.msra.mxu0 0.0
  %1543 = vmatprep.subr.mxu0 0.0
  %1544 = vmatpush2.msra.mxu0 0.0
  %1545 = vmatprep.subr.mxu0 0.0
  %1546 = vmatpush2.msra.mxu0 0.0
  %1547 = vmatprep.subr.mxu0 0.0
  %1548 = vmatpush2.msra.mxu0 0.0
  %1549 = vmatprep.subr.mxu0 0.0
  %1550 = vmatpush2.msra.mxu0 0.0
  %1551 = vmatprep.subr.mxu0 0.0
  %1552 = vmatpush2.msra.mxu0 0.0
  %1553 = vmatprep.subr.mxu0 0.0
  %1554 = vmatpush2.msra.mxu0 0.0
  %1555 = vmatprep.mubr.f32.mxu0 0.0
  %1556 = vmatmul.mubr.f32.gmra.mxu0 %v1183
  %v1557 = vpop.f32.mrf.mxu0
  %v1558 = vadd.f32 0.0, %v1557
  %v1559 = vpop.f32.mrf.mxu0
  %1560 = vmatprep.mubr.f32.mxu0 0.0
  %1561 = vmatmul.mubr.f32.gmra.mxu0 %v1184
  %v1562 = vpop.f32.mrf.mxu0
  %v1563 = vadd.f32 0.0, %v1562
  %v1564 = vpop.f32.mrf.mxu0
  %1565 = vdwg.mxu0
  %1566 = vmatprep.subr.mxu0 0.0
  %1567 = vmatpush1.msra.mxu0 %v297
  %1568 = vmatprep.subr.mxu0 0.0
  %1569 = vmatpush1.msra.mxu0 %v296
  %1570 = vmatprep.subr.mxu0 0.0
  %1571 = vmatpush1.msra.mxu0 %v295
  %1572 = vmatprep.subr.mxu0 0.0
  %1573 = vmatpush1.msra.mxu0 %v294
  %1574 = vmatprep.subr.mxu0 0.0
  %1575 = vmatpush1.msra.mxu0 %v293
  %1576 = vmatprep.subr.mxu0 0.0
  %1577 = vmatpush1.msra.mxu0 %v292
  %1578 = vmatprep.subr.mxu0 0.0
  %1579 = vmatpush1.msra.mxu0 %v291
  %1580 = vmatprep.subr.mxu0 0.0
  %1581 = vmatpush1.msra.mxu0 %v290
  %1582 = vmatprep.subr.mxu0 0.0
  %1583 = vmatpush1.msra.mxu0 %v289
  %1584 = vmatprep.subr.mxu0 0.0
  %1585 = vmatpush1.msra.mxu0 %v288
  %1586 = vmatprep.subr.mxu0 0.0
  %1587 = vmatpush1.msra.mxu0 %v287
  %1588 = vmatprep.subr.mxu0 0.0
  %1589 = vmatpush1.msra.mxu0 %v286
  %1590 = vmatprep.subr.mxu0 0.0
  %1591 = vmatpush1.msra.mxu0 %v285
  %1592 = vmatprep.subr.mxu0 0.0
  %1593 = vmatpush1.msra.mxu0 %v284
  %1594 = vmatprep.subr.mxu0 0.0
  %1595 = vmatpush1.msra.mxu0 %v283
  %1596 = vmatprep.subr.mxu0 0.0
  %1597 = vmatpush1.msra.mxu0 %v282
  %1598 = vmatprep.subr.mxu0 0.0
  %1599 = vmatpush2.msra.mxu0 0.0
  %1600 = vmatprep.subr.mxu0 0.0
  %1601 = vmatpush2.msra.mxu0 0.0
  %1602 = vmatprep.subr.mxu0 0.0
  %1603 = vmatpush2.msra.mxu0 0.0
  %1604 = vmatprep.subr.mxu0 0.0
  %1605 = vmatpush2.msra.mxu0 0.0
  %1606 = vmatprep.subr.mxu0 0.0
  %1607 = vmatpush2.msra.mxu0 0.0
  %1608 = vmatprep.subr.mxu0 0.0
  %1609 = vmatpush2.msra.mxu0 0.0
  %1610 = vmatprep.subr.mxu0 0.0
  %1611 = vmatpush2.msra.mxu0 0.0
  %1612 = vmatprep.subr.mxu0 0.0
  %1613 = vmatpush2.msra.mxu0 0.0
  %1614 = vmatprep.subr.mxu0 0.0
  %1615 = vmatpush2.msra.mxu0 0.0
  %1616 = vmatprep.subr.mxu0 0.0
  %1617 = vmatpush2.msra.mxu0 0.0
  %1618 = vmatprep.subr.mxu0 0.0
  %1619 = vmatpush2.msra.mxu0 0.0
  %1620 = vmatprep.subr.mxu0 0.0
  %1621 = vmatpush2.msra.mxu0 0.0
  %1622 = vmatprep.subr.mxu0 0.0
  %1623 = vmatpush2.msra.mxu0 0.0
  %1624 = vmatprep.subr.mxu0 0.0
  %1625 = vmatpush2.msra.mxu0 0.0
  %1626 = vmatprep.subr.mxu0 0.0
  %1627 = vmatpush2.msra.mxu0 0.0
  %1628 = vmatprep.subr.mxu0 0.0
  %1629 = vmatpush2.msra.mxu0 0.0
  %1630 = vmatprep.mubr.f32.mxu0 0.0
  %1631 = vmatmul.mubr.f32.gmra.mxu0 %v1185
  %v1632 = vpop.f32.mrf.mxu0
  %v1633 = vadd.f32 0.0, %v1632
  %v1634 = vpop.f32.mrf.mxu0
  %1635 = vmatprep.mubr.f32.mxu0 0.0
  %1636 = vmatmul.mubr.f32.gmra.mxu0 %v1186
  %v1637 = vpop.f32.mrf.mxu0
  %v1638 = vadd.f32 0.0, %v1637
  %v1639 = vpop.f32.mrf.mxu0
  %1640 = vdwg.mxu0
  %1641 = vmatprep.subr.mxu0 0.0
  %1642 = vmatpush1.msra.mxu0 %v313
  %1643 = vmatprep.subr.mxu0 0.0
  %1644 = vmatpush1.msra.mxu0 %v312
  %1645 = vmatprep.subr.mxu0 0.0
  %1646 = vmatpush1.msra.mxu0 %v311
  %1647 = vmatprep.subr.mxu0 0.0
  %1648 = vmatpush1.msra.mxu0 %v310
  %1649 = vmatprep.subr.mxu0 0.0
  %1650 = vmatpush1.msra.mxu0 %v309
  %1651 = vmatprep.subr.mxu0 0.0
  %1652 = vmatpush1.msra.mxu0 %v308
  %1653 = vmatprep.subr.mxu0 0.0
  %1654 = vmatpush1.msra.mxu0 %v307
  %1655 = vmatprep.subr.mxu0 0.0
  %1656 = vmatpush1.msra.mxu0 %v306
  %1657 = vmatprep.subr.mxu0 0.0
  %1658 = vmatpush1.msra.mxu0 %v305
  %1659 = vmatprep.subr.mxu0 0.0
  %1660 = vmatpush1.msra.mxu0 %v304
  %1661 = vmatprep.subr.mxu0 0.0
  %1662 = vmatpush1.msra.mxu0 %v303
  %1663 = vmatprep.subr.mxu0 0.0
  %1664 = vmatpush1.msra.mxu0 %v302
  %1665 = vmatprep.subr.mxu0 0.0
  %1666 = vmatpush1.msra.mxu0 %v301
  %1667 = vmatprep.subr.mxu0 0.0
  %1668 = vmatpush1.msra.mxu0 %v300
  %1669 = vmatprep.subr.mxu0 0.0
  %1670 = vmatpush1.msra.mxu0 %v299
  %1671 = vmatprep.subr.mxu0 0.0
  %1672 = vmatpush1.msra.mxu0 %v298
  %1673 = vmatprep.subr.mxu0 0.0
  %1674 = vmatpush2.msra.mxu0 0.0
  %1675 = vmatprep.subr.mxu0 0.0
  %1676 = vmatpush2.msra.mxu0 0.0
  %1677 = vmatprep.subr.mxu0 0.0
  %1678 = vmatpush2.msra.mxu0 0.0
  %1679 = vmatprep.subr.mxu0 0.0
  %1680 = vmatpush2.msra.mxu0 0.0
  %1681 = vmatprep.subr.mxu0 0.0
  %1682 = vmatpush2.msra.mxu0 0.0
  %1683 = vmatprep.subr.mxu0 0.0
  %1684 = vmatpush2.msra.mxu0 0.0
  %1685 = vmatprep.subr.mxu0 0.0
  %1686 = vmatpush2.msra.mxu0 0.0
  %1687 = vmatprep.subr.mxu0 0.0
  %1688 = vmatpush2.msra.mxu0 0.0
  %1689 = vmatprep.subr.mxu0 0.0
  %1690 = vmatpush2.msra.mxu0 0.0
  %1691 = vmatprep.subr.mxu0 0.0
  %1692 = vmatpush2.msra.mxu0 0.0
  %1693 = vmatprep.subr.mxu0 0.0
  %1694 = vmatpush2.msra.mxu0 0.0
  %1695 = vmatprep.subr.mxu0 0.0
  %1696 = vmatpush2.msra.mxu0 0.0
  %1697 = vmatprep.subr.mxu0 0.0
  %1698 = vmatpush2.msra.mxu0 0.0
  %1699 = vmatprep.subr.mxu0 0.0
  %1700 = vmatpush2.msra.mxu0 0.0
  %1701 = vmatprep.subr.mxu0 0.0
  %1702 = vmatpush2.msra.mxu0 0.0
  %1703 = vmatprep.subr.mxu0 0.0
  %1704 = vmatpush2.msra.mxu0 0.0
  %1705 = vmatprep.mubr.f32.mxu0 0.0
  %1706 = vmatmul.mubr.f32.gmra.mxu0 %v1187
  %v1707 = vpop.f32.mrf.mxu0
  %v1708 = vadd.f32 0.0, %v1707
  %v1709 = vpop.f32.mrf.mxu0
  %1710 = vmatprep.mubr.f32.mxu0 0.0
  %1711 = vmatmul.mubr.f32.gmra.mxu0 %v1188
  %v1712 = vpop.f32.mrf.mxu0
  %v1713 = vadd.f32 0.0, %v1712
  %v1714 = vpop.f32.mrf.mxu0
  %1715 = vdwg.mxu0
  %1716 = vmatprep.subr.mxu0 0.0
  %1717 = vmatpush1.msra.mxu0 %v329
  %1718 = vmatprep.subr.mxu0 0.0
  %1719 = vmatpush1.msra.mxu0 %v328
  %1720 = vmatprep.subr.mxu0 0.0
  %1721 = vmatpush1.msra.mxu0 %v327
  %1722 = vmatprep.subr.mxu0 0.0
  %1723 = vmatpush1.msra.mxu0 %v326
  %1724 = vmatprep.subr.mxu0 0.0
  %1725 = vmatpush1.msra.mxu0 %v325
  %1726 = vmatprep.subr.mxu0 0.0
  %1727 = vmatpush1.msra.mxu0 %v324
  %1728 = vmatprep.subr.mxu0 0.0
  %1729 = vmatpush1.msra.mxu0 %v323
  %1730 = vmatprep.subr.mxu0 0.0
  %1731 = vmatpush1.msra.mxu0 %v322
  %1732 = vmatprep.subr.mxu0 0.0
  %1733 = vmatpush1.msra.mxu0 %v321
  %1734 = vmatprep.subr.mxu0 0.0
  %1735 = vmatpush1.msra.mxu0 %v320
  %1736 = vmatprep.subr.mxu0 0.0
  %1737 = vmatpush1.msra.mxu0 %v319
  %1738 = vmatprep.subr.mxu0 0.0
  %1739 = vmatpush1.msra.mxu0 %v318
  %1740 = vmatprep.subr.mxu0 0.0
  %1741 = vmatpush1.msra.mxu0 %v317
  %1742 = vmatprep.subr.mxu0 0.0
  %1743 = vmatpush1.msra.mxu0 %v316
  %1744 = vmatprep.subr.mxu0 0.0
  %1745 = vmatpush1.msra.mxu0 %v315
  %1746 = vmatprep.subr.mxu0 0.0
  %1747 = vmatpush1.msra.mxu0 %v314
  %1748 = vmatprep.subr.mxu0 0.0
  %1749 = vmatpush2.msra.mxu0 0.0
  %1750 = vmatprep.subr.mxu0 0.0
  %1751 = vmatpush2.msra.mxu0 0.0
  %1752 = vmatprep.subr.mxu0 0.0
  %1753 = vmatpush2.msra.mxu0 0.0
  %1754 = vmatprep.subr.mxu0 0.0
  %1755 = vmatpush2.msra.mxu0 0.0
  %1756 = vmatprep.subr.mxu0 0.0
  %1757 = vmatpush2.msra.mxu0 0.0
  %1758 = vmatprep.subr.mxu0 0.0
  %1759 = vmatpush2.msra.mxu0 0.0
  %1760 = vmatprep.subr.mxu0 0.0
  %1761 = vmatpush2.msra.mxu0 0.0
  %1762 = vmatprep.subr.mxu0 0.0
  %1763 = vmatpush2.msra.mxu0 0.0
  %1764 = vmatprep.subr.mxu0 0.0
  %1765 = vmatpush2.msra.mxu0 0.0
  %1766 = vmatprep.subr.mxu0 0.0
  %1767 = vmatpush2.msra.mxu0 0.0
  %1768 = vmatprep.subr.mxu0 0.0
  %1769 = vmatpush2.msra.mxu0 0.0
  %1770 = vmatprep.subr.mxu0 0.0
  %1771 = vmatpush2.msra.mxu0 0.0
  %1772 = vmatprep.subr.mxu0 0.0
  %1773 = vmatpush2.msra.mxu0 0.0
  %1774 = vmatprep.subr.mxu0 0.0
  %1775 = vmatpush2.msra.mxu0 0.0
  %1776 = vmatprep.subr.mxu0 0.0
  %1777 = vmatpush2.msra.mxu0 0.0
  %1778 = vmatprep.subr.mxu0 0.0
  %1779 = vmatpush2.msra.mxu0 0.0
  %1780 = vmatprep.mubr.f32.mxu0 0.0
  %1781 = vmatmul.mubr.f32.gmra.mxu0 %v1189
  %v1782 = vpop.f32.mrf.mxu0
  %v1783 = vadd.f32 0.0, %v1782
  %v1784 = vpop.f32.mrf.mxu0
  %1785 = vmatprep.mubr.f32.mxu0 0.0
  %1786 = vmatmul.mubr.f32.gmra.mxu0 %v1190
  %v1787 = vpop.f32.mrf.mxu0
  %v1788 = vadd.f32 0.0, %v1787
  %v1789 = vpop.f32.mrf.mxu0
  %1790 = vdwg.mxu0
  %1791 = vst.msk [vmem:[%s3 + $0x10] sm:$0xff] %vm1092, %v1258
  %1792 = vst.msk [vmem:[%s3 + $0x18] sm:$0xff] %vm1092, %v1263
  %1793 = vst.msk [vmem:[%s3 + $0x90] sm:$0xff] %vm1092, %v1333
  %1794 = vst.msk [vmem:[%s3 + $0x98] sm:$0xff] %vm1092, %v1338
  %1795 = vst.msk [vmem:[%s3 + $0x110] sm:$0xff] %vm1092, %v1408
  %1796 = vst.msk [vmem:[%s3 + $0x118] sm:$0xff] %vm1092, %v1413
  %1797 = vst.msk [vmem:[%s3 + $0x190] sm:$0xff] %vm1092, %v1483
  %1798 = vst.msk [vmem:[%s3 + $0x198] sm:$0xff] %vm1092, %v1488
  %1799 = vst.msk [vmem:[%s3 + $0x210] sm:$0xff] %vm1092, %v1558
  %1800 = vst.msk [vmem:[%s3 + $0x218] sm:$0xff] %vm1092, %v1563
  %1801 = vst.msk [vmem:[%s3 + $0x290] sm:$0xff] %vm1092, %v1633
  %1802 = vst.msk [vmem:[%s3 + $0x298] sm:$0xff] %vm1092, %v1638
  %1803 = vst.msk [vmem:[%s3 + $0x310] sm:$0xff] %vm1092, %v1708
  %1804 = vst.msk [vmem:[%s3 + $0x318] sm:$0xff] %vm1092, %v1713
  %1805 = vst.msk [vmem:[%s3 + $0x390] sm:$0xff] %vm1092, %v1783
  %1806 = vst.msk [vmem:[%s3 + $0x398] sm:$0xff] %vm1092, %v1788
  %v1807 = vadd.f32 %v200, 32.0
  %v1808 = vadd.f32 %v201, 32.0
  %vm1809 = vcmp.ge.f32.partialorder %v335, %v1807
  %vm1810 = vcmp.ge.f32.partialorder %v335, %v1808
  %vm1811 = vcmp.ge.f32.partialorder %v339, %v1807
  %vm1812 = vcmp.ge.f32.partialorder %v339, %v1808
  %vm1813 = vcmp.ge.f32.partialorder %v343, %v1807
  %vm1814 = vcmp.ge.f32.partialorder %v343, %v1808
  %vm1815 = vcmp.ge.f32.partialorder %v347, %v1807
  %vm1816 = vcmp.ge.f32.partialorder %v347, %v1808
  %vm1817 = vcmp.ge.f32.partialorder %v351, %v1807
  %vm1818 = vcmp.ge.f32.partialorder %v351, %v1808
  %vm1819 = vcmp.ge.f32.partialorder %v355, %v1807
  %vm1820 = vcmp.ge.f32.partialorder %v355, %v1808
  %vm1821 = vcmp.ge.f32.partialorder %v359, %v1807
  %vm1822 = vcmp.ge.f32.partialorder %v359, %v1808
  %vm1823 = vcmp.ge.f32.partialorder %v363, %v1807
  %vm1824 = vcmp.ge.f32.partialorder %v363, %v1808
  %vm1825 = vcmp.lt.f32.partialorder %v391, %v1807
  %vm1826 = vcmp.lt.f32.partialorder %v391, %v1808
  %vm1827 = vcmp.lt.f32.partialorder %v395, %v1807
  %vm1828 = vcmp.lt.f32.partialorder %v395, %v1808
  %vm1829 = vcmp.lt.f32.partialorder %v399, %v1807
  %vm1830 = vcmp.lt.f32.partialorder %v399, %v1808
  %vm1831 = vcmp.lt.f32.partialorder %v403, %v1807
  %vm1832 = vcmp.lt.f32.partialorder %v403, %v1808
  %vm1833 = vcmp.lt.f32.partialorder %v407, %v1807
  %vm1834 = vcmp.lt.f32.partialorder %v407, %v1808
  %vm1835 = vcmp.lt.f32.partialorder %v411, %v1807
  %vm1836 = vcmp.lt.f32.partialorder %v411, %v1808
  %vm1837 = vcmp.lt.f32.partialorder %v415, %v1807
  %vm1838 = vcmp.lt.f32.partialorder %v415, %v1808
  %vm1839 = vcmp.lt.f32.partialorder %v419, %v1807
  %vm1840 = vcmp.lt.f32.partialorder %v419, %v1808
  %vm1841 = vmand %vm1809, %vm1825
  %vm1842 = vmand %vm1810, %vm1826
  %vm1843 = vmand %vm1811, %vm1827
  %vm1844 = vmand %vm1812, %vm1828
  %vm1845 = vmand %vm1813, %vm1829
  %vm1846 = vmand %vm1814, %vm1830
  %vm1847 = vmand %vm1815, %vm1831
  %vm1848 = vmand %vm1816, %vm1832
  %vm1849 = vmand %vm1817, %vm1833
  %vm1850 = vmand %vm1818, %vm1834
  %vm1851 = vmand %vm1819, %vm1835
  %vm1852 = vmand %vm1820, %vm1836
  %vm1853 = vmand %vm1821, %vm1837
  %vm1854 = vmand %vm1822, %vm1838
  %vm1855 = vmand %vm1823, %vm1839
  %vm1856 = vmand %vm1824, %vm1840
  %v1857 = vsel %vm1841, 1, 0
  %v1858 = vsel %vm1842, 1, 0
  %v1859 = vsel %vm1843, 1, 0
  %v1860 = vsel %vm1844, 1, 0
  %v1861 = vsel %vm1845, 1, 0
  %v1862 = vsel %vm1846, 1, 0
  %v1863 = vsel %vm1847, 1, 0
  %v1864 = vsel %vm1848, 1, 0
  %v1865 = vsel %vm1849, 1, 0
  %v1866 = vsel %vm1850, 1, 0
  %v1867 = vsel %vm1851, 1, 0
  %v1868 = vsel %vm1852, 1, 0
  %v1869 = vsel %vm1853, 1, 0
  %v1870 = vsel %vm1854, 1, 0
  %v1871 = vsel %vm1855, 1, 0
  %v1872 = vsel %vm1856, 1, 0
  %v1873 = vcvt.s32.f32 %v1857
  %v1874 = vcvt.s32.f32 %v1858
  %v1875 = vcvt.s32.f32 %v1859
  %v1876 = vcvt.s32.f32 %v1860
  %v1877 = vcvt.s32.f32 %v1861
  %v1878 = vcvt.s32.f32 %v1862
  %v1879 = vcvt.s32.f32 %v1863
  %v1880 = vcvt.s32.f32 %v1864
  %v1881 = vcvt.s32.f32 %v1865
  %v1882 = vcvt.s32.f32 %v1866
  %v1883 = vcvt.s32.f32 %v1867
  %v1884 = vcvt.s32.f32 %v1868
  %v1885 = vcvt.s32.f32 %v1869
  %v1886 = vcvt.s32.f32 %v1870
  %v1887 = vcvt.s32.f32 %v1871
  %v1888 = vcvt.s32.f32 %v1872
  %1889 = vmatprep.subr.mxu0 0.0
  %1890 = vmatpush1.msra.mxu0 %v217
  %1891 = vmatprep.subr.mxu0 0.0
  %1892 = vmatpush1.msra.mxu0 %v216
  %1893 = vmatprep.subr.mxu0 0.0
  %1894 = vmatpush1.msra.mxu0 %v215
  %1895 = vmatprep.subr.mxu0 0.0
  %1896 = vmatpush1.msra.mxu0 %v214
  %1897 = vmatprep.subr.mxu0 0.0
  %1898 = vmatpush1.msra.mxu0 %v213
  %1899 = vmatprep.subr.mxu0 0.0
  %1900 = vmatpush1.msra.mxu0 %v212
  %1901 = vmatprep.subr.mxu0 0.0
  %1902 = vmatpush1.msra.mxu0 %v211
  %1903 = vmatprep.subr.mxu0 0.0
  %1904 = vmatpush1.msra.mxu0 %v210
  %1905 = vmatprep.subr.mxu0 0.0
  %1906 = vmatpush1.msra.mxu0 %v209
  %1907 = vmatprep.subr.mxu0 0.0
  %1908 = vmatpush1.msra.mxu0 %v208
  %1909 = vmatprep.subr.mxu0 0.0
  %1910 = vmatpush1.msra.mxu0 %v207
  %1911 = vmatprep.subr.mxu0 0.0
  %1912 = vmatpush1.msra.mxu0 %v206
  %1913 = vmatprep.subr.mxu0 0.0
  %1914 = vmatpush1.msra.mxu0 %v205
  %1915 = vmatprep.subr.mxu0 0.0
  %1916 = vmatpush1.msra.mxu0 %v204
  %1917 = vmatprep.subr.mxu0 0.0
  %1918 = vmatpush1.msra.mxu0 %v203
  %1919 = vmatprep.subr.mxu0 0.0
  %1920 = vmatpush1.msra.mxu0 %v202
  %1921 = vmatprep.subr.mxu0 0.0
  %1922 = vmatpush2.msra.mxu0 0.0
  %1923 = vmatprep.subr.mxu0 0.0
  %1924 = vmatpush2.msra.mxu0 0.0
  %1925 = vmatprep.subr.mxu0 0.0
  %1926 = vmatpush2.msra.mxu0 0.0
  %1927 = vmatprep.subr.mxu0 0.0
  %1928 = vmatpush2.msra.mxu0 0.0
  %1929 = vmatprep.subr.mxu0 0.0
  %1930 = vmatpush2.msra.mxu0 0.0
  %1931 = vmatprep.subr.mxu0 0.0
  %1932 = vmatpush2.msra.mxu0 0.0
  %1933 = vmatprep.subr.mxu0 0.0
  %1934 = vmatpush2.msra.mxu0 0.0
  %1935 = vmatprep.subr.mxu0 0.0
  %1936 = vmatpush2.msra.mxu0 0.0
  %1937 = vmatprep.subr.mxu0 0.0
  %1938 = vmatpush2.msra.mxu0 0.0
  %1939 = vmatprep.subr.mxu0 0.0
  %1940 = vmatpush2.msra.mxu0 0.0
  %1941 = vmatprep.subr.mxu0 0.0
  %1942 = vmatpush2.msra.mxu0 0.0
  %1943 = vmatprep.subr.mxu0 0.0
  %1944 = vmatpush2.msra.mxu0 0.0
  %1945 = vmatprep.subr.mxu0 0.0
  %1946 = vmatpush2.msra.mxu0 0.0
  %1947 = vmatprep.subr.mxu0 0.0
  %1948 = vmatpush2.msra.mxu0 0.0
  %1949 = vmatprep.subr.mxu0 0.0
  %1950 = vmatpush2.msra.mxu0 0.0
  %1951 = vmatprep.subr.mxu0 0.0
  %1952 = vmatpush2.msra.mxu0 0.0
  %1953 = vmatprep.mubr.f32.mxu0 0.0
  %1954 = vmatmul.mubr.f32.gmra.mxu0 %v1873
  %v1955 = vpop.f32.mrf.mxu0
  %v1956 = vadd.f32 0.0, %v1955
  %v1957 = vpop.f32.mrf.mxu0
  %1958 = vmatprep.mubr.f32.mxu0 0.0
  %1959 = vmatmul.mubr.f32.gmra.mxu0 %v1874
  %v1960 = vpop.f32.mrf.mxu0
  %v1961 = vadd.f32 0.0, %v1960
  %v1962 = vpop.f32.mrf.mxu0
  %1963 = vdwg.mxu0
  %1964 = vmatprep.subr.mxu0 0.0
  %1965 = vmatpush1.msra.mxu0 %v233
  %1966 = vmatprep.subr.mxu0 0.0
  %1967 = vmatpush1.msra.mxu0 %v232
  %1968 = vmatprep.subr.mxu0 0.0
  %1969 = vmatpush1.msra.mxu0 %v231
  %1970 = vmatprep.subr.mxu0 0.0
  %1971 = vmatpush1.msra.mxu0 %v230
  %1972 = vmatprep.subr.mxu0 0.0
  %1973 = vmatpush1.msra.mxu0 %v229
  %1974 = vmatprep.subr.mxu0 0.0
  %1975 = vmatpush1.msra.mxu0 %v228
  %1976 = vmatprep.subr.mxu0 0.0
  %1977 = vmatpush1.msra.mxu0 %v227
  %1978 = vmatprep.subr.mxu0 0.0
  %1979 = vmatpush1.msra.mxu0 %v226
  %1980 = vmatprep.subr.mxu0 0.0
  %1981 = vmatpush1.msra.mxu0 %v225
  %1982 = vmatprep.subr.mxu0 0.0
  %1983 = vmatpush1.msra.mxu0 %v224
  %1984 = vmatprep.subr.mxu0 0.0
  %1985 = vmatpush1.msra.mxu0 %v223
  %1986 = vmatprep.subr.mxu0 0.0
  %1987 = vmatpush1.msra.mxu0 %v222
  %1988 = vmatprep.subr.mxu0 0.0
  %1989 = vmatpush1.msra.mxu0 %v221
  %1990 = vmatprep.subr.mxu0 0.0
  %1991 = vmatpush1.msra.mxu0 %v220
  %1992 = vmatprep.subr.mxu0 0.0
  %1993 = vmatpush1.msra.mxu0 %v219
  %1994 = vmatprep.subr.mxu0 0.0
  %1995 = vmatpush1.msra.mxu0 %v218
  %1996 = vmatprep.subr.mxu0 0.0
  %1997 = vmatpush2.msra.mxu0 0.0
  %1998 = vmatprep.subr.mxu0 0.0
  %1999 = vmatpush2.msra.mxu0 0.0
  %2000 = vmatprep.subr.mxu0 0.0
  %2001 = vmatpush2.msra.mxu0 0.0
  %2002 = vmatprep.subr.mxu0 0.0
  %2003 = vmatpush2.msra.mxu0 0.0
  %2004 = vmatprep.subr.mxu0 0.0
  %2005 = vmatpush2.msra.mxu0 0.0
  %2006 = vmatprep.subr.mxu0 0.0
  %2007 = vmatpush2.msra.mxu0 0.0
  %2008 = vmatprep.subr.mxu0 0.0
  %2009 = vmatpush2.msra.mxu0 0.0
  %2010 = vmatprep.subr.mxu0 0.0
  %2011 = vmatpush2.msra.mxu0 0.0
  %2012 = vmatprep.subr.mxu0 0.0
  %2013 = vmatpush2.msra.mxu0 0.0
  %2014 = vmatprep.subr.mxu0 0.0
  %2015 = vmatpush2.msra.mxu0 0.0
  %2016 = vmatprep.subr.mxu0 0.0
  %2017 = vmatpush2.msra.mxu0 0.0
  %2018 = vmatprep.subr.mxu0 0.0
  %2019 = vmatpush2.msra.mxu0 0.0
  %2020 = vmatprep.subr.mxu0 0.0
  %2021 = vmatpush2.msra.mxu0 0.0
  %2022 = vmatprep.subr.mxu0 0.0
  %2023 = vmatpush2.msra.mxu0 0.0
  %2024 = vmatprep.subr.mxu0 0.0
  %2025 = vmatpush2.msra.mxu0 0.0
  %2026 = vmatprep.subr.mxu0 0.0
  %2027 = vmatpush2.msra.mxu0 0.0
  %2028 = vmatprep.mubr.f32.mxu0 0.0
  %2029 = vmatmul.mubr.f32.gmra.mxu0 %v1875
  %v2030 = vpop.f32.mrf.mxu0
  %v2031 = vadd.f32 0.0, %v2030
  %v2032 = vpop.f32.mrf.mxu0
  %2033 = vmatprep.mubr.f32.mxu0 0.0
  %2034 = vmatmul.mubr.f32.gmra.mxu0 %v1876
  %v2035 = vpop.f32.mrf.mxu0
  %v2036 = vadd.f32 0.0, %v2035
  %v2037 = vpop.f32.mrf.mxu0
  %2038 = vdwg.mxu0
  %2039 = vmatprep.subr.mxu0 0.0
  %2040 = vmatpush1.msra.mxu0 %v249
  %2041 = vmatprep.subr.mxu0 0.0
  %2042 = vmatpush1.msra.mxu0 %v248
  %2043 = vmatprep.subr.mxu0 0.0
  %2044 = vmatpush1.msra.mxu0 %v247
  %2045 = vmatprep.subr.mxu0 0.0
  %2046 = vmatpush1.msra.mxu0 %v246
  %2047 = vmatprep.subr.mxu0 0.0
  %2048 = vmatpush1.msra.mxu0 %v245
  %2049 = vmatprep.subr.mxu0 0.0
  %2050 = vmatpush1.msra.mxu0 %v244
  %2051 = vmatprep.subr.mxu0 0.0
  %2052 = vmatpush1.msra.mxu0 %v243
  %2053 = vmatprep.subr.mxu0 0.0
  %2054 = vmatpush1.msra.mxu0 %v242
  %2055 = vmatprep.subr.mxu0 0.0
  %2056 = vmatpush1.msra.mxu0 %v241
  %2057 = vmatprep.subr.mxu0 0.0
  %2058 = vmatpush1.msra.mxu0 %v240
  %2059 = vmatprep.subr.mxu0 0.0
  %2060 = vmatpush1.msra.mxu0 %v239
  %2061 = vmatprep.subr.mxu0 0.0
  %2062 = vmatpush1.msra.mxu0 %v238
  %2063 = vmatprep.subr.mxu0 0.0
  %2064 = vmatpush1.msra.mxu0 %v237
  %2065 = vmatprep.subr.mxu0 0.0
  %2066 = vmatpush1.msra.mxu0 %v236
  %2067 = vmatprep.subr.mxu0 0.0
  %2068 = vmatpush1.msra.mxu0 %v235
  %2069 = vmatprep.subr.mxu0 0.0
  %2070 = vmatpush1.msra.mxu0 %v234
  %2071 = vmatprep.subr.mxu0 0.0
  %2072 = vmatpush2.msra.mxu0 0.0
  %2073 = vmatprep.subr.mxu0 0.0
  %2074 = vmatpush2.msra.mxu0 0.0
  %2075 = vmatprep.subr.mxu0 0.0
  %2076 = vmatpush2.msra.mxu0 0.0
  %2077 = vmatprep.subr.mxu0 0.0
  %2078 = vmatpush2.msra.mxu0 0.0
  %2079 = vmatprep.subr.mxu0 0.0
  %2080 = vmatpush2.msra.mxu0 0.0
  %2081 = vmatprep.subr.mxu0 0.0
  %2082 = vmatpush2.msra.mxu0 0.0
  %2083 = vmatprep.subr.mxu0 0.0
  %2084 = vmatpush2.msra.mxu0 0.0
  %2085 = vmatprep.subr.mxu0 0.0
  %2086 = vmatpush2.msra.mxu0 0.0
  %2087 = vmatprep.subr.mxu0 0.0
  %2088 = vmatpush2.msra.mxu0 0.0
  %2089 = vmatprep.subr.mxu0 0.0
  %2090 = vmatpush2.msra.mxu0 0.0
  %2091 = vmatprep.subr.mxu0 0.0
  %2092 = vmatpush2.msra.mxu0 0.0
  %2093 = vmatprep.subr.mxu0 0.0
  %2094 = vmatpush2.msra.mxu0 0.0
  %2095 = vmatprep.subr.mxu0 0.0
  %2096 = vmatpush2.msra.mxu0 0.0
  %2097 = vmatprep.subr.mxu0 0.0
  %2098 = vmatpush2.msra.mxu0 0.0
  %2099 = vmatprep.subr.mxu0 0.0
  %2100 = vmatpush2.msra.mxu0 0.0
  %2101 = vmatprep.subr.mxu0 0.0
  %2102 = vmatpush2.msra.mxu0 0.0
  %2103 = vmatprep.mubr.f32.mxu0 0.0
  %2104 = vmatmul.mubr.f32.gmra.mxu0 %v1877
  %v2105 = vpop.f32.mrf.mxu0
  %v2106 = vadd.f32 0.0, %v2105
  %v2107 = vpop.f32.mrf.mxu0
  %2108 = vmatprep.mubr.f32.mxu0 0.0
  %2109 = vmatmul.mubr.f32.gmra.mxu0 %v1878
  %v2110 = vpop.f32.mrf.mxu0
  %v2111 = vadd.f32 0.0, %v2110
  %v2112 = vpop.f32.mrf.mxu0
  %2113 = vdwg.mxu0
  %2114 = vmatprep.subr.mxu0 0.0
  %2115 = vmatpush1.msra.mxu0 %v265
  %2116 = vmatprep.subr.mxu0 0.0
  %2117 = vmatpush1.msra.mxu0 %v264
  %2118 = vmatprep.subr.mxu0 0.0
  %2119 = vmatpush1.msra.mxu0 %v263
  %2120 = vmatprep.subr.mxu0 0.0
  %2121 = vmatpush1.msra.mxu0 %v262
  %2122 = vmatprep.subr.mxu0 0.0
  %2123 = vmatpush1.msra.mxu0 %v261
  %2124 = vmatprep.subr.mxu0 0.0
  %2125 = vmatpush1.msra.mxu0 %v260
  %2126 = vmatprep.subr.mxu0 0.0
  %2127 = vmatpush1.msra.mxu0 %v259
  %2128 = vmatprep.subr.mxu0 0.0
  %2129 = vmatpush1.msra.mxu0 %v258
  %2130 = vmatprep.subr.mxu0 0.0
  %2131 = vmatpush1.msra.mxu0 %v257
  %2132 = vmatprep.subr.mxu0 0.0
  %2133 = vmatpush1.msra.mxu0 %v256
  %2134 = vmatprep.subr.mxu0 0.0
  %2135 = vmatpush1.msra.mxu0 %v255
  %2136 = vmatprep.subr.mxu0 0.0
  %2137 = vmatpush1.msra.mxu0 %v254
  %2138 = vmatprep.subr.mxu0 0.0
  %2139 = vmatpush1.msra.mxu0 %v253
  %2140 = vmatprep.subr.mxu0 0.0
  %2141 = vmatpush1.msra.mxu0 %v252
  %2142 = vmatprep.subr.mxu0 0.0
  %2143 = vmatpush1.msra.mxu0 %v251
  %2144 = vmatprep.subr.mxu0 0.0
  %2145 = vmatpush1.msra.mxu0 %v250
  %2146 = vmatprep.subr.mxu0 0.0
  %2147 = vmatpush2.msra.mxu0 0.0
  %2148 = vmatprep.subr.mxu0 0.0
  %2149 = vmatpush2.msra.mxu0 0.0
  %2150 = vmatprep.subr.mxu0 0.0
  %2151 = vmatpush2.msra.mxu0 0.0
  %2152 = vmatprep.subr.mxu0 0.0
  %2153 = vmatpush2.msra.mxu0 0.0
  %2154 = vmatprep.subr.mxu0 0.0
  %2155 = vmatpush2.msra.mxu0 0.0
  %2156 = vmatprep.subr.mxu0 0.0
  %2157 = vmatpush2.msra.mxu0 0.0
  %2158 = vmatprep.subr.mxu0 0.0
  %2159 = vmatpush2.msra.mxu0 0.0
  %2160 = vmatprep.subr.mxu0 0.0
  %2161 = vmatpush2.msra.mxu0 0.0
  %2162 = vmatprep.subr.mxu0 0.0
  %2163 = vmatpush2.msra.mxu0 0.0
  %2164 = vmatprep.subr.mxu0 0.0
  %2165 = vmatpush2.msra.mxu0 0.0
  %2166 = vmatprep.subr.mxu0 0.0
  %2167 = vmatpush2.msra.mxu0 0.0
  %2168 = vmatprep.subr.mxu0 0.0
  %2169 = vmatpush2.msra.mxu0 0.0
  %2170 = vmatprep.subr.mxu0 0.0
  %2171 = vmatpush2.msra.mxu0 0.0
  %2172 = vmatprep.subr.mxu0 0.0
  %2173 = vmatpush2.msra.mxu0 0.0
  %2174 = vmatprep.subr.mxu0 0.0
  %2175 = vmatpush2.msra.mxu0 0.0
  %2176 = vmatprep.subr.mxu0 0.0
  %2177 = vmatpush2.msra.mxu0 0.0
  %2178 = vmatprep.mubr.f32.mxu0 0.0
  %2179 = vmatmul.mubr.f32.gmra.mxu0 %v1879
  %v2180 = vpop.f32.mrf.mxu0
  %v2181 = vadd.f32 0.0, %v2180
  %v2182 = vpop.f32.mrf.mxu0
  %2183 = vmatprep.mubr.f32.mxu0 0.0
  %2184 = vmatmul.mubr.f32.gmra.mxu0 %v1880
  %v2185 = vpop.f32.mrf.mxu0
  %v2186 = vadd.f32 0.0, %v2185
  %v2187 = vpop.f32.mrf.mxu0
  %2188 = vdwg.mxu0
  %2189 = vmatprep.subr.mxu0 0.0
  %2190 = vmatpush1.msra.mxu0 %v281
  %2191 = vmatprep.subr.mxu0 0.0
  %2192 = vmatpush1.msra.mxu0 %v280
  %2193 = vmatprep.subr.mxu0 0.0
  %2194 = vmatpush1.msra.mxu0 %v279
  %2195 = vmatprep.subr.mxu0 0.0
  %2196 = vmatpush1.msra.mxu0 %v278
  %2197 = vmatprep.subr.mxu0 0.0
  %2198 = vmatpush1.msra.mxu0 %v277
  %2199 = vmatprep.subr.mxu0 0.0
  %2200 = vmatpush1.msra.mxu0 %v276
  %2201 = vmatprep.subr.mxu0 0.0
  %2202 = vmatpush1.msra.mxu0 %v275
  %2203 = vmatprep.subr.mxu0 0.0
  %2204 = vmatpush1.msra.mxu0 %v274
  %2205 = vmatprep.subr.mxu0 0.0
  %2206 = vmatpush1.msra.mxu0 %v273
  %2207 = vmatprep.subr.mxu0 0.0
  %2208 = vmatpush1.msra.mxu0 %v272
  %2209 = vmatprep.subr.mxu0 0.0
  %2210 = vmatpush1.msra.mxu0 %v271
  %2211 = vmatprep.subr.mxu0 0.0
  %2212 = vmatpush1.msra.mxu0 %v270
  %2213 = vmatprep.subr.mxu0 0.0
  %2214 = vmatpush1.msra.mxu0 %v269
  %2215 = vmatprep.subr.mxu0 0.0
  %2216 = vmatpush1.msra.mxu0 %v268
  %2217 = vmatprep.subr.mxu0 0.0
  %2218 = vmatpush1.msra.mxu0 %v267
  %2219 = vmatprep.subr.mxu0 0.0
  %2220 = vmatpush1.msra.mxu0 %v266
  %2221 = vmatprep.subr.mxu0 0.0
  %2222 = vmatpush2.msra.mxu0 0.0
  %2223 = vmatprep.subr.mxu0 0.0
  %2224 = vmatpush2.msra.mxu0 0.0
  %2225 = vmatprep.subr.mxu0 0.0
  %2226 = vmatpush2.msra.mxu0 0.0
  %2227 = vmatprep.subr.mxu0 0.0
  %2228 = vmatpush2.msra.mxu0 0.0
  %2229 = vmatprep.subr.mxu0 0.0
  %2230 = vmatpush2.msra.mxu0 0.0
  %2231 = vmatprep.subr.mxu0 0.0
  %2232 = vmatpush2.msra.mxu0 0.0
  %2233 = vmatprep.subr.mxu0 0.0
  %2234 = vmatpush2.msra.mxu0 0.0
  %2235 = vmatprep.subr.mxu0 0.0
  %2236 = vmatpush2.msra.mxu0 0.0
  %2237 = vmatprep.subr.mxu0 0.0
  %2238 = vmatpush2.msra.mxu0 0.0
  %2239 = vmatprep.subr.mxu0 0.0
  %2240 = vmatpush2.msra.mxu0 0.0
  %2241 = vmatprep.subr.mxu0 0.0
  %2242 = vmatpush2.msra.mxu0 0.0
  %2243 = vmatprep.subr.mxu0 0.0
  %2244 = vmatpush2.msra.mxu0 0.0
  %2245 = vmatprep.subr.mxu0 0.0
  %2246 = vmatpush2.msra.mxu0 0.0
  %2247 = vmatprep.subr.mxu0 0.0
  %2248 = vmatpush2.msra.mxu0 0.0
  %2249 = vmatprep.subr.mxu0 0.0
  %2250 = vmatpush2.msra.mxu0 0.0
  %2251 = vmatprep.subr.mxu0 0.0
  %2252 = vmatpush2.msra.mxu0 0.0
  %2253 = vmatprep.mubr.f32.mxu0 0.0
  %2254 = vmatmul.mubr.f32.gmra.mxu0 %v1881
  %v2255 = vpop.f32.mrf.mxu0
  %v2256 = vadd.f32 0.0, %v2255
  %v2257 = vpop.f32.mrf.mxu0
  %2258 = vmatprep.mubr.f32.mxu0 0.0
  %2259 = vmatmul.mubr.f32.gmra.mxu0 %v1882
  %v2260 = vpop.f32.mrf.mxu0
  %v2261 = vadd.f32 0.0, %v2260
  %v2262 = vpop.f32.mrf.mxu0
  %2263 = vdwg.mxu0
  %2264 = vmatprep.subr.mxu0 0.0
  %2265 = vmatpush1.msra.mxu0 %v297
  %2266 = vmatprep.subr.mxu0 0.0
  %2267 = vmatpush1.msra.mxu0 %v296
  %2268 = vmatprep.subr.mxu0 0.0
  %2269 = vmatpush1.msra.mxu0 %v295
  %2270 = vmatprep.subr.mxu0 0.0
  %2271 = vmatpush1.msra.mxu0 %v294
  %2272 = vmatprep.subr.mxu0 0.0
  %2273 = vmatpush1.msra.mxu0 %v293
  %2274 = vmatprep.subr.mxu0 0.0
  %2275 = vmatpush1.msra.mxu0 %v292
  %2276 = vmatprep.subr.mxu0 0.0
  %2277 = vmatpush1.msra.mxu0 %v291
  %2278 = vmatprep.subr.mxu0 0.0
  %2279 = vmatpush1.msra.mxu0 %v290
  %2280 = vmatprep.subr.mxu0 0.0
  %2281 = vmatpush1.msra.mxu0 %v289
  %2282 = vmatprep.subr.mxu0 0.0
  %2283 = vmatpush1.msra.mxu0 %v288
  %2284 = vmatprep.subr.mxu0 0.0
  %2285 = vmatpush1.msra.mxu0 %v287
  %2286 = vmatprep.subr.mxu0 0.0
  %2287 = vmatpush1.msra.mxu0 %v286
  %2288 = vmatprep.subr.mxu0 0.0
  %2289 = vmatpush1.msra.mxu0 %v285
  %2290 = vmatprep.subr.mxu0 0.0
  %2291 = vmatpush1.msra.mxu0 %v284
  %2292 = vmatprep.subr.mxu0 0.0
  %2293 = vmatpush1.msra.mxu0 %v283
  %2294 = vmatprep.subr.mxu0 0.0
  %2295 = vmatpush1.msra.mxu0 %v282
  %2296 = vmatprep.subr.mxu0 0.0
  %2297 = vmatpush2.msra.mxu0 0.0
  %2298 = vmatprep.subr.mxu0 0.0
  %2299 = vmatpush2.msra.mxu0 0.0
  %2300 = vmatprep.subr.mxu0 0.0
  %2301 = vmatpush2.msra.mxu0 0.0
  %2302 = vmatprep.subr.mxu0 0.0
  %2303 = vmatpush2.msra.mxu0 0.0
  %2304 = vmatprep.subr.mxu0 0.0
  %2305 = vmatpush2.msra.mxu0 0.0
  %2306 = vmatprep.subr.mxu0 0.0
  %2307 = vmatpush2.msra.mxu0 0.0
  %2308 = vmatprep.subr.mxu0 0.0
  %2309 = vmatpush2.msra.mxu0 0.0
  %2310 = vmatprep.subr.mxu0 0.0
  %2311 = vmatpush2.msra.mxu0 0.0
  %2312 = vmatprep.subr.mxu0 0.0
  %2313 = vmatpush2.msra.mxu0 0.0
  %2314 = vmatprep.subr.mxu0 0.0
  %2315 = vmatpush2.msra.mxu0 0.0
  %2316 = vmatprep.subr.mxu0 0.0
  %2317 = vmatpush2.msra.mxu0 0.0
  %2318 = vmatprep.subr.mxu0 0.0
  %2319 = vmatpush2.msra.mxu0 0.0
  %2320 = vmatprep.subr.mxu0 0.0
  %2321 = vmatpush2.msra.mxu0 0.0
  %2322 = vmatprep.subr.mxu0 0.0
  %2323 = vmatpush2.msra.mxu0 0.0
  %2324 = vmatprep.subr.mxu0 0.0
  %2325 = vmatpush2.msra.mxu0 0.0
  %2326 = vmatprep.subr.mxu0 0.0
  %2327 = vmatpush2.msra.mxu0 0.0
  %2328 = vmatprep.mubr.f32.mxu0 0.0
  %2329 = vmatmul.mubr.f32.gmra.mxu0 %v1883
  %v2330 = vpop.f32.mrf.mxu0
  %v2331 = vadd.f32 0.0, %v2330
  %v2332 = vpop.f32.mrf.mxu0
  %2333 = vmatprep.mubr.f32.mxu0 0.0
  %2334 = vmatmul.mubr.f32.gmra.mxu0 %v1884
  %v2335 = vpop.f32.mrf.mxu0
  %v2336 = vadd.f32 0.0, %v2335
  %v2337 = vpop.f32.mrf.mxu0
  %2338 = vdwg.mxu0
  %2339 = vmatprep.subr.mxu0 0.0
  %2340 = vmatpush1.msra.mxu0 %v313
  %2341 = vmatprep.subr.mxu0 0.0
  %2342 = vmatpush1.msra.mxu0 %v312
  %2343 = vmatprep.subr.mxu0 0.0
  %2344 = vmatpush1.msra.mxu0 %v311
  %2345 = vmatprep.subr.mxu0 0.0
  %2346 = vmatpush1.msra.mxu0 %v310
  %2347 = vmatprep.subr.mxu0 0.0
  %2348 = vmatpush1.msra.mxu0 %v309
  %2349 = vmatprep.subr.mxu0 0.0
  %2350 = vmatpush1.msra.mxu0 %v308
  %2351 = vmatprep.subr.mxu0 0.0
  %2352 = vmatpush1.msra.mxu0 %v307
  %2353 = vmatprep.subr.mxu0 0.0
  %2354 = vmatpush1.msra.mxu0 %v306
  %2355 = vmatprep.subr.mxu0 0.0
  %2356 = vmatpush1.msra.mxu0 %v305
  %2357 = vmatprep.subr.mxu0 0.0
  %2358 = vmatpush1.msra.mxu0 %v304
  %2359 = vmatprep.subr.mxu0 0.0
  %2360 = vmatpush1.msra.mxu0 %v303
  %2361 = vmatprep.subr.mxu0 0.0
  %2362 = vmatpush1.msra.mxu0 %v302
  %2363 = vmatprep.subr.mxu0 0.0
  %2364 = vmatpush1.msra.mxu0 %v301
  %2365 = vmatprep.subr.mxu0 0.0
  %2366 = vmatpush1.msra.mxu0 %v300
  %2367 = vmatprep.subr.mxu0 0.0
  %2368 = vmatpush1.msra.mxu0 %v299
  %2369 = vmatprep.subr.mxu0 0.0
  %2370 = vmatpush1.msra.mxu0 %v298
  %2371 = vmatprep.subr.mxu0 0.0
  %2372 = vmatpush2.msra.mxu0 0.0
  %2373 = vmatprep.subr.mxu0 0.0
  %2374 = vmatpush2.msra.mxu0 0.0
  %2375 = vmatprep.subr.mxu0 0.0
  %2376 = vmatpush2.msra.mxu0 0.0
  %2377 = vmatprep.subr.mxu0 0.0
  %2378 = vmatpush2.msra.mxu0 0.0
  %2379 = vmatprep.subr.mxu0 0.0
  %2380 = vmatpush2.msra.mxu0 0.0
  %2381 = vmatprep.subr.mxu0 0.0
  %2382 = vmatpush2.msra.mxu0 0.0
  %2383 = vmatprep.subr.mxu0 0.0
  %2384 = vmatpush2.msra.mxu0 0.0
  %2385 = vmatprep.subr.mxu0 0.0
  %2386 = vmatpush2.msra.mxu0 0.0
  %2387 = vmatprep.subr.mxu0 0.0
  %2388 = vmatpush2.msra.mxu0 0.0
  %2389 = vmatprep.subr.mxu0 0.0
  %2390 = vmatpush2.msra.mxu0 0.0
  %2391 = vmatprep.subr.mxu0 0.0
  %2392 = vmatpush2.msra.mxu0 0.0
  %2393 = vmatprep.subr.mxu0 0.0
  %2394 = vmatpush2.msra.mxu0 0.0
  %2395 = vmatprep.subr.mxu0 0.0
  %2396 = vmatpush2.msra.mxu0 0.0
  %2397 = vmatprep.subr.mxu0 0.0
  %2398 = vmatpush2.msra.mxu0 0.0
  %2399 = vmatprep.subr.mxu0 0.0
  %2400 = vmatpush2.msra.mxu0 0.0
  %2401 = vmatprep.subr.mxu0 0.0
  %2402 = vmatpush2.msra.mxu0 0.0
  %2403 = vmatprep.mubr.f32.mxu0 0.0
  %2404 = vmatmul.mubr.f32.gmra.mxu0 %v1885
  %v2405 = vpop.f32.mrf.mxu0
  %v2406 = vadd.f32 0.0, %v2405
  %v2407 = vpop.f32.mrf.mxu0
  %2408 = vmatprep.mubr.f32.mxu0 0.0
  %2409 = vmatmul.mubr.f32.gmra.mxu0 %v1886
  %v2410 = vpop.f32.mrf.mxu0
  %v2411 = vadd.f32 0.0, %v2410
  %v2412 = vpop.f32.mrf.mxu0
  %2413 = vdwg.mxu0
  %2414 = vmatprep.subr.mxu0 0.0
  %2415 = vmatpush1.msra.mxu0 %v329
  %2416 = vmatprep.subr.mxu0 0.0
  %2417 = vmatpush1.msra.mxu0 %v328
  %2418 = vmatprep.subr.mxu0 0.0
  %2419 = vmatpush1.msra.mxu0 %v327
  %2420 = vmatprep.subr.mxu0 0.0
  %2421 = vmatpush1.msra.mxu0 %v326
  %2422 = vmatprep.subr.mxu0 0.0
  %2423 = vmatpush1.msra.mxu0 %v325
  %2424 = vmatprep.subr.mxu0 0.0
  %2425 = vmatpush1.msra.mxu0 %v324
  %2426 = vmatprep.subr.mxu0 0.0
  %2427 = vmatpush1.msra.mxu0 %v323
  %2428 = vmatprep.subr.mxu0 0.0
  %2429 = vmatpush1.msra.mxu0 %v322
  %2430 = vmatprep.subr.mxu0 0.0
  %2431 = vmatpush1.msra.mxu0 %v321
  %2432 = vmatprep.subr.mxu0 0.0
  %2433 = vmatpush1.msra.mxu0 %v320
  %2434 = vmatprep.subr.mxu0 0.0
  %2435 = vmatpush1.msra.mxu0 %v319
  %2436 = vmatprep.subr.mxu0 0.0
  %2437 = vmatpush1.msra.mxu0 %v318
  %2438 = vmatprep.subr.mxu0 0.0
  %2439 = vmatpush1.msra.mxu0 %v317
  %2440 = vmatprep.subr.mxu0 0.0
  %2441 = vmatpush1.msra.mxu0 %v316
  %2442 = vmatprep.subr.mxu0 0.0
  %2443 = vmatpush1.msra.mxu0 %v315
  %2444 = vmatprep.subr.mxu0 0.0
  %2445 = vmatpush1.msra.mxu0 %v314
  %2446 = vmatprep.subr.mxu0 0.0
  %2447 = vmatpush2.msra.mxu0 0.0
  %2448 = vmatprep.subr.mxu0 0.0
  %2449 = vmatpush2.msra.mxu0 0.0
  %2450 = vmatprep.subr.mxu0 0.0
  %2451 = vmatpush2.msra.mxu0 0.0
  %2452 = vmatprep.subr.mxu0 0.0
  %2453 = vmatpush2.msra.mxu0 0.0
  %2454 = vmatprep.subr.mxu0 0.0
  %2455 = vmatpush2.msra.mxu0 0.0
  %2456 = vmatprep.subr.mxu0 0.0
  %2457 = vmatpush2.msra.mxu0 0.0
  %2458 = vmatprep.subr.mxu0 0.0
  %2459 = vmatpush2.msra.mxu0 0.0
  %2460 = vmatprep.subr.mxu0 0.0
  %2461 = vmatpush2.msra.mxu0 0.0
  %2462 = vmatprep.subr.mxu0 0.0
  %2463 = vmatpush2.msra.mxu0 0.0
  %2464 = vmatprep.subr.mxu0 0.0
  %2465 = vmatpush2.msra.mxu0 0.0
  %2466 = vmatprep.subr.mxu0 0.0
  %2467 = vmatpush2.msra.mxu0 0.0
  %2468 = vmatprep.subr.mxu0 0.0
  %2469 = vmatpush2.msra.mxu0 0.0
  %2470 = vmatprep.subr.mxu0 0.0
  %2471 = vmatpush2.msra.mxu0 0.0
  %2472 = vmatprep.subr.mxu0 0.0
  %2473 = vmatpush2.msra.mxu0 0.0
  %2474 = vmatprep.subr.mxu0 0.0
  %2475 = vmatpush2.msra.mxu0 0.0
  %2476 = vmatprep.subr.mxu0 0.0
  %2477 = vmatpush2.msra.mxu0 0.0
  %2478 = vmatprep.mubr.f32.mxu0 0.0
  %2479 = vmatmul.mubr.f32.gmra.mxu0 %v1887
  %v2480 = vpop.f32.mrf.mxu0
  %v2481 = vadd.f32 0.0, %v2480
  %v2482 = vpop.f32.mrf.mxu0
  %2483 = vmatprep.mubr.f32.mxu0 0.0
  %2484 = vmatmul.mubr.f32.gmra.mxu0 %v1888
  %v2485 = vpop.f32.mrf.mxu0
  %v2486 = vadd.f32 0.0, %v2485
  %v2487 = vpop.f32.mrf.mxu0
  %2488 = vdwg.mxu0
  %2489 = vst.msk [vmem:[%s3 + $0x20] sm:$0xff] %vm1092, %v1956
  %2490 = vst.msk [vmem:[%s3 + $0x28] sm:$0xff] %vm1092, %v1961
  %2491 = vst.msk [vmem:[%s3 + $0xa0] sm:$0xff] %vm1092, %v2031
  %2492 = vst.msk [vmem:[%s3 + $0xa8] sm:$0xff] %vm1092, %v2036
  %2493 = vst.msk [vmem:[%s3 + $0x120] sm:$0xff] %vm1092, %v2106
  %2494 = vst.msk [vmem:[%s3 + $0x128] sm:$0xff] %vm1092, %v2111
  %2495 = vst.msk [vmem:[%s3 + $0x1a0] sm:$0xff] %vm1092, %v2181
  %2496 = vst.msk [vmem:[%s3 + $0x1a8] sm:$0xff] %vm1092, %v2186
  %2497 = vst.msk [vmem:[%s3 + $0x220] sm:$0xff] %vm1092, %v2256
  %2498 = vst.msk [vmem:[%s3 + $0x228] sm:$0xff] %vm1092, %v2261
  %2499 = vst.msk [vmem:[%s3 + $0x2a0] sm:$0xff] %vm1092, %v2331
  %2500 = vst.msk [vmem:[%s3 + $0x2a8] sm:$0xff] %vm1092, %v2336
  %2501 = vst.msk [vmem:[%s3 + $0x320] sm:$0xff] %vm1092, %v2406
  %2502 = vst.msk [vmem:[%s3 + $0x328] sm:$0xff] %vm1092, %v2411
  %2503 = vst.msk [vmem:[%s3 + $0x3a0] sm:$0xff] %vm1092, %v2481
  %2504 = vst.msk [vmem:[%s3 + $0x3a8] sm:$0xff] %vm1092, %v2486
  %v2505 = vadd.f32 %v200, 48.0
  %v2506 = vadd.f32 %v201, 48.0
  %vm2507 = vcmp.ge.f32.partialorder %v335, %v2505
  %vm2508 = vcmp.ge.f32.partialorder %v335, %v2506
  %vm2509 = vcmp.ge.f32.partialorder %v339, %v2505
  %vm2510 = vcmp.ge.f32.partialorder %v339, %v2506
  %vm2511 = vcmp.ge.f32.partialorder %v343, %v2505
  %vm2512 = vcmp.ge.f32.partialorder %v343, %v2506
  %vm2513 = vcmp.ge.f32.partialorder %v347, %v2505
  %vm2514 = vcmp.ge.f32.partialorder %v347, %v2506
  %vm2515 = vcmp.ge.f32.partialorder %v351, %v2505
  %vm2516 = vcmp.ge.f32.partialorder %v351, %v2506
  %vm2517 = vcmp.ge.f32.partialorder %v355, %v2505
  %vm2518 = vcmp.ge.f32.partialorder %v355, %v2506
  %vm2519 = vcmp.ge.f32.partialorder %v359, %v2505
  %vm2520 = vcmp.ge.f32.partialorder %v359, %v2506
  %vm2521 = vcmp.ge.f32.partialorder %v363, %v2505
  %vm2522 = vcmp.ge.f32.partialorder %v363, %v2506
  %vm2523 = vcmp.lt.f32.partialorder %v391, %v2505
  %vm2524 = vcmp.lt.f32.partialorder %v391, %v2506
  %vm2525 = vcmp.lt.f32.partialorder %v395, %v2505
  %vm2526 = vcmp.lt.f32.partialorder %v395, %v2506
  %vm2527 = vcmp.lt.f32.partialorder %v399, %v2505
  %vm2528 = vcmp.lt.f32.partialorder %v399, %v2506
  %vm2529 = vcmp.lt.f32.partialorder %v403, %v2505
  %vm2530 = vcmp.lt.f32.partialorder %v403, %v2506
  %vm2531 = vcmp.lt.f32.partialorder %v407, %v2505
  %vm2532 = vcmp.lt.f32.partialorder %v407, %v2506
  %vm2533 = vcmp.lt.f32.partialorder %v411, %v2505
  %vm2534 = vcmp.lt.f32.partialorder %v411, %v2506
  %vm2535 = vcmp.lt.f32.partialorder %v415, %v2505
  %vm2536 = vcmp.lt.f32.partialorder %v415, %v2506
  %vm2537 = vcmp.lt.f32.partialorder %v419, %v2505
  %vm2538 = vcmp.lt.f32.partialorder %v419, %v2506
  %vm2539 = vmand %vm2507, %vm2523
  %vm2540 = vmand %vm2508, %vm2524
  %vm2541 = vmand %vm2509, %vm2525
  %vm2542 = vmand %vm2510, %vm2526
  %vm2543 = vmand %vm2511, %vm2527
  %vm2544 = vmand %vm2512, %vm2528
  %vm2545 = vmand %vm2513, %vm2529
  %vm2546 = vmand %vm2514, %vm2530
  %vm2547 = vmand %vm2515, %vm2531
  %vm2548 = vmand %vm2516, %vm2532
  %vm2549 = vmand %vm2517, %vm2533
  %vm2550 = vmand %vm2518, %vm2534
  %vm2551 = vmand %vm2519, %vm2535
  %vm2552 = vmand %vm2520, %vm2536
  %vm2553 = vmand %vm2521, %vm2537
  %vm2554 = vmand %vm2522, %vm2538
  %v2555 = vsel %vm2539, 1, 0
  %v2556 = vsel %vm2540, 1, 0
  %v2557 = vsel %vm2541, 1, 0
  %v2558 = vsel %vm2542, 1, 0
  %v2559 = vsel %vm2543, 1, 0
  %v2560 = vsel %vm2544, 1, 0
  %v2561 = vsel %vm2545, 1, 0
  %v2562 = vsel %vm2546, 1, 0
  %v2563 = vsel %vm2547, 1, 0
  %v2564 = vsel %vm2548, 1, 0
  %v2565 = vsel %vm2549, 1, 0
  %v2566 = vsel %vm2550, 1, 0
  %v2567 = vsel %vm2551, 1, 0
  %v2568 = vsel %vm2552, 1, 0
  %v2569 = vsel %vm2553, 1, 0
  %v2570 = vsel %vm2554, 1, 0
  %v2571 = vcvt.s32.f32 %v2555
  %v2572 = vcvt.s32.f32 %v2556
  %v2573 = vcvt.s32.f32 %v2557
  %v2574 = vcvt.s32.f32 %v2558
  %v2575 = vcvt.s32.f32 %v2559
  %v2576 = vcvt.s32.f32 %v2560
  %v2577 = vcvt.s32.f32 %v2561
  %v2578 = vcvt.s32.f32 %v2562
  %v2579 = vcvt.s32.f32 %v2563
  %v2580 = vcvt.s32.f32 %v2564
  %v2581 = vcvt.s32.f32 %v2565
  %v2582 = vcvt.s32.f32 %v2566
  %v2583 = vcvt.s32.f32 %v2567
  %v2584 = vcvt.s32.f32 %v2568
  %v2585 = vcvt.s32.f32 %v2569
  %v2586 = vcvt.s32.f32 %v2570
  %2587 = vmatprep.subr.mxu0 0.0
  %2588 = vmatpush1.msra.mxu0 %v217
  %2589 = vmatprep.subr.mxu0 0.0
  %2590 = vmatpush1.msra.mxu0 %v216
  %2591 = vmatprep.subr.mxu0 0.0
  %2592 = vmatpush1.msra.mxu0 %v215
  %2593 = vmatprep.subr.mxu0 0.0
  %2594 = vmatpush1.msra.mxu0 %v214
  %2595 = vmatprep.subr.mxu0 0.0
  %2596 = vmatpush1.msra.mxu0 %v213
  %2597 = vmatprep.subr.mxu0 0.0
  %2598 = vmatpush1.msra.mxu0 %v212
  %2599 = vmatprep.subr.mxu0 0.0
  %2600 = vmatpush1.msra.mxu0 %v211
  %2601 = vmatprep.subr.mxu0 0.0
  %2602 = vmatpush1.msra.mxu0 %v210
  %2603 = vmatprep.subr.mxu0 0.0
  %2604 = vmatpush1.msra.mxu0 %v209
  %2605 = vmatprep.subr.mxu0 0.0
  %2606 = vmatpush1.msra.mxu0 %v208
  %2607 = vmatprep.subr.mxu0 0.0
  %2608 = vmatpush1.msra.mxu0 %v207
  %2609 = vmatprep.subr.mxu0 0.0
  %2610 = vmatpush1.msra.mxu0 %v206
  %2611 = vmatprep.subr.mxu0 0.0
  %2612 = vmatpush1.msra.mxu0 %v205
  %2613 = vmatprep.subr.mxu0 0.0
  %2614 = vmatpush1.msra.mxu0 %v204
  %2615 = vmatprep.subr.mxu0 0.0
  %2616 = vmatpush1.msra.mxu0 %v203
  %2617 = vmatprep.subr.mxu0 0.0
  %2618 = vmatpush1.msra.mxu0 %v202
  %2619 = vmatprep.subr.mxu0 0.0
  %2620 = vmatpush2.msra.mxu0 0.0
  %2621 = vmatprep.subr.mxu0 0.0
  %2622 = vmatpush2.msra.mxu0 0.0
  %2623 = vmatprep.subr.mxu0 0.0
  %2624 = vmatpush2.msra.mxu0 0.0
  %2625 = vmatprep.subr.mxu0 0.0
  %2626 = vmatpush2.msra.mxu0 0.0
  %2627 = vmatprep.subr.mxu0 0.0
  %2628 = vmatpush2.msra.mxu0 0.0
  %2629 = vmatprep.subr.mxu0 0.0
  %2630 = vmatpush2.msra.mxu0 0.0
  %2631 = vmatprep.subr.mxu0 0.0
  %2632 = vmatpush2.msra.mxu0 0.0
  %2633 = vmatprep.subr.mxu0 0.0
  %2634 = vmatpush2.msra.mxu0 0.0
  %2635 = vmatprep.subr.mxu0 0.0
  %2636 = vmatpush2.msra.mxu0 0.0
  %2637 = vmatprep.subr.mxu0 0.0
  %2638 = vmatpush2.msra.mxu0 0.0
  %2639 = vmatprep.subr.mxu0 0.0
  %2640 = vmatpush2.msra.mxu0 0.0
  %2641 = vmatprep.subr.mxu0 0.0
  %2642 = vmatpush2.msra.mxu0 0.0
  %2643 = vmatprep.subr.mxu0 0.0
  %2644 = vmatpush2.msra.mxu0 0.0
  %2645 = vmatprep.subr.mxu0 0.0
  %2646 = vmatpush2.msra.mxu0 0.0
  %2647 = vmatprep.subr.mxu0 0.0
  %2648 = vmatpush2.msra.mxu0 0.0
  %2649 = vmatprep.subr.mxu0 0.0
  %2650 = vmatpush2.msra.mxu0 0.0
  %2651 = vmatprep.mubr.f32.mxu0 0.0
  %2652 = vmatmul.mubr.f32.gmra.mxu0 %v2571
  %v2653 = vpop.f32.mrf.mxu0
  %v2654 = vadd.f32 0.0, %v2653
  %v2655 = vpop.f32.mrf.mxu0
  %2656 = vmatprep.mubr.f32.mxu0 0.0
  %2657 = vmatmul.mubr.f32.gmra.mxu0 %v2572
  %v2658 = vpop.f32.mrf.mxu0
  %v2659 = vadd.f32 0.0, %v2658
  %v2660 = vpop.f32.mrf.mxu0
  %2661 = vdwg.mxu0
  %2662 = vmatprep.subr.mxu0 0.0
  %2663 = vmatpush1.msra.mxu0 %v233
  %2664 = vmatprep.subr.mxu0 0.0
  %2665 = vmatpush1.msra.mxu0 %v232
  %2666 = vmatprep.subr.mxu0 0.0
  %2667 = vmatpush1.msra.mxu0 %v231
  %2668 = vmatprep.subr.mxu0 0.0
  %2669 = vmatpush1.msra.mxu0 %v230
  %2670 = vmatprep.subr.mxu0 0.0
  %2671 = vmatpush1.msra.mxu0 %v229
  %2672 = vmatprep.subr.mxu0 0.0
  %2673 = vmatpush1.msra.mxu0 %v228
  %2674 = vmatprep.subr.mxu0 0.0
  %2675 = vmatpush1.msra.mxu0 %v227
  %2676 = vmatprep.subr.mxu0 0.0
  %2677 = vmatpush1.msra.mxu0 %v226
  %2678 = vmatprep.subr.mxu0 0.0
  %2679 = vmatpush1.msra.mxu0 %v225
  %2680 = vmatprep.subr.mxu0 0.0
  %2681 = vmatpush1.msra.mxu0 %v224
  %2682 = vmatprep.subr.mxu0 0.0
  %2683 = vmatpush1.msra.mxu0 %v223
  %2684 = vmatprep.subr.mxu0 0.0
  %2685 = vmatpush1.msra.mxu0 %v222
  %2686 = vmatprep.subr.mxu0 0.0
  %2687 = vmatpush1.msra.mxu0 %v221
  %2688 = vmatprep.subr.mxu0 0.0
  %2689 = vmatpush1.msra.mxu0 %v220
  %2690 = vmatprep.subr.mxu0 0.0
  %2691 = vmatpush1.msra.mxu0 %v219
  %2692 = vmatprep.subr.mxu0 0.0
  %2693 = vmatpush1.msra.mxu0 %v218
  %2694 = vmatprep.subr.mxu0 0.0
  %2695 = vmatpush2.msra.mxu0 0.0
  %2696 = vmatprep.subr.mxu0 0.0
  %2697 = vmatpush2.msra.mxu0 0.0
  %2698 = vmatprep.subr.mxu0 0.0
  %2699 = vmatpush2.msra.mxu0 0.0
  %2700 = vmatprep.subr.mxu0 0.0
  %2701 = vmatpush2.msra.mxu0 0.0
  %2702 = vmatprep.subr.mxu0 0.0
  %2703 = vmatpush2.msra.mxu0 0.0
  %2704 = vmatprep.subr.mxu0 0.0
  %2705 = vmatpush2.msra.mxu0 0.0
  %2706 = vmatprep.subr.mxu0 0.0
  %2707 = vmatpush2.msra.mxu0 0.0
  %2708 = vmatprep.subr.mxu0 0.0
  %2709 = vmatpush2.msra.mxu0 0.0
  %2710 = vmatprep.subr.mxu0 0.0
  %2711 = vmatpush2.msra.mxu0 0.0
  %2712 = vmatprep.subr.mxu0 0.0
  %2713 = vmatpush2.msra.mxu0 0.0
  %2714 = vmatprep.subr.mxu0 0.0
  %2715 = vmatpush2.msra.mxu0 0.0
  %2716 = vmatprep.subr.mxu0 0.0
  %2717 = vmatpush2.msra.mxu0 0.0
  %2718 = vmatprep.subr.mxu0 0.0
  %2719 = vmatpush2.msra.mxu0 0.0
  %2720 = vmatprep.subr.mxu0 0.0
  %2721 = vmatpush2.msra.mxu0 0.0
  %2722 = vmatprep.subr.mxu0 0.0
  %2723 = vmatpush2.msra.mxu0 0.0
  %2724 = vmatprep.subr.mxu0 0.0
  %2725 = vmatpush2.msra.mxu0 0.0
  %2726 = vmatprep.mubr.f32.mxu0 0.0
  %2727 = vmatmul.mubr.f32.gmra.mxu0 %v2573
  %v2728 = vpop.f32.mrf.mxu0
  %v2729 = vadd.f32 0.0, %v2728
  %v2730 = vpop.f32.mrf.mxu0
  %2731 = vmatprep.mubr.f32.mxu0 0.0
  %2732 = vmatmul.mubr.f32.gmra.mxu0 %v2574
  %v2733 = vpop.f32.mrf.mxu0
  %v2734 = vadd.f32 0.0, %v2733
  %v2735 = vpop.f32.mrf.mxu0
  %2736 = vdwg.mxu0
  %2737 = vmatprep.subr.mxu0 0.0
  %2738 = vmatpush1.msra.mxu0 %v249
  %2739 = vmatprep.subr.mxu0 0.0
  %2740 = vmatpush1.msra.mxu0 %v248
  %2741 = vmatprep.subr.mxu0 0.0
  %2742 = vmatpush1.msra.mxu0 %v247
  %2743 = vmatprep.subr.mxu0 0.0
  %2744 = vmatpush1.msra.mxu0 %v246
  %2745 = vmatprep.subr.mxu0 0.0
  %2746 = vmatpush1.msra.mxu0 %v245
  %2747 = vmatprep.subr.mxu0 0.0
  %2748 = vmatpush1.msra.mxu0 %v244
  %2749 = vmatprep.subr.mxu0 0.0
  %2750 = vmatpush1.msra.mxu0 %v243
  %2751 = vmatprep.subr.mxu0 0.0
  %2752 = vmatpush1.msra.mxu0 %v242
  %2753 = vmatprep.subr.mxu0 0.0
  %2754 = vmatpush1.msra.mxu0 %v241
  %2755 = vmatprep.subr.mxu0 0.0
  %2756 = vmatpush1.msra.mxu0 %v240
  %2757 = vmatprep.subr.mxu0 0.0
  %2758 = vmatpush1.msra.mxu0 %v239
  %2759 = vmatprep.subr.mxu0 0.0
  %2760 = vmatpush1.msra.mxu0 %v238
  %2761 = vmatprep.subr.mxu0 0.0
  %2762 = vmatpush1.msra.mxu0 %v237
  %2763 = vmatprep.subr.mxu0 0.0
  %2764 = vmatpush1.msra.mxu0 %v236
  %2765 = vmatprep.subr.mxu0 0.0
  %2766 = vmatpush1.msra.mxu0 %v235
  %2767 = vmatprep.subr.mxu0 0.0
  %2768 = vmatpush1.msra.mxu0 %v234
  %2769 = vmatprep.subr.mxu0 0.0
  %2770 = vmatpush2.msra.mxu0 0.0
  %2771 = vmatprep.subr.mxu0 0.0
  %2772 = vmatpush2.msra.mxu0 0.0
  %2773 = vmatprep.subr.mxu0 0.0
  %2774 = vmatpush2.msra.mxu0 0.0
  %2775 = vmatprep.subr.mxu0 0.0
  %2776 = vmatpush2.msra.mxu0 0.0
  %2777 = vmatprep.subr.mxu0 0.0
  %2778 = vmatpush2.msra.mxu0 0.0
  %2779 = vmatprep.subr.mxu0 0.0
  %2780 = vmatpush2.msra.mxu0 0.0
  %2781 = vmatprep.subr.mxu0 0.0
  %2782 = vmatpush2.msra.mxu0 0.0
  %2783 = vmatprep.subr.mxu0 0.0
  %2784 = vmatpush2.msra.mxu0 0.0
  %2785 = vmatprep.subr.mxu0 0.0
  %2786 = vmatpush2.msra.mxu0 0.0
  %2787 = vmatprep.subr.mxu0 0.0
  %2788 = vmatpush2.msra.mxu0 0.0
  %2789 = vmatprep.subr.mxu0 0.0
  %2790 = vmatpush2.msra.mxu0 0.0
  %2791 = vmatprep.subr.mxu0 0.0
  %2792 = vmatpush2.msra.mxu0 0.0
  %2793 = vmatprep.subr.mxu0 0.0
  %2794 = vmatpush2.msra.mxu0 0.0
  %2795 = vmatprep.subr.mxu0 0.0
  %2796 = vmatpush2.msra.mxu0 0.0
  %2797 = vmatprep.subr.mxu0 0.0
  %2798 = vmatpush2.msra.mxu0 0.0
  %2799 = vmatprep.subr.mxu0 0.0
  %2800 = vmatpush2.msra.mxu0 0.0
  %2801 = vmatprep.mubr.f32.mxu0 0.0
  %2802 = vmatmul.mubr.f32.gmra.mxu0 %v2575
  %v2803 = vpop.f32.mrf.mxu0
  %v2804 = vadd.f32 0.0, %v2803
  %v2805 = vpop.f32.mrf.mxu0
  %2806 = vmatprep.mubr.f32.mxu0 0.0
  %2807 = vmatmul.mubr.f32.gmra.mxu0 %v2576
  %v2808 = vpop.f32.mrf.mxu0
  %v2809 = vadd.f32 0.0, %v2808
  %v2810 = vpop.f32.mrf.mxu0
  %2811 = vdwg.mxu0
  %2812 = vmatprep.subr.mxu0 0.0
  %2813 = vmatpush1.msra.mxu0 %v265
  %2814 = vmatprep.subr.mxu0 0.0
  %2815 = vmatpush1.msra.mxu0 %v264
  %2816 = vmatprep.subr.mxu0 0.0
  %2817 = vmatpush1.msra.mxu0 %v263
  %2818 = vmatprep.subr.mxu0 0.0
  %2819 = vmatpush1.msra.mxu0 %v262
  %2820 = vmatprep.subr.mxu0 0.0
  %2821 = vmatpush1.msra.mxu0 %v261
  %2822 = vmatprep.subr.mxu0 0.0
  %2823 = vmatpush1.msra.mxu0 %v260
  %2824 = vmatprep.subr.mxu0 0.0
  %2825 = vmatpush1.msra.mxu0 %v259
  %2826 = vmatprep.subr.mxu0 0.0
  %2827 = vmatpush1.msra.mxu0 %v258
  %2828 = vmatprep.subr.mxu0 0.0
  %2829 = vmatpush1.msra.mxu0 %v257
  %2830 = vmatprep.subr.mxu0 0.0
  %2831 = vmatpush1.msra.mxu0 %v256
  %2832 = vmatprep.subr.mxu0 0.0
  %2833 = vmatpush1.msra.mxu0 %v255
  %2834 = vmatprep.subr.mxu0 0.0
  %2835 = vmatpush1.msra.mxu0 %v254
  %2836 = vmatprep.subr.mxu0 0.0
  %2837 = vmatpush1.msra.mxu0 %v253
  %2838 = vmatprep.subr.mxu0 0.0
  %2839 = vmatpush1.msra.mxu0 %v252
  %2840 = vmatprep.subr.mxu0 0.0
  %2841 = vmatpush1.msra.mxu0 %v251
  %2842 = vmatprep.subr.mxu0 0.0
  %2843 = vmatpush1.msra.mxu0 %v250
  %2844 = vmatprep.subr.mxu0 0.0
  %2845 = vmatpush2.msra.mxu0 0.0
  %2846 = vmatprep.subr.mxu0 0.0
  %2847 = vmatpush2.msra.mxu0 0.0
  %2848 = vmatprep.subr.mxu0 0.0
  %2849 = vmatpush2.msra.mxu0 0.0
  %2850 = vmatprep.subr.mxu0 0.0
  %2851 = vmatpush2.msra.mxu0 0.0
  %2852 = vmatprep.subr.mxu0 0.0
  %2853 = vmatpush2.msra.mxu0 0.0
  %2854 = vmatprep.subr.mxu0 0.0
  %2855 = vmatpush2.msra.mxu0 0.0
  %2856 = vmatprep.subr.mxu0 0.0
  %2857 = vmatpush2.msra.mxu0 0.0
  %2858 = vmatprep.subr.mxu0 0.0
  %2859 = vmatpush2.msra.mxu0 0.0
  %2860 = vmatprep.subr.mxu0 0.0
  %2861 = vmatpush2.msra.mxu0 0.0
  %2862 = vmatprep.subr.mxu0 0.0
  %2863 = vmatpush2.msra.mxu0 0.0
  %2864 = vmatprep.subr.mxu0 0.0
  %2865 = vmatpush2.msra.mxu0 0.0
  %2866 = vmatprep.subr.mxu0 0.0
  %2867 = vmatpush2.msra.mxu0 0.0
  %2868 = vmatprep.subr.mxu0 0.0
  %2869 = vmatpush2.msra.mxu0 0.0
  %2870 = vmatprep.subr.mxu0 0.0
  %2871 = vmatpush2.msra.mxu0 0.0
  %2872 = vmatprep.subr.mxu0 0.0
  %2873 = vmatpush2.msra.mxu0 0.0
  %2874 = vmatprep.subr.mxu0 0.0
  %2875 = vmatpush2.msra.mxu0 0.0
  %2876 = vmatprep.mubr.f32.mxu0 0.0
  %2877 = vmatmul.mubr.f32.gmra.mxu0 %v2577
  %v2878 = vpop.f32.mrf.mxu0
  %v2879 = vadd.f32 0.0, %v2878
  %v2880 = vpop.f32.mrf.mxu0
  %2881 = vmatprep.mubr.f32.mxu0 0.0
  %2882 = vmatmul.mubr.f32.gmra.mxu0 %v2578
  %v2883 = vpop.f32.mrf.mxu0
  %v2884 = vadd.f32 0.0, %v2883
  %v2885 = vpop.f32.mrf.mxu0
  %2886 = vdwg.mxu0
  %2887 = vmatprep.subr.mxu0 0.0
  %2888 = vmatpush1.msra.mxu0 %v281
  %2889 = vmatprep.subr.mxu0 0.0
  %2890 = vmatpush1.msra.mxu0 %v280
  %2891 = vmatprep.subr.mxu0 0.0
  %2892 = vmatpush1.msra.mxu0 %v279
  %2893 = vmatprep.subr.mxu0 0.0
  %2894 = vmatpush1.msra.mxu0 %v278
  %2895 = vmatprep.subr.mxu0 0.0
  %2896 = vmatpush1.msra.mxu0 %v277
  %2897 = vmatprep.subr.mxu0 0.0
  %2898 = vmatpush1.msra.mxu0 %v276
  %2899 = vmatprep.subr.mxu0 0.0
  %2900 = vmatpush1.msra.mxu0 %v275
  %2901 = vmatprep.subr.mxu0 0.0
  %2902 = vmatpush1.msra.mxu0 %v274
  %2903 = vmatprep.subr.mxu0 0.0
  %2904 = vmatpush1.msra.mxu0 %v273
  %2905 = vmatprep.subr.mxu0 0.0
  %2906 = vmatpush1.msra.mxu0 %v272
  %2907 = vmatprep.subr.mxu0 0.0
  %2908 = vmatpush1.msra.mxu0 %v271
  %2909 = vmatprep.subr.mxu0 0.0
  %2910 = vmatpush1.msra.mxu0 %v270
  %2911 = vmatprep.subr.mxu0 0.0
  %2912 = vmatpush1.msra.mxu0 %v269
  %2913 = vmatprep.subr.mxu0 0.0
  %2914 = vmatpush1.msra.mxu0 %v268
  %2915 = vmatprep.subr.mxu0 0.0
  %2916 = vmatpush1.msra.mxu0 %v267
  %2917 = vmatprep.subr.mxu0 0.0
  %2918 = vmatpush1.msra.mxu0 %v266
  %2919 = vmatprep.subr.mxu0 0.0
  %2920 = vmatpush2.msra.mxu0 0.0
  %2921 = vmatprep.subr.mxu0 0.0
  %2922 = vmatpush2.msra.mxu0 0.0
  %2923 = vmatprep.subr.mxu0 0.0
  %2924 = vmatpush2.msra.mxu0 0.0
  %2925 = vmatprep.subr.mxu0 0.0
  %2926 = vmatpush2.msra.mxu0 0.0
  %2927 = vmatprep.subr.mxu0 0.0
  %2928 = vmatpush2.msra.mxu0 0.0
  %2929 = vmatprep.subr.mxu0 0.0
  %2930 = vmatpush2.msra.mxu0 0.0
  %2931 = vmatprep.subr.mxu0 0.0
  %2932 = vmatpush2.msra.mxu0 0.0
  %2933 = vmatprep.subr.mxu0 0.0
  %2934 = vmatpush2.msra.mxu0 0.0
  %2935 = vmatprep.subr.mxu0 0.0
  %2936 = vmatpush2.msra.mxu0 0.0
  %2937 = vmatprep.subr.mxu0 0.0
  %2938 = vmatpush2.msra.mxu0 0.0
  %2939 = vmatprep.subr.mxu0 0.0
  %2940 = vmatpush2.msra.mxu0 0.0
  %2941 = vmatprep.subr.mxu0 0.0
  %2942 = vmatpush2.msra.mxu0 0.0
  %2943 = vmatprep.subr.mxu0 0.0
  %2944 = vmatpush2.msra.mxu0 0.0
  %2945 = vmatprep.subr.mxu0 0.0
  %2946 = vmatpush2.msra.mxu0 0.0
  %2947 = vmatprep.subr.mxu0 0.0
  %2948 = vmatpush2.msra.mxu0 0.0
  %2949 = vmatprep.subr.mxu0 0.0
  %2950 = vmatpush2.msra.mxu0 0.0
  %2951 = vmatprep.mubr.f32.mxu0 0.0
  %2952 = vmatmul.mubr.f32.gmra.mxu0 %v2579
  %v2953 = vpop.f32.mrf.mxu0
  %v2954 = vadd.f32 0.0, %v2953
  %v2955 = vpop.f32.mrf.mxu0
  %2956 = vmatprep.mubr.f32.mxu0 0.0
  %2957 = vmatmul.mubr.f32.gmra.mxu0 %v2580
  %v2958 = vpop.f32.mrf.mxu0
  %v2959 = vadd.f32 0.0, %v2958
  %v2960 = vpop.f32.mrf.mxu0
  %2961 = vdwg.mxu0
  %2962 = vmatprep.subr.mxu0 0.0
  %2963 = vmatpush1.msra.mxu0 %v297
  %2964 = vmatprep.subr.mxu0 0.0
  %2965 = vmatpush1.msra.mxu0 %v296
  %2966 = vmatprep.subr.mxu0 0.0
  %2967 = vmatpush1.msra.mxu0 %v295
  %2968 = vmatprep.subr.mxu0 0.0
  %2969 = vmatpush1.msra.mxu0 %v294
  %2970 = vmatprep.subr.mxu0 0.0
  %2971 = vmatpush1.msra.mxu0 %v293
  %2972 = vmatprep.subr.mxu0 0.0
  %2973 = vmatpush1.msra.mxu0 %v292
  %2974 = vmatprep.subr.mxu0 0.0
  %2975 = vmatpush1.msra.mxu0 %v291
  %2976 = vmatprep.subr.mxu0 0.0
  %2977 = vmatpush1.msra.mxu0 %v290
  %2978 = vmatprep.subr.mxu0 0.0
  %2979 = vmatpush1.msra.mxu0 %v289
  %2980 = vmatprep.subr.mxu0 0.0
  %2981 = vmatpush1.msra.mxu0 %v288
  %2982 = vmatprep.subr.mxu0 0.0
  %2983 = vmatpush1.msra.mxu0 %v287
  %2984 = vmatprep.subr.mxu0 0.0
  %2985 = vmatpush1.msra.mxu0 %v286
  %2986 = vmatprep.subr.mxu0 0.0
  %2987 = vmatpush1.msra.mxu0 %v285
  %2988 = vmatprep.subr.mxu0 0.0
  %2989 = vmatpush1.msra.mxu0 %v284
  %2990 = vmatprep.subr.mxu0 0.0
  %2991 = vmatpush1.msra.mxu0 %v283
  %2992 = vmatprep.subr.mxu0 0.0
  %2993 = vmatpush1.msra.mxu0 %v282
  %2994 = vmatprep.subr.mxu0 0.0
  %2995 = vmatpush2.msra.mxu0 0.0
  %2996 = vmatprep.subr.mxu0 0.0
  %2997 = vmatpush2.msra.mxu0 0.0
  %2998 = vmatprep.subr.mxu0 0.0
  %2999 = vmatpush2.msra.mxu0 0.0
  %3000 = vmatprep.subr.mxu0 0.0
  %3001 = vmatpush2.msra.mxu0 0.0
  %3002 = vmatprep.subr.mxu0 0.0
  %3003 = vmatpush2.msra.mxu0 0.0
  %3004 = vmatprep.subr.mxu0 0.0
  %3005 = vmatpush2.msra.mxu0 0.0
  %3006 = vmatprep.subr.mxu0 0.0
  %3007 = vmatpush2.msra.mxu0 0.0
  %3008 = vmatprep.subr.mxu0 0.0
  %3009 = vmatpush2.msra.mxu0 0.0
  %3010 = vmatprep.subr.mxu0 0.0
  %3011 = vmatpush2.msra.mxu0 0.0
  %3012 = vmatprep.subr.mxu0 0.0
  %3013 = vmatpush2.msra.mxu0 0.0
  %3014 = vmatprep.subr.mxu0 0.0
  %3015 = vmatpush2.msra.mxu0 0.0
  %3016 = vmatprep.subr.mxu0 0.0
  %3017 = vmatpush2.msra.mxu0 0.0
  %3018 = vmatprep.subr.mxu0 0.0
  %3019 = vmatpush2.msra.mxu0 0.0
  %3020 = vmatprep.subr.mxu0 0.0
  %3021 = vmatpush2.msra.mxu0 0.0
  %3022 = vmatprep.subr.mxu0 0.0
  %3023 = vmatpush2.msra.mxu0 0.0
  %3024 = vmatprep.subr.mxu0 0.0
  %3025 = vmatpush2.msra.mxu0 0.0
  %3026 = vmatprep.mubr.f32.mxu0 0.0
  %3027 = vmatmul.mubr.f32.gmra.mxu0 %v2581
  %v3028 = vpop.f32.mrf.mxu0
  %v3029 = vadd.f32 0.0, %v3028
  %v3030 = vpop.f32.mrf.mxu0
  %3031 = vmatprep.mubr.f32.mxu0 0.0
  %3032 = vmatmul.mubr.f32.gmra.mxu0 %v2582
  %v3033 = vpop.f32.mrf.mxu0
  %v3034 = vadd.f32 0.0, %v3033
  %v3035 = vpop.f32.mrf.mxu0
  %3036 = vdwg.mxu0
  %3037 = vmatprep.subr.mxu0 0.0
  %3038 = vmatpush1.msra.mxu0 %v313
  %3039 = vmatprep.subr.mxu0 0.0
  %3040 = vmatpush1.msra.mxu0 %v312
  %3041 = vmatprep.subr.mxu0 0.0
  %3042 = vmatpush1.msra.mxu0 %v311
  %3043 = vmatprep.subr.mxu0 0.0
  %3044 = vmatpush1.msra.mxu0 %v310
  %3045 = vmatprep.subr.mxu0 0.0
  %3046 = vmatpush1.msra.mxu0 %v309
  %3047 = vmatprep.subr.mxu0 0.0
  %3048 = vmatpush1.msra.mxu0 %v308
  %3049 = vmatprep.subr.mxu0 0.0
  %3050 = vmatpush1.msra.mxu0 %v307
  %3051 = vmatprep.subr.mxu0 0.0
  %3052 = vmatpush1.msra.mxu0 %v306
  %3053 = vmatprep.subr.mxu0 0.0
  %3054 = vmatpush1.msra.mxu0 %v305
  %3055 = vmatprep.subr.mxu0 0.0
  %3056 = vmatpush1.msra.mxu0 %v304
  %3057 = vmatprep.subr.mxu0 0.0
  %3058 = vmatpush1.msra.mxu0 %v303
  %3059 = vmatprep.subr.mxu0 0.0
  %3060 = vmatpush1.msra.mxu0 %v302
  %3061 = vmatprep.subr.mxu0 0.0
  %3062 = vmatpush1.msra.mxu0 %v301
  %3063 = vmatprep.subr.mxu0 0.0
  %3064 = vmatpush1.msra.mxu0 %v300
  %3065 = vmatprep.subr.mxu0 0.0
  %3066 = vmatpush1.msra.mxu0 %v299
  %3067 = vmatprep.subr.mxu0 0.0
  %3068 = vmatpush1.msra.mxu0 %v298
  %3069 = vmatprep.subr.mxu0 0.0
  %3070 = vmatpush2.msra.mxu0 0.0
  %3071 = vmatprep.subr.mxu0 0.0
  %3072 = vmatpush2.msra.mxu0 0.0
  %3073 = vmatprep.subr.mxu0 0.0
  %3074 = vmatpush2.msra.mxu0 0.0
  %3075 = vmatprep.subr.mxu0 0.0
  %3076 = vmatpush2.msra.mxu0 0.0
  %3077 = vmatprep.subr.mxu0 0.0
  %3078 = vmatpush2.msra.mxu0 0.0
  %3079 = vmatprep.subr.mxu0 0.0
  %3080 = vmatpush2.msra.mxu0 0.0
  %3081 = vmatprep.subr.mxu0 0.0
  %3082 = vmatpush2.msra.mxu0 0.0
  %3083 = vmatprep.subr.mxu0 0.0
  %3084 = vmatpush2.msra.mxu0 0.0
  %3085 = vmatprep.subr.mxu0 0.0
  %3086 = vmatpush2.msra.mxu0 0.0
  %3087 = vmatprep.subr.mxu0 0.0
  %3088 = vmatpush2.msra.mxu0 0.0
  %3089 = vmatprep.subr.mxu0 0.0
  %3090 = vmatpush2.msra.mxu0 0.0
  %3091 = vmatprep.subr.mxu0 0.0
  %3092 = vmatpush2.msra.mxu0 0.0
  %3093 = vmatprep.subr.mxu0 0.0
  %3094 = vmatpush2.msra.mxu0 0.0
  %3095 = vmatprep.subr.mxu0 0.0
  %3096 = vmatpush2.msra.mxu0 0.0
  %3097 = vmatprep.subr.mxu0 0.0
  %3098 = vmatpush2.msra.mxu0 0.0
  %3099 = vmatprep.subr.mxu0 0.0
  %3100 = vmatpush2.msra.mxu0 0.0
  %3101 = vmatprep.mubr.f32.mxu0 0.0
  %3102 = vmatmul.mubr.f32.gmra.mxu0 %v2583
  %v3103 = vpop.f32.mrf.mxu0
  %v3104 = vadd.f32 0.0, %v3103
  %v3105 = vpop.f32.mrf.mxu0
  %3106 = vmatprep.mubr.f32.mxu0 0.0
  %3107 = vmatmul.mubr.f32.gmra.mxu0 %v2584
  %v3108 = vpop.f32.mrf.mxu0
  %v3109 = vadd.f32 0.0, %v3108
  %v3110 = vpop.f32.mrf.mxu0
  %3111 = vdwg.mxu0
  %3112 = vmatprep.subr.mxu0 0.0
  %3113 = vmatpush1.msra.mxu0 %v329
  %3114 = vmatprep.subr.mxu0 0.0
  %3115 = vmatpush1.msra.mxu0 %v328
  %3116 = vmatprep.subr.mxu0 0.0
  %3117 = vmatpush1.msra.mxu0 %v327
  %3118 = vmatprep.subr.mxu0 0.0
  %3119 = vmatpush1.msra.mxu0 %v326
  %3120 = vmatprep.subr.mxu0 0.0
  %3121 = vmatpush1.msra.mxu0 %v325
  %3122 = vmatprep.subr.mxu0 0.0
  %3123 = vmatpush1.msra.mxu0 %v324
  %3124 = vmatprep.subr.mxu0 0.0
  %3125 = vmatpush1.msra.mxu0 %v323
  %3126 = vmatprep.subr.mxu0 0.0
  %3127 = vmatpush1.msra.mxu0 %v322
  %3128 = vmatprep.subr.mxu0 0.0
  %3129 = vmatpush1.msra.mxu0 %v321
  %3130 = vmatprep.subr.mxu0 0.0
  %3131 = vmatpush1.msra.mxu0 %v320
  %3132 = vmatprep.subr.mxu0 0.0
  %3133 = vmatpush1.msra.mxu0 %v319
  %3134 = vmatprep.subr.mxu0 0.0
  %3135 = vmatpush1.msra.mxu0 %v318
  %3136 = vmatprep.subr.mxu0 0.0
  %3137 = vmatpush1.msra.mxu0 %v317
  %3138 = vmatprep.subr.mxu0 0.0
  %3139 = vmatpush1.msra.mxu0 %v316
  %3140 = vmatprep.subr.mxu0 0.0
  %3141 = vmatpush1.msra.mxu0 %v315
  %3142 = vmatprep.subr.mxu0 0.0
  %3143 = vmatpush1.msra.mxu0 %v314
  %3144 = vmatprep.subr.mxu0 0.0
  %3145 = vmatpush2.msra.mxu0 0.0
  %3146 = vmatprep.subr.mxu0 0.0
  %3147 = vmatpush2.msra.mxu0 0.0
  %3148 = vmatprep.subr.mxu0 0.0
  %3149 = vmatpush2.msra.mxu0 0.0
  %3150 = vmatprep.subr.mxu0 0.0
  %3151 = vmatpush2.msra.mxu0 0.0
  %3152 = vmatprep.subr.mxu0 0.0
  %3153 = vmatpush2.msra.mxu0 0.0
  %3154 = vmatprep.subr.mxu0 0.0
  %3155 = vmatpush2.msra.mxu0 0.0
  %3156 = vmatprep.subr.mxu0 0.0
  %3157 = vmatpush2.msra.mxu0 0.0
  %3158 = vmatprep.subr.mxu0 0.0
  %3159 = vmatpush2.msra.mxu0 0.0
  %3160 = vmatprep.subr.mxu0 0.0
  %3161 = vmatpush2.msra.mxu0 0.0
  %3162 = vmatprep.subr.mxu0 0.0
  %3163 = vmatpush2.msra.mxu0 0.0
  %3164 = vmatprep.subr.mxu0 0.0
  %3165 = vmatpush2.msra.mxu0 0.0
  %3166 = vmatprep.subr.mxu0 0.0
  %3167 = vmatpush2.msra.mxu0 0.0
  %3168 = vmatprep.subr.mxu0 0.0
  %3169 = vmatpush2.msra.mxu0 0.0
  %3170 = vmatprep.subr.mxu0 0.0
  %3171 = vmatpush2.msra.mxu0 0.0
  %3172 = vmatprep.subr.mxu0 0.0
  %3173 = vmatpush2.msra.mxu0 0.0
  %3174 = vmatprep.subr.mxu0 0.0
  %3175 = vmatpush2.msra.mxu0 0.0
  %3176 = vmatprep.mubr.f32.mxu0 0.0
  %3177 = vmatmul.mubr.f32.gmra.mxu0 %v2585
  %v3178 = vpop.f32.mrf.mxu0
  %v3179 = vadd.f32 0.0, %v3178
  %v3180 = vpop.f32.mrf.mxu0
  %3181 = vmatprep.mubr.f32.mxu0 0.0
  %3182 = vmatmul.mubr.f32.gmra.mxu0 %v2586
  %v3183 = vpop.f32.mrf.mxu0
  %v3184 = vadd.f32 0.0, %v3183
  %v3185 = vpop.f32.mrf.mxu0
  %3186 = vdwg.mxu0
  %3187 = vst.msk [vmem:[%s3 + $0x30] sm:$0xff] %vm1092, %v2654
  %3188 = vst.msk [vmem:[%s3 + $0x38] sm:$0xff] %vm1092, %v2659
  %3189 = vst.msk [vmem:[%s3 + $0xb0] sm:$0xff] %vm1092, %v2729
  %3190 = vst.msk [vmem:[%s3 + $0xb8] sm:$0xff] %vm1092, %v2734
  %3191 = vst.msk [vmem:[%s3 + $0x130] sm:$0xff] %vm1092, %v2804
  %3192 = vst.msk [vmem:[%s3 + $0x138] sm:$0xff] %vm1092, %v2809
  %3193 = vst.msk [vmem:[%s3 + $0x1b0] sm:$0xff] %vm1092, %v2879
  %3194 = vst.msk [vmem:[%s3 + $0x1b8] sm:$0xff] %vm1092, %v2884
  %3195 = vst.msk [vmem:[%s3 + $0x230] sm:$0xff] %vm1092, %v2954
  %3196 = vst.msk [vmem:[%s3 + $0x238] sm:$0xff] %vm1092, %v2959
  %3197 = vst.msk [vmem:[%s3 + $0x2b0] sm:$0xff] %vm1092, %v3029
  %3198 = vst.msk [vmem:[%s3 + $0x2b8] sm:$0xff] %vm1092, %v3034
  %3199 = vst.msk [vmem:[%s3 + $0x330] sm:$0xff] %vm1092, %v3104
  %3200 = vst.msk [vmem:[%s3 + $0x338] sm:$0xff] %vm1092, %v3109
  %3201 = vst.msk [vmem:[%s3 + $0x3b0] sm:$0xff] %vm1092, %v3179
  %3202 = vst.msk [vmem:[%s3 + $0x3b8] sm:$0xff] %vm1092, %v3184
  %v3203 = vadd.f32 %v200, 64.0
  %v3204 = vadd.f32 %v201, 64.0
  %vm3205 = vcmp.ge.f32.partialorder %v335, %v3203
  %vm3206 = vcmp.ge.f32.partialorder %v335, %v3204
  %vm3207 = vcmp.ge.f32.partialorder %v339, %v3203
  %vm3208 = vcmp.ge.f32.partialorder %v339, %v3204
  %vm3209 = vcmp.ge.f32.partialorder %v343, %v3203
  %vm3210 = vcmp.ge.f32.partialorder %v343, %v3204
  %vm3211 = vcmp.ge.f32.partialorder %v347, %v3203
  %vm3212 = vcmp.ge.f32.partialorder %v347, %v3204
  %vm3213 = vcmp.ge.f32.partialorder %v351, %v3203
  %vm3214 = vcmp.ge.f32.partialorder %v351, %v3204
  %vm3215 = vcmp.ge.f32.partialorder %v355, %v3203
  %vm3216 = vcmp.ge.f32.partialorder %v355, %v3204
  %vm3217 = vcmp.ge.f32.partialorder %v359, %v3203
  %vm3218 = vcmp.ge.f32.partialorder %v359, %v3204
  %vm3219 = vcmp.ge.f32.partialorder %v363, %v3203
  %vm3220 = vcmp.ge.f32.partialorder %v363, %v3204
  %vm3221 = vcmp.lt.f32.partialorder %v391, %v3203
  %vm3222 = vcmp.lt.f32.partialorder %v391, %v3204
  %vm3223 = vcmp.lt.f32.partialorder %v395, %v3203
  %vm3224 = vcmp.lt.f32.partialorder %v395, %v3204
  %vm3225 = vcmp.lt.f32.partialorder %v399, %v3203
  %vm3226 = vcmp.lt.f32.partialorder %v399, %v3204
  %vm3227 = vcmp.lt.f32.partialorder %v403, %v3203
  %vm3228 = vcmp.lt.f32.partialorder %v403, %v3204
  %vm3229 = vcmp.lt.f32.partialorder %v407, %v3203
  %vm3230 = vcmp.lt.f32.partialorder %v407, %v3204
  %vm3231 = vcmp.lt.f32.partialorder %v411, %v3203
  %vm3232 = vcmp.lt.f32.partialorder %v411, %v3204
  %vm3233 = vcmp.lt.f32.partialorder %v415, %v3203
  %vm3234 = vcmp.lt.f32.partialorder %v415, %v3204
  %vm3235 = vcmp.lt.f32.partialorder %v419, %v3203
  %vm3236 = vcmp.lt.f32.partialorder %v419, %v3204
  %vm3237 = vmand %vm3205, %vm3221
  %vm3238 = vmand %vm3206, %vm3222
  %vm3239 = vmand %vm3207, %vm3223
  %vm3240 = vmand %vm3208, %vm3224
  %vm3241 = vmand %vm3209, %vm3225
  %vm3242 = vmand %vm3210, %vm3226
  %vm3243 = vmand %vm3211, %vm3227
  %vm3244 = vmand %vm3212, %vm3228
  %vm3245 = vmand %vm3213, %vm3229
  %vm3246 = vmand %vm3214, %vm3230
  %vm3247 = vmand %vm3215, %vm3231
  %vm3248 = vmand %vm3216, %vm3232
  %vm3249 = vmand %vm3217, %vm3233
  %vm3250 = vmand %vm3218, %vm3234
  %vm3251 = vmand %vm3219, %vm3235
  %vm3252 = vmand %vm3220, %vm3236
  %v3253 = vsel %vm3237, 1, 0
  %v3254 = vsel %vm3238, 1, 0
  %v3255 = vsel %vm3239, 1, 0
  %v3256 = vsel %vm3240, 1, 0
  %v3257 = vsel %vm3241, 1, 0
  %v3258 = vsel %vm3242, 1, 0
  %v3259 = vsel %vm3243, 1, 0
  %v3260 = vsel %vm3244, 1, 0
  %v3261 = vsel %vm3245, 1, 0
  %v3262 = vsel %vm3246, 1, 0
  %v3263 = vsel %vm3247, 1, 0
  %v3264 = vsel %vm3248, 1, 0
  %v3265 = vsel %vm3249, 1, 0
  %v3266 = vsel %vm3250, 1, 0
  %v3267 = vsel %vm3251, 1, 0
  %v3268 = vsel %vm3252, 1, 0
  %v3269 = vcvt.s32.f32 %v3253
  %v3270 = vcvt.s32.f32 %v3254
  %v3271 = vcvt.s32.f32 %v3255
  %v3272 = vcvt.s32.f32 %v3256
  %v3273 = vcvt.s32.f32 %v3257
  %v3274 = vcvt.s32.f32 %v3258
  %v3275 = vcvt.s32.f32 %v3259
  %v3276 = vcvt.s32.f32 %v3260
  %v3277 = vcvt.s32.f32 %v3261
  %v3278 = vcvt.s32.f32 %v3262
  %v3279 = vcvt.s32.f32 %v3263
  %v3280 = vcvt.s32.f32 %v3264
  %v3281 = vcvt.s32.f32 %v3265
  %v3282 = vcvt.s32.f32 %v3266
  %v3283 = vcvt.s32.f32 %v3267
  %v3284 = vcvt.s32.f32 %v3268
  %3285 = vmatprep.subr.mxu0 0.0
  %3286 = vmatpush1.msra.mxu0 %v217
  %3287 = vmatprep.subr.mxu0 0.0
  %3288 = vmatpush1.msra.mxu0 %v216
  %3289 = vmatprep.subr.mxu0 0.0
  %3290 = vmatpush1.msra.mxu0 %v215
  %3291 = vmatprep.subr.mxu0 0.0
  %3292 = vmatpush1.msra.mxu0 %v214
  %3293 = vmatprep.subr.mxu0 0.0
  %3294 = vmatpush1.msra.mxu0 %v213
  %3295 = vmatprep.subr.mxu0 0.0
  %3296 = vmatpush1.msra.mxu0 %v212
  %3297 = vmatprep.subr.mxu0 0.0
  %3298 = vmatpush1.msra.mxu0 %v211
  %3299 = vmatprep.subr.mxu0 0.0
  %3300 = vmatpush1.msra.mxu0 %v210
  %3301 = vmatprep.subr.mxu0 0.0
  %3302 = vmatpush1.msra.mxu0 %v209
  %3303 = vmatprep.subr.mxu0 0.0
  %3304 = vmatpush1.msra.mxu0 %v208
  %3305 = vmatprep.subr.mxu0 0.0
  %3306 = vmatpush1.msra.mxu0 %v207
  %3307 = vmatprep.subr.mxu0 0.0
  %3308 = vmatpush1.msra.mxu0 %v206
  %3309 = vmatprep.subr.mxu0 0.0
  %3310 = vmatpush1.msra.mxu0 %v205
  %3311 = vmatprep.subr.mxu0 0.0
  %3312 = vmatpush1.msra.mxu0 %v204
  %3313 = vmatprep.subr.mxu0 0.0
  %3314 = vmatpush1.msra.mxu0 %v203
  %3315 = vmatprep.subr.mxu0 0.0
  %3316 = vmatpush1.msra.mxu0 %v202
  %3317 = vmatprep.subr.mxu0 0.0
  %3318 = vmatpush2.msra.mxu0 0.0
  %3319 = vmatprep.subr.mxu0 0.0
  %3320 = vmatpush2.msra.mxu0 0.0
  %3321 = vmatprep.subr.mxu0 0.0
  %3322 = vmatpush2.msra.mxu0 0.0
  %3323 = vmatprep.subr.mxu0 0.0
  %3324 = vmatpush2.msra.mxu0 0.0
  %3325 = vmatprep.subr.mxu0 0.0
  %3326 = vmatpush2.msra.mxu0 0.0
  %3327 = vmatprep.subr.mxu0 0.0
  %3328 = vmatpush2.msra.mxu0 0.0
  %3329 = vmatprep.subr.mxu0 0.0
  %3330 = vmatpush2.msra.mxu0 0.0
  %3331 = vmatprep.subr.mxu0 0.0
  %3332 = vmatpush2.msra.mxu0 0.0
  %3333 = vmatprep.subr.mxu0 0.0
  %3334 = vmatpush2.msra.mxu0 0.0
  %3335 = vmatprep.subr.mxu0 0.0
  %3336 = vmatpush2.msra.mxu0 0.0
  %3337 = vmatprep.subr.mxu0 0.0
  %3338 = vmatpush2.msra.mxu0 0.0
  %3339 = vmatprep.subr.mxu0 0.0
  %3340 = vmatpush2.msra.mxu0 0.0
  %3341 = vmatprep.subr.mxu0 0.0
  %3342 = vmatpush2.msra.mxu0 0.0
  %3343 = vmatprep.subr.mxu0 0.0
  %3344 = vmatpush2.msra.mxu0 0.0
  %3345 = vmatprep.subr.mxu0 0.0
  %3346 = vmatpush2.msra.mxu0 0.0
  %3347 = vmatprep.subr.mxu0 0.0
  %3348 = vmatpush2.msra.mxu0 0.0
  %3349 = vmatprep.mubr.f32.mxu0 0.0
  %3350 = vmatmul.mubr.f32.gmra.mxu0 %v3269
  %v3351 = vpop.f32.mrf.mxu0
  %v3352 = vadd.f32 0.0, %v3351
  %v3353 = vpop.f32.mrf.mxu0
  %3354 = vmatprep.mubr.f32.mxu0 0.0
  %3355 = vmatmul.mubr.f32.gmra.mxu0 %v3270
  %v3356 = vpop.f32.mrf.mxu0
  %v3357 = vadd.f32 0.0, %v3356
  %v3358 = vpop.f32.mrf.mxu0
  %3359 = vdwg.mxu0
  %3360 = vmatprep.subr.mxu0 0.0
  %3361 = vmatpush1.msra.mxu0 %v233
  %3362 = vmatprep.subr.mxu0 0.0
  %3363 = vmatpush1.msra.mxu0 %v232
  %3364 = vmatprep.subr.mxu0 0.0
  %3365 = vmatpush1.msra.mxu0 %v231
  %3366 = vmatprep.subr.mxu0 0.0
  %3367 = vmatpush1.msra.mxu0 %v230
  %3368 = vmatprep.subr.mxu0 0.0
  %3369 = vmatpush1.msra.mxu0 %v229
  %3370 = vmatprep.subr.mxu0 0.0
  %3371 = vmatpush1.msra.mxu0 %v228
  %3372 = vmatprep.subr.mxu0 0.0
  %3373 = vmatpush1.msra.mxu0 %v227
  %3374 = vmatprep.subr.mxu0 0.0
  %3375 = vmatpush1.msra.mxu0 %v226
  %3376 = vmatprep.subr.mxu0 0.0
  %3377 = vmatpush1.msra.mxu0 %v225
  %3378 = vmatprep.subr.mxu0 0.0
  %3379 = vmatpush1.msra.mxu0 %v224
  %3380 = vmatprep.subr.mxu0 0.0
  %3381 = vmatpush1.msra.mxu0 %v223
  %3382 = vmatprep.subr.mxu0 0.0
  %3383 = vmatpush1.msra.mxu0 %v222
  %3384 = vmatprep.subr.mxu0 0.0
  %3385 = vmatpush1.msra.mxu0 %v221
  %3386 = vmatprep.subr.mxu0 0.0
  %3387 = vmatpush1.msra.mxu0 %v220
  %3388 = vmatprep.subr.mxu0 0.0
  %3389 = vmatpush1.msra.mxu0 %v219
  %3390 = vmatprep.subr.mxu0 0.0
  %3391 = vmatpush1.msra.mxu0 %v218
  %3392 = vmatprep.subr.mxu0 0.0
  %3393 = vmatpush2.msra.mxu0 0.0
  %3394 = vmatprep.subr.mxu0 0.0
  %3395 = vmatpush2.msra.mxu0 0.0
  %3396 = vmatprep.subr.mxu0 0.0
  %3397 = vmatpush2.msra.mxu0 0.0
  %3398 = vmatprep.subr.mxu0 0.0
  %3399 = vmatpush2.msra.mxu0 0.0
  %3400 = vmatprep.subr.mxu0 0.0
  %3401 = vmatpush2.msra.mxu0 0.0
  %3402 = vmatprep.subr.mxu0 0.0
  %3403 = vmatpush2.msra.mxu0 0.0
  %3404 = vmatprep.subr.mxu0 0.0
  %3405 = vmatpush2.msra.mxu0 0.0
  %3406 = vmatprep.subr.mxu0 0.0
  %3407 = vmatpush2.msra.mxu0 0.0
  %3408 = vmatprep.subr.mxu0 0.0
  %3409 = vmatpush2.msra.mxu0 0.0
  %3410 = vmatprep.subr.mxu0 0.0
  %3411 = vmatpush2.msra.mxu0 0.0
  %3412 = vmatprep.subr.mxu0 0.0
  %3413 = vmatpush2.msra.mxu0 0.0
  %3414 = vmatprep.subr.mxu0 0.0
  %3415 = vmatpush2.msra.mxu0 0.0
  %3416 = vmatprep.subr.mxu0 0.0
  %3417 = vmatpush2.msra.mxu0 0.0
  %3418 = vmatprep.subr.mxu0 0.0
  %3419 = vmatpush2.msra.mxu0 0.0
  %3420 = vmatprep.subr.mxu0 0.0
  %3421 = vmatpush2.msra.mxu0 0.0
  %3422 = vmatprep.subr.mxu0 0.0
  %3423 = vmatpush2.msra.mxu0 0.0
  %3424 = vmatprep.mubr.f32.mxu0 0.0
  %3425 = vmatmul.mubr.f32.gmra.mxu0 %v3271
  %v3426 = vpop.f32.mrf.mxu0
  %v3427 = vadd.f32 0.0, %v3426
  %v3428 = vpop.f32.mrf.mxu0
  %3429 = vmatprep.mubr.f32.mxu0 0.0
  %3430 = vmatmul.mubr.f32.gmra.mxu0 %v3272
  %v3431 = vpop.f32.mrf.mxu0
  %v3432 = vadd.f32 0.0, %v3431
  %v3433 = vpop.f32.mrf.mxu0
  %3434 = vdwg.mxu0
  %3435 = vmatprep.subr.mxu0 0.0
  %3436 = vmatpush1.msra.mxu0 %v249
  %3437 = vmatprep.subr.mxu0 0.0
  %3438 = vmatpush1.msra.mxu0 %v248
  %3439 = vmatprep.subr.mxu0 0.0
  %3440 = vmatpush1.msra.mxu0 %v247
  %3441 = vmatprep.subr.mxu0 0.0
  %3442 = vmatpush1.msra.mxu0 %v246
  %3443 = vmatprep.subr.mxu0 0.0
  %3444 = vmatpush1.msra.mxu0 %v245
  %3445 = vmatprep.subr.mxu0 0.0
  %3446 = vmatpush1.msra.mxu0 %v244
  %3447 = vmatprep.subr.mxu0 0.0
  %3448 = vmatpush1.msra.mxu0 %v243
  %3449 = vmatprep.subr.mxu0 0.0
  %3450 = vmatpush1.msra.mxu0 %v242
  %3451 = vmatprep.subr.mxu0 0.0
  %3452 = vmatpush1.msra.mxu0 %v241
  %3453 = vmatprep.subr.mxu0 0.0
  %3454 = vmatpush1.msra.mxu0 %v240
  %3455 = vmatprep.subr.mxu0 0.0
  %3456 = vmatpush1.msra.mxu0 %v239
  %3457 = vmatprep.subr.mxu0 0.0
  %3458 = vmatpush1.msra.mxu0 %v238
  %3459 = vmatprep.subr.mxu0 0.0
  %3460 = vmatpush1.msra.mxu0 %v237
  %3461 = vmatprep.subr.mxu0 0.0
  %3462 = vmatpush1.msra.mxu0 %v236
  %3463 = vmatprep.subr.mxu0 0.0
  %3464 = vmatpush1.msra.mxu0 %v235
  %3465 = vmatprep.subr.mxu0 0.0
  %3466 = vmatpush1.msra.mxu0 %v234
  %3467 = vmatprep.subr.mxu0 0.0
  %3468 = vmatpush2.msra.mxu0 0.0
  %3469 = vmatprep.subr.mxu0 0.0
  %3470 = vmatpush2.msra.mxu0 0.0
  %3471 = vmatprep.subr.mxu0 0.0
  %3472 = vmatpush2.msra.mxu0 0.0
  %3473 = vmatprep.subr.mxu0 0.0
  %3474 = vmatpush2.msra.mxu0 0.0
  %3475 = vmatprep.subr.mxu0 0.0
  %3476 = vmatpush2.msra.mxu0 0.0
  %3477 = vmatprep.subr.mxu0 0.0
  %3478 = vmatpush2.msra.mxu0 0.0
  %3479 = vmatprep.subr.mxu0 0.0
  %3480 = vmatpush2.msra.mxu0 0.0
  %3481 = vmatprep.subr.mxu0 0.0
  %3482 = vmatpush2.msra.mxu0 0.0
  %3483 = vmatprep.subr.mxu0 0.0
  %3484 = vmatpush2.msra.mxu0 0.0
  %3485 = vmatprep.subr.mxu0 0.0
  %3486 = vmatpush2.msra.mxu0 0.0
  %3487 = vmatprep.subr.mxu0 0.0
  %3488 = vmatpush2.msra.mxu0 0.0
  %3489 = vmatprep.subr.mxu0 0.0
  %3490 = vmatpush2.msra.mxu0 0.0
  %3491 = vmatprep.subr.mxu0 0.0
  %3492 = vmatpush2.msra.mxu0 0.0
  %3493 = vmatprep.subr.mxu0 0.0
  %3494 = vmatpush2.msra.mxu0 0.0
  %3495 = vmatprep.subr.mxu0 0.0
  %3496 = vmatpush2.msra.mxu0 0.0
  %3497 = vmatprep.subr.mxu0 0.0
  %3498 = vmatpush2.msra.mxu0 0.0
  %3499 = vmatprep.mubr.f32.mxu0 0.0
  %3500 = vmatmul.mubr.f32.gmra.mxu0 %v3273
  %v3501 = vpop.f32.mrf.mxu0
  %v3502 = vadd.f32 0.0, %v3501
  %v3503 = vpop.f32.mrf.mxu0
  %3504 = vmatprep.mubr.f32.mxu0 0.0
  %3505 = vmatmul.mubr.f32.gmra.mxu0 %v3274
  %v3506 = vpop.f32.mrf.mxu0
  %v3507 = vadd.f32 0.0, %v3506
  %v3508 = vpop.f32.mrf.mxu0
  %3509 = vdwg.mxu0
  %3510 = vmatprep.subr.mxu0 0.0
  %3511 = vmatpush1.msra.mxu0 %v265
  %3512 = vmatprep.subr.mxu0 0.0
  %3513 = vmatpush1.msra.mxu0 %v264
  %3514 = vmatprep.subr.mxu0 0.0
  %3515 = vmatpush1.msra.mxu0 %v263
  %3516 = vmatprep.subr.mxu0 0.0
  %3517 = vmatpush1.msra.mxu0 %v262
  %3518 = vmatprep.subr.mxu0 0.0
  %3519 = vmatpush1.msra.mxu0 %v261
  %3520 = vmatprep.subr.mxu0 0.0
  %3521 = vmatpush1.msra.mxu0 %v260
  %3522 = vmatprep.subr.mxu0 0.0
  %3523 = vmatpush1.msra.mxu0 %v259
  %3524 = vmatprep.subr.mxu0 0.0
  %3525 = vmatpush1.msra.mxu0 %v258
  %3526 = vmatprep.subr.mxu0 0.0
  %3527 = vmatpush1.msra.mxu0 %v257
  %3528 = vmatprep.subr.mxu0 0.0
  %3529 = vmatpush1.msra.mxu0 %v256
  %3530 = vmatprep.subr.mxu0 0.0
  %3531 = vmatpush1.msra.mxu0 %v255
  %3532 = vmatprep.subr.mxu0 0.0
  %3533 = vmatpush1.msra.mxu0 %v254
  %3534 = vmatprep.subr.mxu0 0.0
  %3535 = vmatpush1.msra.mxu0 %v253
  %3536 = vmatprep.subr.mxu0 0.0
  %3537 = vmatpush1.msra.mxu0 %v252
  %3538 = vmatprep.subr.mxu0 0.0
  %3539 = vmatpush1.msra.mxu0 %v251
  %3540 = vmatprep.subr.mxu0 0.0
  %3541 = vmatpush1.msra.mxu0 %v250
  %3542 = vmatprep.subr.mxu0 0.0
  %3543 = vmatpush2.msra.mxu0 0.0
  %3544 = vmatprep.subr.mxu0 0.0
  %3545 = vmatpush2.msra.mxu0 0.0
  %3546 = vmatprep.subr.mxu0 0.0
  %3547 = vmatpush2.msra.mxu0 0.0
  %3548 = vmatprep.subr.mxu0 0.0
  %3549 = vmatpush2.msra.mxu0 0.0
  %3550 = vmatprep.subr.mxu0 0.0
  %3551 = vmatpush2.msra.mxu0 0.0
  %3552 = vmatprep.subr.mxu0 0.0
  %3553 = vmatpush2.msra.mxu0 0.0
  %3554 = vmatprep.subr.mxu0 0.0
  %3555 = vmatpush2.msra.mxu0 0.0
  %3556 = vmatprep.subr.mxu0 0.0
  %3557 = vmatpush2.msra.mxu0 0.0
  %3558 = vmatprep.subr.mxu0 0.0
  %3559 = vmatpush2.msra.mxu0 0.0
  %3560 = vmatprep.subr.mxu0 0.0
  %3561 = vmatpush2.msra.mxu0 0.0
  %3562 = vmatprep.subr.mxu0 0.0
  %3563 = vmatpush2.msra.mxu0 0.0
  %3564 = vmatprep.subr.mxu0 0.0
  %3565 = vmatpush2.msra.mxu0 0.0
  %3566 = vmatprep.subr.mxu0 0.0
  %3567 = vmatpush2.msra.mxu0 0.0
  %3568 = vmatprep.subr.mxu0 0.0
  %3569 = vmatpush2.msra.mxu0 0.0
  %3570 = vmatprep.subr.mxu0 0.0
  %3571 = vmatpush2.msra.mxu0 0.0
  %3572 = vmatprep.subr.mxu0 0.0
  %3573 = vmatpush2.msra.mxu0 0.0
  %3574 = vmatprep.mubr.f32.mxu0 0.0
  %3575 = vmatmul.mubr.f32.gmra.mxu0 %v3275
  %v3576 = vpop.f32.mrf.mxu0
  %v3577 = vadd.f32 0.0, %v3576
  %v3578 = vpop.f32.mrf.mxu0
  %3579 = vmatprep.mubr.f32.mxu0 0.0
  %3580 = vmatmul.mubr.f32.gmra.mxu0 %v3276
  %v3581 = vpop.f32.mrf.mxu0
  %v3582 = vadd.f32 0.0, %v3581
  %v3583 = vpop.f32.mrf.mxu0
  %3584 = vdwg.mxu0
  %3585 = vmatprep.subr.mxu0 0.0
  %3586 = vmatpush1.msra.mxu0 %v281
  %3587 = vmatprep.subr.mxu0 0.0
  %3588 = vmatpush1.msra.mxu0 %v280
  %3589 = vmatprep.subr.mxu0 0.0
  %3590 = vmatpush1.msra.mxu0 %v279
  %3591 = vmatprep.subr.mxu0 0.0
  %3592 = vmatpush1.msra.mxu0 %v278
  %3593 = vmatprep.subr.mxu0 0.0
  %3594 = vmatpush1.msra.mxu0 %v277
  %3595 = vmatprep.subr.mxu0 0.0
  %3596 = vmatpush1.msra.mxu0 %v276
  %3597 = vmatprep.subr.mxu0 0.0
  %3598 = vmatpush1.msra.mxu0 %v275
  %3599 = vmatprep.subr.mxu0 0.0
  %3600 = vmatpush1.msra.mxu0 %v274
  %3601 = vmatprep.subr.mxu0 0.0
  %3602 = vmatpush1.msra.mxu0 %v273
  %3603 = vmatprep.subr.mxu0 0.0
  %3604 = vmatpush1.msra.mxu0 %v272
  %3605 = vmatprep.subr.mxu0 0.0
  %3606 = vmatpush1.msra.mxu0 %v271
  %3607 = vmatprep.subr.mxu0 0.0
  %3608 = vmatpush1.msra.mxu0 %v270
  %3609 = vmatprep.subr.mxu0 0.0
  %3610 = vmatpush1.msra.mxu0 %v269
  %3611 = vmatprep.subr.mxu0 0.0
  %3612 = vmatpush1.msra.mxu0 %v268
  %3613 = vmatprep.subr.mxu0 0.0
  %3614 = vmatpush1.msra.mxu0 %v267
  %3615 = vmatprep.subr.mxu0 0.0
  %3616 = vmatpush1.msra.mxu0 %v266
  %3617 = vmatprep.subr.mxu0 0.0
  %3618 = vmatpush2.msra.mxu0 0.0
  %3619 = vmatprep.subr.mxu0 0.0
  %3620 = vmatpush2.msra.mxu0 0.0
  %3621 = vmatprep.subr.mxu0 0.0
  %3622 = vmatpush2.msra.mxu0 0.0
  %3623 = vmatprep.subr.mxu0 0.0
  %3624 = vmatpush2.msra.mxu0 0.0
  %3625 = vmatprep.subr.mxu0 0.0
  %3626 = vmatpush2.msra.mxu0 0.0
  %3627 = vmatprep.subr.mxu0 0.0
  %3628 = vmatpush2.msra.mxu0 0.0
  %3629 = vmatprep.subr.mxu0 0.0
  %3630 = vmatpush2.msra.mxu0 0.0
  %3631 = vmatprep.subr.mxu0 0.0
  %3632 = vmatpush2.msra.mxu0 0.0
  %3633 = vmatprep.subr.mxu0 0.0
  %3634 = vmatpush2.msra.mxu0 0.0
  %3635 = vmatprep.subr.mxu0 0.0
  %3636 = vmatpush2.msra.mxu0 0.0
  %3637 = vmatprep.subr.mxu0 0.0
  %3638 = vmatpush2.msra.mxu0 0.0
  %3639 = vmatprep.subr.mxu0 0.0
  %3640 = vmatpush2.msra.mxu0 0.0
  %3641 = vmatprep.subr.mxu0 0.0
  %3642 = vmatpush2.msra.mxu0 0.0
  %3643 = vmatprep.subr.mxu0 0.0
  %3644 = vmatpush2.msra.mxu0 0.0
  %3645 = vmatprep.subr.mxu0 0.0
  %3646 = vmatpush2.msra.mxu0 0.0
  %3647 = vmatprep.subr.mxu0 0.0
  %3648 = vmatpush2.msra.mxu0 0.0
  %3649 = vmatprep.mubr.f32.mxu0 0.0
  %3650 = vmatmul.mubr.f32.gmra.mxu0 %v3277
  %v3651 = vpop.f32.mrf.mxu0
  %v3652 = vadd.f32 0.0, %v3651
  %v3653 = vpop.f32.mrf.mxu0
  %3654 = vmatprep.mubr.f32.mxu0 0.0
  %3655 = vmatmul.mubr.f32.gmra.mxu0 %v3278
  %v3656 = vpop.f32.mrf.mxu0
  %v3657 = vadd.f32 0.0, %v3656
  %v3658 = vpop.f32.mrf.mxu0
  %3659 = vdwg.mxu0
  %3660 = vmatprep.subr.mxu0 0.0
  %3661 = vmatpush1.msra.mxu0 %v297
  %3662 = vmatprep.subr.mxu0 0.0
  %3663 = vmatpush1.msra.mxu0 %v296
  %3664 = vmatprep.subr.mxu0 0.0
  %3665 = vmatpush1.msra.mxu0 %v295
  %3666 = vmatprep.subr.mxu0 0.0
  %3667 = vmatpush1.msra.mxu0 %v294
  %3668 = vmatprep.subr.mxu0 0.0
  %3669 = vmatpush1.msra.mxu0 %v293
  %3670 = vmatprep.subr.mxu0 0.0
  %3671 = vmatpush1.msra.mxu0 %v292
  %3672 = vmatprep.subr.mxu0 0.0
  %3673 = vmatpush1.msra.mxu0 %v291
  %3674 = vmatprep.subr.mxu0 0.0
  %3675 = vmatpush1.msra.mxu0 %v290
  %3676 = vmatprep.subr.mxu0 0.0
  %3677 = vmatpush1.msra.mxu0 %v289
  %3678 = vmatprep.subr.mxu0 0.0
  %3679 = vmatpush1.msra.mxu0 %v288
  %3680 = vmatprep.subr.mxu0 0.0
  %3681 = vmatpush1.msra.mxu0 %v287
  %3682 = vmatprep.subr.mxu0 0.0
  %3683 = vmatpush1.msra.mxu0 %v286
  %3684 = vmatprep.subr.mxu0 0.0
  %3685 = vmatpush1.msra.mxu0 %v285
  %3686 = vmatprep.subr.mxu0 0.0
  %3687 = vmatpush1.msra.mxu0 %v284
  %3688 = vmatprep.subr.mxu0 0.0
  %3689 = vmatpush1.msra.mxu0 %v283
  %3690 = vmatprep.subr.mxu0 0.0
  %3691 = vmatpush1.msra.mxu0 %v282
  %3692 = vmatprep.subr.mxu0 0.0
  %3693 = vmatpush2.msra.mxu0 0.0
  %3694 = vmatprep.subr.mxu0 0.0
  %3695 = vmatpush2.msra.mxu0 0.0
  %3696 = vmatprep.subr.mxu0 0.0
  %3697 = vmatpush2.msra.mxu0 0.0
  %3698 = vmatprep.subr.mxu0 0.0
  %3699 = vmatpush2.msra.mxu0 0.0
  %3700 = vmatprep.subr.mxu0 0.0
  %3701 = vmatpush2.msra.mxu0 0.0
  %3702 = vmatprep.subr.mxu0 0.0
  %3703 = vmatpush2.msra.mxu0 0.0
  %3704 = vmatprep.subr.mxu0 0.0
  %3705 = vmatpush2.msra.mxu0 0.0
  %3706 = vmatprep.subr.mxu0 0.0
  %3707 = vmatpush2.msra.mxu0 0.0
  %3708 = vmatprep.subr.mxu0 0.0
  %3709 = vmatpush2.msra.mxu0 0.0
  %3710 = vmatprep.subr.mxu0 0.0
  %3711 = vmatpush2.msra.mxu0 0.0
  %3712 = vmatprep.subr.mxu0 0.0
  %3713 = vmatpush2.msra.mxu0 0.0
  %3714 = vmatprep.subr.mxu0 0.0
  %3715 = vmatpush2.msra.mxu0 0.0
  %3716 = vmatprep.subr.mxu0 0.0
  %3717 = vmatpush2.msra.mxu0 0.0
  %3718 = vmatprep.subr.mxu0 0.0
  %3719 = vmatpush2.msra.mxu0 0.0
  %3720 = vmatprep.subr.mxu0 0.0
  %3721 = vmatpush2.msra.mxu0 0.0
  %3722 = vmatprep.subr.mxu0 0.0
  %3723 = vmatpush2.msra.mxu0 0.0
  %3724 = vmatprep.mubr.f32.mxu0 0.0
  %3725 = vmatmul.mubr.f32.gmra.mxu0 %v3279
  %v3726 = vpop.f32.mrf.mxu0
  %v3727 = vadd.f32 0.0, %v3726
  %v3728 = vpop.f32.mrf.mxu0
  %3729 = vmatprep.mubr.f32.mxu0 0.0
  %3730 = vmatmul.mubr.f32.gmra.mxu0 %v3280
  %v3731 = vpop.f32.mrf.mxu0
  %v3732 = vadd.f32 0.0, %v3731
  %v3733 = vpop.f32.mrf.mxu0
  %3734 = vdwg.mxu0
  %3735 = vmatprep.subr.mxu0 0.0
  %3736 = vmatpush1.msra.mxu0 %v313
  %3737 = vmatprep.subr.mxu0 0.0
  %3738 = vmatpush1.msra.mxu0 %v312
  %3739 = vmatprep.subr.mxu0 0.0
  %3740 = vmatpush1.msra.mxu0 %v311
  %3741 = vmatprep.subr.mxu0 0.0
  %3742 = vmatpush1.msra.mxu0 %v310
  %3743 = vmatprep.subr.mxu0 0.0
  %3744 = vmatpush1.msra.mxu0 %v309
  %3745 = vmatprep.subr.mxu0 0.0
  %3746 = vmatpush1.msra.mxu0 %v308
  %3747 = vmatprep.subr.mxu0 0.0
  %3748 = vmatpush1.msra.mxu0 %v307
  %3749 = vmatprep.subr.mxu0 0.0
  %3750 = vmatpush1.msra.mxu0 %v306
  %3751 = vmatprep.subr.mxu0 0.0
  %3752 = vmatpush1.msra.mxu0 %v305
  %3753 = vmatprep.subr.mxu0 0.0
  %3754 = vmatpush1.msra.mxu0 %v304
  %3755 = vmatprep.subr.mxu0 0.0
  %3756 = vmatpush1.msra.mxu0 %v303
  %3757 = vmatprep.subr.mxu0 0.0
  %3758 = vmatpush1.msra.mxu0 %v302
  %3759 = vmatprep.subr.mxu0 0.0
  %3760 = vmatpush1.msra.mxu0 %v301
  %3761 = vmatprep.subr.mxu0 0.0
  %3762 = vmatpush1.msra.mxu0 %v300
  %3763 = vmatprep.subr.mxu0 0.0
  %3764 = vmatpush1.msra.mxu0 %v299
  %3765 = vmatprep.subr.mxu0 0.0
  %3766 = vmatpush1.msra.mxu0 %v298
  %3767 = vmatprep.subr.mxu0 0.0
  %3768 = vmatpush2.msra.mxu0 0.0
  %3769 = vmatprep.subr.mxu0 0.0
  %3770 = vmatpush2.msra.mxu0 0.0
  %3771 = vmatprep.subr.mxu0 0.0
  %3772 = vmatpush2.msra.mxu0 0.0
  %3773 = vmatprep.subr.mxu0 0.0
  %3774 = vmatpush2.msra.mxu0 0.0
  %3775 = vmatprep.subr.mxu0 0.0
  %3776 = vmatpush2.msra.mxu0 0.0
  %3777 = vmatprep.subr.mxu0 0.0
  %3778 = vmatpush2.msra.mxu0 0.0
  %3779 = vmatprep.subr.mxu0 0.0
  %3780 = vmatpush2.msra.mxu0 0.0
  %3781 = vmatprep.subr.mxu0 0.0
  %3782 = vmatpush2.msra.mxu0 0.0
  %3783 = vmatprep.subr.mxu0 0.0
  %3784 = vmatpush2.msra.mxu0 0.0
  %3785 = vmatprep.subr.mxu0 0.0
  %3786 = vmatpush2.msra.mxu0 0.0
  %3787 = vmatprep.subr.mxu0 0.0
  %3788 = vmatpush2.msra.mxu0 0.0
  %3789 = vmatprep.subr.mxu0 0.0
  %3790 = vmatpush2.msra.mxu0 0.0
  %3791 = vmatprep.subr.mxu0 0.0
  %3792 = vmatpush2.msra.mxu0 0.0
  %3793 = vmatprep.subr.mxu0 0.0
  %3794 = vmatpush2.msra.mxu0 0.0
  %3795 = vmatprep.subr.mxu0 0.0
  %3796 = vmatpush2.msra.mxu0 0.0
  %3797 = vmatprep.subr.mxu0 0.0
  %3798 = vmatpush2.msra.mxu0 0.0
  %3799 = vmatprep.mubr.f32.mxu0 0.0
  %3800 = vmatmul.mubr.f32.gmra.mxu0 %v3281
  %v3801 = vpop.f32.mrf.mxu0
  %v3802 = vadd.f32 0.0, %v3801
  %v3803 = vpop.f32.mrf.mxu0
  %3804 = vmatprep.mubr.f32.mxu0 0.0
  %3805 = vmatmul.mubr.f32.gmra.mxu0 %v3282
  %v3806 = vpop.f32.mrf.mxu0
  %v3807 = vadd.f32 0.0, %v3806
  %v3808 = vpop.f32.mrf.mxu0
  %3809 = vdwg.mxu0
  %3810 = vmatprep.subr.mxu0 0.0
  %3811 = vmatpush1.msra.mxu0 %v329
  %3812 = vmatprep.subr.mxu0 0.0
  %3813 = vmatpush1.msra.mxu0 %v328
  %3814 = vmatprep.subr.mxu0 0.0
  %3815 = vmatpush1.msra.mxu0 %v327
  %3816 = vmatprep.subr.mxu0 0.0
  %3817 = vmatpush1.msra.mxu0 %v326
  %3818 = vmatprep.subr.mxu0 0.0
  %3819 = vmatpush1.msra.mxu0 %v325
  %3820 = vmatprep.subr.mxu0 0.0
  %3821 = vmatpush1.msra.mxu0 %v324
  %3822 = vmatprep.subr.mxu0 0.0
  %3823 = vmatpush1.msra.mxu0 %v323
  %3824 = vmatprep.subr.mxu0 0.0
  %3825 = vmatpush1.msra.mxu0 %v322
  %3826 = vmatprep.subr.mxu0 0.0
  %3827 = vmatpush1.msra.mxu0 %v321
  %3828 = vmatprep.subr.mxu0 0.0
  %3829 = vmatpush1.msra.mxu0 %v320
  %3830 = vmatprep.subr.mxu0 0.0
  %3831 = vmatpush1.msra.mxu0 %v319
  %3832 = vmatprep.subr.mxu0 0.0
  %3833 = vmatpush1.msra.mxu0 %v318
  %3834 = vmatprep.subr.mxu0 0.0
  %3835 = vmatpush1.msra.mxu0 %v317
  %3836 = vmatprep.subr.mxu0 0.0
  %3837 = vmatpush1.msra.mxu0 %v316
  %3838 = vmatprep.subr.mxu0 0.0
  %3839 = vmatpush1.msra.mxu0 %v315
  %3840 = vmatprep.subr.mxu0 0.0
  %3841 = vmatpush1.msra.mxu0 %v314
  %3842 = vmatprep.subr.mxu0 0.0
  %3843 = vmatpush2.msra.mxu0 0.0
  %3844 = vmatprep.subr.mxu0 0.0
  %3845 = vmatpush2.msra.mxu0 0.0
  %3846 = vmatprep.subr.mxu0 0.0
  %3847 = vmatpush2.msra.mxu0 0.0
  %3848 = vmatprep.subr.mxu0 0.0
  %3849 = vmatpush2.msra.mxu0 0.0
  %3850 = vmatprep.subr.mxu0 0.0
  %3851 = vmatpush2.msra.mxu0 0.0
  %3852 = vmatprep.subr.mxu0 0.0
  %3853 = vmatpush2.msra.mxu0 0.0
  %3854 = vmatprep.subr.mxu0 0.0
  %3855 = vmatpush2.msra.mxu0 0.0
  %3856 = vmatprep.subr.mxu0 0.0
  %3857 = vmatpush2.msra.mxu0 0.0
  %3858 = vmatprep.subr.mxu0 0.0
  %3859 = vmatpush2.msra.mxu0 0.0
  %3860 = vmatprep.subr.mxu0 0.0
  %3861 = vmatpush2.msra.mxu0 0.0
  %3862 = vmatprep.subr.mxu0 0.0
  %3863 = vmatpush2.msra.mxu0 0.0
  %3864 = vmatprep.subr.mxu0 0.0
  %3865 = vmatpush2.msra.mxu0 0.0
  %3866 = vmatprep.subr.mxu0 0.0
  %3867 = vmatpush2.msra.mxu0 0.0
  %3868 = vmatprep.subr.mxu0 0.0
  %3869 = vmatpush2.msra.mxu0 0.0
  %3870 = vmatprep.subr.mxu0 0.0
  %3871 = vmatpush2.msra.mxu0 0.0
  %3872 = vmatprep.subr.mxu0 0.0
  %3873 = vmatpush2.msra.mxu0 0.0
  %3874 = vmatprep.mubr.f32.mxu0 0.0
  %3875 = vmatmul.mubr.f32.gmra.mxu0 %v3283
  %v3876 = vpop.f32.mrf.mxu0
  %v3877 = vadd.f32 0.0, %v3876
  %v3878 = vpop.f32.mrf.mxu0
  %3879 = vmatprep.mubr.f32.mxu0 0.0
  %3880 = vmatmul.mubr.f32.gmra.mxu0 %v3284
  %v3881 = vpop.f32.mrf.mxu0
  %v3882 = vadd.f32 0.0, %v3881
  %v3883 = vpop.f32.mrf.mxu0
  %3884 = vdwg.mxu0
  %3885 = vst.msk [vmem:[%s3 + $0x40] sm:$0xff] %vm1092, %v3352
  %3886 = vst.msk [vmem:[%s3 + $0x48] sm:$0xff] %vm1092, %v3357
  %3887 = vst.msk [vmem:[%s3 + $0xc0] sm:$0xff] %vm1092, %v3427
  %3888 = vst.msk [vmem:[%s3 + $0xc8] sm:$0xff] %vm1092, %v3432
  %3889 = vst.msk [vmem:[%s3 + $0x140] sm:$0xff] %vm1092, %v3502
  %3890 = vst.msk [vmem:[%s3 + $0x148] sm:$0xff] %vm1092, %v3507
  %3891 = vst.msk [vmem:[%s3 + $0x1c0] sm:$0xff] %vm1092, %v3577
  %3892 = vst.msk [vmem:[%s3 + $0x1c8] sm:$0xff] %vm1092, %v3582
  %3893 = vst.msk [vmem:[%s3 + $0x240] sm:$0xff] %vm1092, %v3652
  %3894 = vst.msk [vmem:[%s3 + $0x248] sm:$0xff] %vm1092, %v3657
  %3895 = vst.msk [vmem:[%s3 + $0x2c0] sm:$0xff] %vm1092, %v3727
  %3896 = vst.msk [vmem:[%s3 + $0x2c8] sm:$0xff] %vm1092, %v3732
  %3897 = vst.msk [vmem:[%s3 + $0x340] sm:$0xff] %vm1092, %v3802
  %3898 = vst.msk [vmem:[%s3 + $0x348] sm:$0xff] %vm1092, %v3807
  %3899 = vst.msk [vmem:[%s3 + $0x3c0] sm:$0xff] %vm1092, %v3877
  %3900 = vst.msk [vmem:[%s3 + $0x3c8] sm:$0xff] %vm1092, %v3882
  %v3901 = vadd.f32 %v200, 80.0
  %v3902 = vadd.f32 %v201, 80.0
  %vm3903 = vcmp.ge.f32.partialorder %v335, %v3901
  %vm3904 = vcmp.ge.f32.partialorder %v335, %v3902
  %vm3905 = vcmp.ge.f32.partialorder %v339, %v3901
  %vm3906 = vcmp.ge.f32.partialorder %v339, %v3902
  %vm3907 = vcmp.ge.f32.partialorder %v343, %v3901
  %vm3908 = vcmp.ge.f32.partialorder %v343, %v3902
  %vm3909 = vcmp.ge.f32.partialorder %v347, %v3901
  %vm3910 = vcmp.ge.f32.partialorder %v347, %v3902
  %vm3911 = vcmp.ge.f32.partialorder %v351, %v3901
  %vm3912 = vcmp.ge.f32.partialorder %v351, %v3902
  %vm3913 = vcmp.ge.f32.partialorder %v355, %v3901
  %vm3914 = vcmp.ge.f32.partialorder %v355, %v3902
  %vm3915 = vcmp.ge.f32.partialorder %v359, %v3901
  %vm3916 = vcmp.ge.f32.partialorder %v359, %v3902
  %vm3917 = vcmp.ge.f32.partialorder %v363, %v3901
  %vm3918 = vcmp.ge.f32.partialorder %v363, %v3902
  %vm3919 = vcmp.lt.f32.partialorder %v391, %v3901
  %vm3920 = vcmp.lt.f32.partialorder %v391, %v3902
  %vm3921 = vcmp.lt.f32.partialorder %v395, %v3901
  %vm3922 = vcmp.lt.f32.partialorder %v395, %v3902
  %vm3923 = vcmp.lt.f32.partialorder %v399, %v3901
  %vm3924 = vcmp.lt.f32.partialorder %v399, %v3902
  %vm3925 = vcmp.lt.f32.partialorder %v403, %v3901
  %vm3926 = vcmp.lt.f32.partialorder %v403, %v3902
  %vm3927 = vcmp.lt.f32.partialorder %v407, %v3901
  %vm3928 = vcmp.lt.f32.partialorder %v407, %v3902
  %vm3929 = vcmp.lt.f32.partialorder %v411, %v3901
  %vm3930 = vcmp.lt.f32.partialorder %v411, %v3902
  %vm3931 = vcmp.lt.f32.partialorder %v415, %v3901
  %vm3932 = vcmp.lt.f32.partialorder %v415, %v3902
  %vm3933 = vcmp.lt.f32.partialorder %v419, %v3901
  %vm3934 = vcmp.lt.f32.partialorder %v419, %v3902
  %vm3935 = vmand %vm3903, %vm3919
  %vm3936 = vmand %vm3904, %vm3920
  %vm3937 = vmand %vm3905, %vm3921
  %vm3938 = vmand %vm3906, %vm3922
  %vm3939 = vmand %vm3907, %vm3923
  %vm3940 = vmand %vm3908, %vm3924
  %vm3941 = vmand %vm3909, %vm3925
  %vm3942 = vmand %vm3910, %vm3926
  %vm3943 = vmand %vm3911, %vm3927
  %vm3944 = vmand %vm3912, %vm3928
  %vm3945 = vmand %vm3913, %vm3929
  %vm3946 = vmand %vm3914, %vm3930
  %vm3947 = vmand %vm3915, %vm3931
  %vm3948 = vmand %vm3916, %vm3932
  %vm3949 = vmand %vm3917, %vm3933
  %vm3950 = vmand %vm3918, %vm3934
  %v3951 = vsel %vm3935, 1, 0
  %v3952 = vsel %vm3936, 1, 0
  %v3953 = vsel %vm3937, 1, 0
  %v3954 = vsel %vm3938, 1, 0
  %v3955 = vsel %vm3939, 1, 0
  %v3956 = vsel %vm3940, 1, 0
  %v3957 = vsel %vm3941, 1, 0
  %v3958 = vsel %vm3942, 1, 0
  %v3959 = vsel %vm3943, 1, 0
  %v3960 = vsel %vm3944, 1, 0
  %v3961 = vsel %vm3945, 1, 0
  %v3962 = vsel %vm3946, 1, 0
  %v3963 = vsel %vm3947, 1, 0
  %v3964 = vsel %vm3948, 1, 0
  %v3965 = vsel %vm3949, 1, 0
  %v3966 = vsel %vm3950, 1, 0
  %v3967 = vcvt.s32.f32 %v3951
  %v3968 = vcvt.s32.f32 %v3952
  %v3969 = vcvt.s32.f32 %v3953
  %v3970 = vcvt.s32.f32 %v3954
  %v3971 = vcvt.s32.f32 %v3955
  %v3972 = vcvt.s32.f32 %v3956
  %v3973 = vcvt.s32.f32 %v3957
  %v3974 = vcvt.s32.f32 %v3958
  %v3975 = vcvt.s32.f32 %v3959
  %v3976 = vcvt.s32.f32 %v3960
  %v3977 = vcvt.s32.f32 %v3961
  %v3978 = vcvt.s32.f32 %v3962
  %v3979 = vcvt.s32.f32 %v3963
  %v3980 = vcvt.s32.f32 %v3964
  %v3981 = vcvt.s32.f32 %v3965
  %v3982 = vcvt.s32.f32 %v3966
  %3983 = vmatprep.subr.mxu0 0.0
  %3984 = vmatpush1.msra.mxu0 %v217
  %3985 = vmatprep.subr.mxu0 0.0
  %3986 = vmatpush1.msra.mxu0 %v216
  %3987 = vmatprep.subr.mxu0 0.0
  %3988 = vmatpush1.msra.mxu0 %v215
  %3989 = vmatprep.subr.mxu0 0.0
  %3990 = vmatpush1.msra.mxu0 %v214
  %3991 = vmatprep.subr.mxu0 0.0
  %3992 = vmatpush1.msra.mxu0 %v213
  %3993 = vmatprep.subr.mxu0 0.0
  %3994 = vmatpush1.msra.mxu0 %v212
  %3995 = vmatprep.subr.mxu0 0.0
  %3996 = vmatpush1.msra.mxu0 %v211
  %3997 = vmatprep.subr.mxu0 0.0
  %3998 = vmatpush1.msra.mxu0 %v210
  %3999 = vmatprep.subr.mxu0 0.0
  %4000 = vmatpush1.msra.mxu0 %v209
  %4001 = vmatprep.subr.mxu0 0.0
  %4002 = vmatpush1.msra.mxu0 %v208
  %4003 = vmatprep.subr.mxu0 0.0
  %4004 = vmatpush1.msra.mxu0 %v207
  %4005 = vmatprep.subr.mxu0 0.0
  %4006 = vmatpush1.msra.mxu0 %v206
  %4007 = vmatprep.subr.mxu0 0.0
  %4008 = vmatpush1.msra.mxu0 %v205
  %4009 = vmatprep.subr.mxu0 0.0
  %4010 = vmatpush1.msra.mxu0 %v204
  %4011 = vmatprep.subr.mxu0 0.0
  %4012 = vmatpush1.msra.mxu0 %v203
  %4013 = vmatprep.subr.mxu0 0.0
  %4014 = vmatpush1.msra.mxu0 %v202
  %4015 = vmatprep.subr.mxu0 0.0
  %4016 = vmatpush2.msra.mxu0 0.0
  %4017 = vmatprep.subr.mxu0 0.0
  %4018 = vmatpush2.msra.mxu0 0.0
  %4019 = vmatprep.subr.mxu0 0.0
  %4020 = vmatpush2.msra.mxu0 0.0
  %4021 = vmatprep.subr.mxu0 0.0
  %4022 = vmatpush2.msra.mxu0 0.0
  %4023 = vmatprep.subr.mxu0 0.0
  %4024 = vmatpush2.msra.mxu0 0.0
  %4025 = vmatprep.subr.mxu0 0.0
  %4026 = vmatpush2.msra.mxu0 0.0
  %4027 = vmatprep.subr.mxu0 0.0
  %4028 = vmatpush2.msra.mxu0 0.0
  %4029 = vmatprep.subr.mxu0 0.0
  %4030 = vmatpush2.msra.mxu0 0.0
  %4031 = vmatprep.subr.mxu0 0.0
  %4032 = vmatpush2.msra.mxu0 0.0
  %4033 = vmatprep.subr.mxu0 0.0
  %4034 = vmatpush2.msra.mxu0 0.0
  %4035 = vmatprep.subr.mxu0 0.0
  %4036 = vmatpush2.msra.mxu0 0.0
  %4037 = vmatprep.subr.mxu0 0.0
  %4038 = vmatpush2.msra.mxu0 0.0
  %4039 = vmatprep.subr.mxu0 0.0
  %4040 = vmatpush2.msra.mxu0 0.0
  %4041 = vmatprep.subr.mxu0 0.0
  %4042 = vmatpush2.msra.mxu0 0.0
  %4043 = vmatprep.subr.mxu0 0.0
  %4044 = vmatpush2.msra.mxu0 0.0
  %4045 = vmatprep.subr.mxu0 0.0
  %4046 = vmatpush2.msra.mxu0 0.0
  %4047 = vmatprep.mubr.f32.mxu0 0.0
  %4048 = vmatmul.mubr.f32.gmra.mxu0 %v3967
  %v4049 = vpop.f32.mrf.mxu0
  %v4050 = vadd.f32 0.0, %v4049
  %v4051 = vpop.f32.mrf.mxu0
  %4052 = vmatprep.mubr.f32.mxu0 0.0
  %4053 = vmatmul.mubr.f32.gmra.mxu0 %v3968
  %v4054 = vpop.f32.mrf.mxu0
  %v4055 = vadd.f32 0.0, %v4054
  %v4056 = vpop.f32.mrf.mxu0
  %4057 = vdwg.mxu0
  %4058 = vmatprep.subr.mxu0 0.0
  %4059 = vmatpush1.msra.mxu0 %v233
  %4060 = vmatprep.subr.mxu0 0.0
  %4061 = vmatpush1.msra.mxu0 %v232
  %4062 = vmatprep.subr.mxu0 0.0
  %4063 = vmatpush1.msra.mxu0 %v231
  %4064 = vmatprep.subr.mxu0 0.0
  %4065 = vmatpush1.msra.mxu0 %v230
  %4066 = vmatprep.subr.mxu0 0.0
  %4067 = vmatpush1.msra.mxu0 %v229
  %4068 = vmatprep.subr.mxu0 0.0
  %4069 = vmatpush1.msra.mxu0 %v228
  %4070 = vmatprep.subr.mxu0 0.0
  %4071 = vmatpush1.msra.mxu0 %v227
  %4072 = vmatprep.subr.mxu0 0.0
  %4073 = vmatpush1.msra.mxu0 %v226
  %4074 = vmatprep.subr.mxu0 0.0
  %4075 = vmatpush1.msra.mxu0 %v225
  %4076 = vmatprep.subr.mxu0 0.0
  %4077 = vmatpush1.msra.mxu0 %v224
  %4078 = vmatprep.subr.mxu0 0.0
  %4079 = vmatpush1.msra.mxu0 %v223
  %4080 = vmatprep.subr.mxu0 0.0
  %4081 = vmatpush1.msra.mxu0 %v222
  %4082 = vmatprep.subr.mxu0 0.0
  %4083 = vmatpush1.msra.mxu0 %v221
  %4084 = vmatprep.subr.mxu0 0.0
  %4085 = vmatpush1.msra.mxu0 %v220
  %4086 = vmatprep.subr.mxu0 0.0
  %4087 = vmatpush1.msra.mxu0 %v219
  %4088 = vmatprep.subr.mxu0 0.0
  %4089 = vmatpush1.msra.mxu0 %v218
  %4090 = vmatprep.subr.mxu0 0.0
  %4091 = vmatpush2.msra.mxu0 0.0
  %4092 = vmatprep.subr.mxu0 0.0
  %4093 = vmatpush2.msra.mxu0 0.0
  %4094 = vmatprep.subr.mxu0 0.0
  %4095 = vmatpush2.msra.mxu0 0.0
  %4096 = vmatprep.subr.mxu0 0.0
  %4097 = vmatpush2.msra.mxu0 0.0
  %4098 = vmatprep.subr.mxu0 0.0
  %4099 = vmatpush2.msra.mxu0 0.0
  %4100 = vmatprep.subr.mxu0 0.0
  %4101 = vmatpush2.msra.mxu0 0.0
  %4102 = vmatprep.subr.mxu0 0.0
  %4103 = vmatpush2.msra.mxu0 0.0
  %4104 = vmatprep.subr.mxu0 0.0
  %4105 = vmatpush2.msra.mxu0 0.0
  %4106 = vmatprep.subr.mxu0 0.0
  %4107 = vmatpush2.msra.mxu0 0.0
  %4108 = vmatprep.subr.mxu0 0.0
  %4109 = vmatpush2.msra.mxu0 0.0
  %4110 = vmatprep.subr.mxu0 0.0
  %4111 = vmatpush2.msra.mxu0 0.0
  %4112 = vmatprep.subr.mxu0 0.0
  %4113 = vmatpush2.msra.mxu0 0.0
  %4114 = vmatprep.subr.mxu0 0.0
  %4115 = vmatpush2.msra.mxu0 0.0
  %4116 = vmatprep.subr.mxu0 0.0
  %4117 = vmatpush2.msra.mxu0 0.0
  %4118 = vmatprep.subr.mxu0 0.0
  %4119 = vmatpush2.msra.mxu0 0.0
  %4120 = vmatprep.subr.mxu0 0.0
  %4121 = vmatpush2.msra.mxu0 0.0
  %4122 = vmatprep.mubr.f32.mxu0 0.0
  %4123 = vmatmul.mubr.f32.gmra.mxu0 %v3969
  %v4124 = vpop.f32.mrf.mxu0
  %v4125 = vadd.f32 0.0, %v4124
  %v4126 = vpop.f32.mrf.mxu0
  %4127 = vmatprep.mubr.f32.mxu0 0.0
  %4128 = vmatmul.mubr.f32.gmra.mxu0 %v3970
  %v4129 = vpop.f32.mrf.mxu0
  %v4130 = vadd.f32 0.0, %v4129
  %v4131 = vpop.f32.mrf.mxu0
  %4132 = vdwg.mxu0
  %4133 = vmatprep.subr.mxu0 0.0
  %4134 = vmatpush1.msra.mxu0 %v249
  %4135 = vmatprep.subr.mxu0 0.0
  %4136 = vmatpush1.msra.mxu0 %v248
  %4137 = vmatprep.subr.mxu0 0.0
  %4138 = vmatpush1.msra.mxu0 %v247
  %4139 = vmatprep.subr.mxu0 0.0
  %4140 = vmatpush1.msra.mxu0 %v246
  %4141 = vmatprep.subr.mxu0 0.0
  %4142 = vmatpush1.msra.mxu0 %v245
  %4143 = vmatprep.subr.mxu0 0.0
  %4144 = vmatpush1.msra.mxu0 %v244
  %4145 = vmatprep.subr.mxu0 0.0
  %4146 = vmatpush1.msra.mxu0 %v243
  %4147 = vmatprep.subr.mxu0 0.0
  %4148 = vmatpush1.msra.mxu0 %v242
  %4149 = vmatprep.subr.mxu0 0.0
  %4150 = vmatpush1.msra.mxu0 %v241
  %4151 = vmatprep.subr.mxu0 0.0
  %4152 = vmatpush1.msra.mxu0 %v240
  %4153 = vmatprep.subr.mxu0 0.0
  %4154 = vmatpush1.msra.mxu0 %v239
  %4155 = vmatprep.subr.mxu0 0.0
  %4156 = vmatpush1.msra.mxu0 %v238
  %4157 = vmatprep.subr.mxu0 0.0
  %4158 = vmatpush1.msra.mxu0 %v237
  %4159 = vmatprep.subr.mxu0 0.0
  %4160 = vmatpush1.msra.mxu0 %v236
  %4161 = vmatprep.subr.mxu0 0.0
  %4162 = vmatpush1.msra.mxu0 %v235
  %4163 = vmatprep.subr.mxu0 0.0
  %4164 = vmatpush1.msra.mxu0 %v234
  %4165 = vmatprep.subr.mxu0 0.0
  %4166 = vmatpush2.msra.mxu0 0.0
  %4167 = vmatprep.subr.mxu0 0.0
  %4168 = vmatpush2.msra.mxu0 0.0
  %4169 = vmatprep.subr.mxu0 0.0
  %4170 = vmatpush2.msra.mxu0 0.0
  %4171 = vmatprep.subr.mxu0 0.0
  %4172 = vmatpush2.msra.mxu0 0.0
  %4173 = vmatprep.subr.mxu0 0.0
  %4174 = vmatpush2.msra.mxu0 0.0
  %4175 = vmatprep.subr.mxu0 0.0
  %4176 = vmatpush2.msra.mxu0 0.0
  %4177 = vmatprep.subr.mxu0 0.0
  %4178 = vmatpush2.msra.mxu0 0.0
  %4179 = vmatprep.subr.mxu0 0.0
  %4180 = vmatpush2.msra.mxu0 0.0
  %4181 = vmatprep.subr.mxu0 0.0
  %4182 = vmatpush2.msra.mxu0 0.0
  %4183 = vmatprep.subr.mxu0 0.0
  %4184 = vmatpush2.msra.mxu0 0.0
  %4185 = vmatprep.subr.mxu0 0.0
  %4186 = vmatpush2.msra.mxu0 0.0
  %4187 = vmatprep.subr.mxu0 0.0
  %4188 = vmatpush2.msra.mxu0 0.0
  %4189 = vmatprep.subr.mxu0 0.0
  %4190 = vmatpush2.msra.mxu0 0.0
  %4191 = vmatprep.subr.mxu0 0.0
  %4192 = vmatpush2.msra.mxu0 0.0
  %4193 = vmatprep.subr.mxu0 0.0
  %4194 = vmatpush2.msra.mxu0 0.0
  %4195 = vmatprep.subr.mxu0 0.0
  %4196 = vmatpush2.msra.mxu0 0.0
  %4197 = vmatprep.mubr.f32.mxu0 0.0
  %4198 = vmatmul.mubr.f32.gmra.mxu0 %v3971
  %v4199 = vpop.f32.mrf.mxu0
  %v4200 = vadd.f32 0.0, %v4199
  %v4201 = vpop.f32.mrf.mxu0
  %4202 = vmatprep.mubr.f32.mxu0 0.0
  %4203 = vmatmul.mubr.f32.gmra.mxu0 %v3972
  %v4204 = vpop.f32.mrf.mxu0
  %v4205 = vadd.f32 0.0, %v4204
  %v4206 = vpop.f32.mrf.mxu0
  %4207 = vdwg.mxu0
  %4208 = vmatprep.subr.mxu0 0.0
  %4209 = vmatpush1.msra.mxu0 %v265
  %4210 = vmatprep.subr.mxu0 0.0
  %4211 = vmatpush1.msra.mxu0 %v264
  %4212 = vmatprep.subr.mxu0 0.0
  %4213 = vmatpush1.msra.mxu0 %v263
  %4214 = vmatprep.subr.mxu0 0.0
  %4215 = vmatpush1.msra.mxu0 %v262
  %4216 = vmatprep.subr.mxu0 0.0
  %4217 = vmatpush1.msra.mxu0 %v261
  %4218 = vmatprep.subr.mxu0 0.0
  %4219 = vmatpush1.msra.mxu0 %v260
  %4220 = vmatprep.subr.mxu0 0.0
  %4221 = vmatpush1.msra.mxu0 %v259
  %4222 = vmatprep.subr.mxu0 0.0
  %4223 = vmatpush1.msra.mxu0 %v258
  %4224 = vmatprep.subr.mxu0 0.0
  %4225 = vmatpush1.msra.mxu0 %v257
  %4226 = vmatprep.subr.mxu0 0.0
  %4227 = vmatpush1.msra.mxu0 %v256
  %4228 = vmatprep.subr.mxu0 0.0
  %4229 = vmatpush1.msra.mxu0 %v255
  %4230 = vmatprep.subr.mxu0 0.0
  %4231 = vmatpush1.msra.mxu0 %v254
  %4232 = vmatprep.subr.mxu0 0.0
  %4233 = vmatpush1.msra.mxu0 %v253
  %4234 = vmatprep.subr.mxu0 0.0
  %4235 = vmatpush1.msra.mxu0 %v252
  %4236 = vmatprep.subr.mxu0 0.0
  %4237 = vmatpush1.msra.mxu0 %v251
  %4238 = vmatprep.subr.mxu0 0.0
  %4239 = vmatpush1.msra.mxu0 %v250
  %4240 = vmatprep.subr.mxu0 0.0
  %4241 = vmatpush2.msra.mxu0 0.0
  %4242 = vmatprep.subr.mxu0 0.0
  %4243 = vmatpush2.msra.mxu0 0.0
  %4244 = vmatprep.subr.mxu0 0.0
  %4245 = vmatpush2.msra.mxu0 0.0
  %4246 = vmatprep.subr.mxu0 0.0
  %4247 = vmatpush2.msra.mxu0 0.0
  %4248 = vmatprep.subr.mxu0 0.0
  %4249 = vmatpush2.msra.mxu0 0.0
  %4250 = vmatprep.subr.mxu0 0.0
  %4251 = vmatpush2.msra.mxu0 0.0
  %4252 = vmatprep.subr.mxu0 0.0
  %4253 = vmatpush2.msra.mxu0 0.0
  %4254 = vmatprep.subr.mxu0 0.0
  %4255 = vmatpush2.msra.mxu0 0.0
  %4256 = vmatprep.subr.mxu0 0.0
  %4257 = vmatpush2.msra.mxu0 0.0
  %4258 = vmatprep.subr.mxu0 0.0
  %4259 = vmatpush2.msra.mxu0 0.0
  %4260 = vmatprep.subr.mxu0 0.0
  %4261 = vmatpush2.msra.mxu0 0.0
  %4262 = vmatprep.subr.mxu0 0.0
  %4263 = vmatpush2.msra.mxu0 0.0
  %4264 = vmatprep.subr.mxu0 0.0
  %4265 = vmatpush2.msra.mxu0 0.0
  %4266 = vmatprep.subr.mxu0 0.0
  %4267 = vmatpush2.msra.mxu0 0.0
  %4268 = vmatprep.subr.mxu0 0.0
  %4269 = vmatpush2.msra.mxu0 0.0
  %4270 = vmatprep.subr.mxu0 0.0
  %4271 = vmatpush2.msra.mxu0 0.0
  %4272 = vmatprep.mubr.f32.mxu0 0.0
  %4273 = vmatmul.mubr.f32.gmra.mxu0 %v3973
  %v4274 = vpop.f32.mrf.mxu0
  %v4275 = vadd.f32 0.0, %v4274
  %v4276 = vpop.f32.mrf.mxu0
  %4277 = vmatprep.mubr.f32.mxu0 0.0
  %4278 = vmatmul.mubr.f32.gmra.mxu0 %v3974
  %v4279 = vpop.f32.mrf.mxu0
  %v4280 = vadd.f32 0.0, %v4279
  %v4281 = vpop.f32.mrf.mxu0
  %4282 = vdwg.mxu0
  %4283 = vmatprep.subr.mxu0 0.0
  %4284 = vmatpush1.msra.mxu0 %v281
  %4285 = vmatprep.subr.mxu0 0.0
  %4286 = vmatpush1.msra.mxu0 %v280
  %4287 = vmatprep.subr.mxu0 0.0
  %4288 = vmatpush1.msra.mxu0 %v279
  %4289 = vmatprep.subr.mxu0 0.0
  %4290 = vmatpush1.msra.mxu0 %v278
  %4291 = vmatprep.subr.mxu0 0.0
  %4292 = vmatpush1.msra.mxu0 %v277
  %4293 = vmatprep.subr.mxu0 0.0
  %4294 = vmatpush1.msra.mxu0 %v276
  %4295 = vmatprep.subr.mxu0 0.0
  %4296 = vmatpush1.msra.mxu0 %v275
  %4297 = vmatprep.subr.mxu0 0.0
  %4298 = vmatpush1.msra.mxu0 %v274
  %4299 = vmatprep.subr.mxu0 0.0
  %4300 = vmatpush1.msra.mxu0 %v273
  %4301 = vmatprep.subr.mxu0 0.0
  %4302 = vmatpush1.msra.mxu0 %v272
  %4303 = vmatprep.subr.mxu0 0.0
  %4304 = vmatpush1.msra.mxu0 %v271
  %4305 = vmatprep.subr.mxu0 0.0
  %4306 = vmatpush1.msra.mxu0 %v270
  %4307 = vmatprep.subr.mxu0 0.0
  %4308 = vmatpush1.msra.mxu0 %v269
  %4309 = vmatprep.subr.mxu0 0.0
  %4310 = vmatpush1.msra.mxu0 %v268
  %4311 = vmatprep.subr.mxu0 0.0
  %4312 = vmatpush1.msra.mxu0 %v267
  %4313 = vmatprep.subr.mxu0 0.0
  %4314 = vmatpush1.msra.mxu0 %v266
  %4315 = vmatprep.subr.mxu0 0.0
  %4316 = vmatpush2.msra.mxu0 0.0
  %4317 = vmatprep.subr.mxu0 0.0
  %4318 = vmatpush2.msra.mxu0 0.0
  %4319 = vmatprep.subr.mxu0 0.0
  %4320 = vmatpush2.msra.mxu0 0.0
  %4321 = vmatprep.subr.mxu0 0.0
  %4322 = vmatpush2.msra.mxu0 0.0
  %4323 = vmatprep.subr.mxu0 0.0
  %4324 = vmatpush2.msra.mxu0 0.0
  %4325 = vmatprep.subr.mxu0 0.0
  %4326 = vmatpush2.msra.mxu0 0.0
  %4327 = vmatprep.subr.mxu0 0.0
  %4328 = vmatpush2.msra.mxu0 0.0
  %4329 = vmatprep.subr.mxu0 0.0
  %4330 = vmatpush2.msra.mxu0 0.0
  %4331 = vmatprep.subr.mxu0 0.0
  %4332 = vmatpush2.msra.mxu0 0.0
  %4333 = vmatprep.subr.mxu0 0.0
  %4334 = vmatpush2.msra.mxu0 0.0
  %4335 = vmatprep.subr.mxu0 0.0
  %4336 = vmatpush2.msra.mxu0 0.0
  %4337 = vmatprep.subr.mxu0 0.0
  %4338 = vmatpush2.msra.mxu0 0.0
  %4339 = vmatprep.subr.mxu0 0.0
  %4340 = vmatpush2.msra.mxu0 0.0
  %4341 = vmatprep.subr.mxu0 0.0
  %4342 = vmatpush2.msra.mxu0 0.0
  %4343 = vmatprep.subr.mxu0 0.0
  %4344 = vmatpush2.msra.mxu0 0.0
  %4345 = vmatprep.subr.mxu0 0.0
  %4346 = vmatpush2.msra.mxu0 0.0
  %4347 = vmatprep.mubr.f32.mxu0 0.0
  %4348 = vmatmul.mubr.f32.gmra.mxu0 %v3975
  %v4349 = vpop.f32.mrf.mxu0
  %v4350 = vadd.f32 0.0, %v4349
  %v4351 = vpop.f32.mrf.mxu0
  %4352 = vmatprep.mubr.f32.mxu0 0.0
  %4353 = vmatmul.mubr.f32.gmra.mxu0 %v3976
  %v4354 = vpop.f32.mrf.mxu0
  %v4355 = vadd.f32 0.0, %v4354
  %v4356 = vpop.f32.mrf.mxu0
  %4357 = vdwg.mxu0
  %4358 = vmatprep.subr.mxu0 0.0
  %4359 = vmatpush1.msra.mxu0 %v297
  %4360 = vmatprep.subr.mxu0 0.0
  %4361 = vmatpush1.msra.mxu0 %v296
  %4362 = vmatprep.subr.mxu0 0.0
  %4363 = vmatpush1.msra.mxu0 %v295
  %4364 = vmatprep.subr.mxu0 0.0
  %4365 = vmatpush1.msra.mxu0 %v294
  %4366 = vmatprep.subr.mxu0 0.0
  %4367 = vmatpush1.msra.mxu0 %v293
  %4368 = vmatprep.subr.mxu0 0.0
  %4369 = vmatpush1.msra.mxu0 %v292
  %4370 = vmatprep.subr.mxu0 0.0
  %4371 = vmatpush1.msra.mxu0 %v291
  %4372 = vmatprep.subr.mxu0 0.0
  %4373 = vmatpush1.msra.mxu0 %v290
  %4374 = vmatprep.subr.mxu0 0.0
  %4375 = vmatpush1.msra.mxu0 %v289
  %4376 = vmatprep.subr.mxu0 0.0
  %4377 = vmatpush1.msra.mxu0 %v288
  %4378 = vmatprep.subr.mxu0 0.0
  %4379 = vmatpush1.msra.mxu0 %v287
  %4380 = vmatprep.subr.mxu0 0.0
  %4381 = vmatpush1.msra.mxu0 %v286
  %4382 = vmatprep.subr.mxu0 0.0
  %4383 = vmatpush1.msra.mxu0 %v285
  %4384 = vmatprep.subr.mxu0 0.0
  %4385 = vmatpush1.msra.mxu0 %v284
  %4386 = vmatprep.subr.mxu0 0.0
  %4387 = vmatpush1.msra.mxu0 %v283
  %4388 = vmatprep.subr.mxu0 0.0
  %4389 = vmatpush1.msra.mxu0 %v282
  %4390 = vmatprep.subr.mxu0 0.0
  %4391 = vmatpush2.msra.mxu0 0.0
  %4392 = vmatprep.subr.mxu0 0.0
  %4393 = vmatpush2.msra.mxu0 0.0
  %4394 = vmatprep.subr.mxu0 0.0
  %4395 = vmatpush2.msra.mxu0 0.0
  %4396 = vmatprep.subr.mxu0 0.0
  %4397 = vmatpush2.msra.mxu0 0.0
  %4398 = vmatprep.subr.mxu0 0.0
  %4399 = vmatpush2.msra.mxu0 0.0
  %4400 = vmatprep.subr.mxu0 0.0
  %4401 = vmatpush2.msra.mxu0 0.0
  %4402 = vmatprep.subr.mxu0 0.0
  %4403 = vmatpush2.msra.mxu0 0.0
  %4404 = vmatprep.subr.mxu0 0.0
  %4405 = vmatpush2.msra.mxu0 0.0
  %4406 = vmatprep.subr.mxu0 0.0
  %4407 = vmatpush2.msra.mxu0 0.0
  %4408 = vmatprep.subr.mxu0 0.0
  %4409 = vmatpush2.msra.mxu0 0.0
  %4410 = vmatprep.subr.mxu0 0.0
  %4411 = vmatpush2.msra.mxu0 0.0
  %4412 = vmatprep.subr.mxu0 0.0
  %4413 = vmatpush2.msra.mxu0 0.0
  %4414 = vmatprep.subr.mxu0 0.0
  %4415 = vmatpush2.msra.mxu0 0.0
  %4416 = vmatprep.subr.mxu0 0.0
  %4417 = vmatpush2.msra.mxu0 0.0
  %4418 = vmatprep.subr.mxu0 0.0
  %4419 = vmatpush2.msra.mxu0 0.0
  %4420 = vmatprep.subr.mxu0 0.0
  %4421 = vmatpush2.msra.mxu0 0.0
  %4422 = vmatprep.mubr.f32.mxu0 0.0
  %4423 = vmatmul.mubr.f32.gmra.mxu0 %v3977
  %v4424 = vpop.f32.mrf.mxu0
  %v4425 = vadd.f32 0.0, %v4424
  %v4426 = vpop.f32.mrf.mxu0
  %4427 = vmatprep.mubr.f32.mxu0 0.0
  %4428 = vmatmul.mubr.f32.gmra.mxu0 %v3978
  %v4429 = vpop.f32.mrf.mxu0
  %v4430 = vadd.f32 0.0, %v4429
  %v4431 = vpop.f32.mrf.mxu0
  %4432 = vdwg.mxu0
  %4433 = vmatprep.subr.mxu0 0.0
  %4434 = vmatpush1.msra.mxu0 %v313
  %4435 = vmatprep.subr.mxu0 0.0
  %4436 = vmatpush1.msra.mxu0 %v312
  %4437 = vmatprep.subr.mxu0 0.0
  %4438 = vmatpush1.msra.mxu0 %v311
  %4439 = vmatprep.subr.mxu0 0.0
  %4440 = vmatpush1.msra.mxu0 %v310
  %4441 = vmatprep.subr.mxu0 0.0
  %4442 = vmatpush1.msra.mxu0 %v309
  %4443 = vmatprep.subr.mxu0 0.0
  %4444 = vmatpush1.msra.mxu0 %v308
  %4445 = vmatprep.subr.mxu0 0.0
  %4446 = vmatpush1.msra.mxu0 %v307
  %4447 = vmatprep.subr.mxu0 0.0
  %4448 = vmatpush1.msra.mxu0 %v306
  %4449 = vmatprep.subr.mxu0 0.0
  %4450 = vmatpush1.msra.mxu0 %v305
  %4451 = vmatprep.subr.mxu0 0.0
  %4452 = vmatpush1.msra.mxu0 %v304
  %4453 = vmatprep.subr.mxu0 0.0
  %4454 = vmatpush1.msra.mxu0 %v303
  %4455 = vmatprep.subr.mxu0 0.0
  %4456 = vmatpush1.msra.mxu0 %v302
  %4457 = vmatprep.subr.mxu0 0.0
  %4458 = vmatpush1.msra.mxu0 %v301
  %4459 = vmatprep.subr.mxu0 0.0
  %4460 = vmatpush1.msra.mxu0 %v300
  %4461 = vmatprep.subr.mxu0 0.0
  %4462 = vmatpush1.msra.mxu0 %v299
  %4463 = vmatprep.subr.mxu0 0.0
  %4464 = vmatpush1.msra.mxu0 %v298
  %4465 = vmatprep.subr.mxu0 0.0
  %4466 = vmatpush2.msra.mxu0 0.0
  %4467 = vmatprep.subr.mxu0 0.0
  %4468 = vmatpush2.msra.mxu0 0.0
  %4469 = vmatprep.subr.mxu0 0.0
  %4470 = vmatpush2.msra.mxu0 0.0
  %4471 = vmatprep.subr.mxu0 0.0
  %4472 = vmatpush2.msra.mxu0 0.0
  %4473 = vmatprep.subr.mxu0 0.0
  %4474 = vmatpush2.msra.mxu0 0.0
  %4475 = vmatprep.subr.mxu0 0.0
  %4476 = vmatpush2.msra.mxu0 0.0
  %4477 = vmatprep.subr.mxu0 0.0
  %4478 = vmatpush2.msra.mxu0 0.0
  %4479 = vmatprep.subr.mxu0 0.0
  %4480 = vmatpush2.msra.mxu0 0.0
  %4481 = vmatprep.subr.mxu0 0.0
  %4482 = vmatpush2.msra.mxu0 0.0
  %4483 = vmatprep.subr.mxu0 0.0
  %4484 = vmatpush2.msra.mxu0 0.0
  %4485 = vmatprep.subr.mxu0 0.0
  %4486 = vmatpush2.msra.mxu0 0.0
  %4487 = vmatprep.subr.mxu0 0.0
  %4488 = vmatpush2.msra.mxu0 0.0
  %4489 = vmatprep.subr.mxu0 0.0
  %4490 = vmatpush2.msra.mxu0 0.0
  %4491 = vmatprep.subr.mxu0 0.0
  %4492 = vmatpush2.msra.mxu0 0.0
  %4493 = vmatprep.subr.mxu0 0.0
  %4494 = vmatpush2.msra.mxu0 0.0
  %4495 = vmatprep.subr.mxu0 0.0
  %4496 = vmatpush2.msra.mxu0 0.0
  %4497 = vmatprep.mubr.f32.mxu0 0.0
  %4498 = vmatmul.mubr.f32.gmra.mxu0 %v3979
  %v4499 = vpop.f32.mrf.mxu0
  %v4500 = vadd.f32 0.0, %v4499
  %v4501 = vpop.f32.mrf.mxu0
  %4502 = vmatprep.mubr.f32.mxu0 0.0
  %4503 = vmatmul.mubr.f32.gmra.mxu0 %v3980
  %v4504 = vpop.f32.mrf.mxu0
  %v4505 = vadd.f32 0.0, %v4504
  %v4506 = vpop.f32.mrf.mxu0
  %4507 = vdwg.mxu0
  %4508 = vmatprep.subr.mxu0 0.0
  %4509 = vmatpush1.msra.mxu0 %v329
  %4510 = vmatprep.subr.mxu0 0.0
  %4511 = vmatpush1.msra.mxu0 %v328
  %4512 = vmatprep.subr.mxu0 0.0
  %4513 = vmatpush1.msra.mxu0 %v327
  %4514 = vmatprep.subr.mxu0 0.0
  %4515 = vmatpush1.msra.mxu0 %v326
  %4516 = vmatprep.subr.mxu0 0.0
  %4517 = vmatpush1.msra.mxu0 %v325
  %4518 = vmatprep.subr.mxu0 0.0
  %4519 = vmatpush1.msra.mxu0 %v324
  %4520 = vmatprep.subr.mxu0 0.0
  %4521 = vmatpush1.msra.mxu0 %v323
  %4522 = vmatprep.subr.mxu0 0.0
  %4523 = vmatpush1.msra.mxu0 %v322
  %4524 = vmatprep.subr.mxu0 0.0
  %4525 = vmatpush1.msra.mxu0 %v321
  %4526 = vmatprep.subr.mxu0 0.0
  %4527 = vmatpush1.msra.mxu0 %v320
  %4528 = vmatprep.subr.mxu0 0.0
  %4529 = vmatpush1.msra.mxu0 %v319
  %4530 = vmatprep.subr.mxu0 0.0
  %4531 = vmatpush1.msra.mxu0 %v318
  %4532 = vmatprep.subr.mxu0 0.0
  %4533 = vmatpush1.msra.mxu0 %v317
  %4534 = vmatprep.subr.mxu0 0.0
  %4535 = vmatpush1.msra.mxu0 %v316
  %4536 = vmatprep.subr.mxu0 0.0
  %4537 = vmatpush1.msra.mxu0 %v315
  %4538 = vmatprep.subr.mxu0 0.0
  %4539 = vmatpush1.msra.mxu0 %v314
  %4540 = vmatprep.subr.mxu0 0.0
  %4541 = vmatpush2.msra.mxu0 0.0
  %4542 = vmatprep.subr.mxu0 0.0
  %4543 = vmatpush2.msra.mxu0 0.0
  %4544 = vmatprep.subr.mxu0 0.0
  %4545 = vmatpush2.msra.mxu0 0.0
  %4546 = vmatprep.subr.mxu0 0.0
  %4547 = vmatpush2.msra.mxu0 0.0
  %4548 = vmatprep.subr.mxu0 0.0
  %4549 = vmatpush2.msra.mxu0 0.0
  %4550 = vmatprep.subr.mxu0 0.0
  %4551 = vmatpush2.msra.mxu0 0.0
  %4552 = vmatprep.subr.mxu0 0.0
  %4553 = vmatpush2.msra.mxu0 0.0
  %4554 = vmatprep.subr.mxu0 0.0
  %4555 = vmatpush2.msra.mxu0 0.0
  %4556 = vmatprep.subr.mxu0 0.0
  %4557 = vmatpush2.msra.mxu0 0.0
  %4558 = vmatprep.subr.mxu0 0.0
  %4559 = vmatpush2.msra.mxu0 0.0
  %4560 = vmatprep.subr.mxu0 0.0
  %4561 = vmatpush2.msra.mxu0 0.0
  %4562 = vmatprep.subr.mxu0 0.0
  %4563 = vmatpush2.msra.mxu0 0.0
  %4564 = vmatprep.subr.mxu0 0.0
  %4565 = vmatpush2.msra.mxu0 0.0
  %4566 = vmatprep.subr.mxu0 0.0
  %4567 = vmatpush2.msra.mxu0 0.0
  %4568 = vmatprep.subr.mxu0 0.0
  %4569 = vmatpush2.msra.mxu0 0.0
  %4570 = vmatprep.subr.mxu0 0.0
  %4571 = vmatpush2.msra.mxu0 0.0
  %4572 = vmatprep.mubr.f32.mxu0 0.0
  %4573 = vmatmul.mubr.f32.gmra.mxu0 %v3981
  %v4574 = vpop.f32.mrf.mxu0
  %v4575 = vadd.f32 0.0, %v4574
  %v4576 = vpop.f32.mrf.mxu0
  %4577 = vmatprep.mubr.f32.mxu0 0.0
  %4578 = vmatmul.mubr.f32.gmra.mxu0 %v3982
  %v4579 = vpop.f32.mrf.mxu0
  %v4580 = vadd.f32 0.0, %v4579
  %v4581 = vpop.f32.mrf.mxu0
  %4582 = vdwg.mxu0
  %4583 = vst.msk [vmem:[%s3 + $0x50] sm:$0xff] %vm1092, %v4050
  %4584 = vst.msk [vmem:[%s3 + $0x58] sm:$0xff] %vm1092, %v4055
  %4585 = vst.msk [vmem:[%s3 + $0xd0] sm:$0xff] %vm1092, %v4125
  %4586 = vst.msk [vmem:[%s3 + $0xd8] sm:$0xff] %vm1092, %v4130
  %4587 = vst.msk [vmem:[%s3 + $0x150] sm:$0xff] %vm1092, %v4200
  %4588 = vst.msk [vmem:[%s3 + $0x158] sm:$0xff] %vm1092, %v4205
  %4589 = vst.msk [vmem:[%s3 + $0x1d0] sm:$0xff] %vm1092, %v4275
  %4590 = vst.msk [vmem:[%s3 + $0x1d8] sm:$0xff] %vm1092, %v4280
  %4591 = vst.msk [vmem:[%s3 + $0x250] sm:$0xff] %vm1092, %v4350
  %4592 = vst.msk [vmem:[%s3 + $0x258] sm:$0xff] %vm1092, %v4355
  %4593 = vst.msk [vmem:[%s3 + $0x2d0] sm:$0xff] %vm1092, %v4425
  %4594 = vst.msk [vmem:[%s3 + $0x2d8] sm:$0xff] %vm1092, %v4430
  %4595 = vst.msk [vmem:[%s3 + $0x350] sm:$0xff] %vm1092, %v4500
  %4596 = vst.msk [vmem:[%s3 + $0x358] sm:$0xff] %vm1092, %v4505
  %4597 = vst.msk [vmem:[%s3 + $0x3d0] sm:$0xff] %vm1092, %v4575
  %4598 = vst.msk [vmem:[%s3 + $0x3d8] sm:$0xff] %vm1092, %v4580
  %v4599 = vadd.f32 %v200, 96.0
  %v4600 = vadd.f32 %v201, 96.0
  %vm4601 = vcmp.ge.f32.partialorder %v335, %v4599
  %vm4602 = vcmp.ge.f32.partialorder %v335, %v4600
  %vm4603 = vcmp.ge.f32.partialorder %v339, %v4599
  %vm4604 = vcmp.ge.f32.partialorder %v339, %v4600
  %vm4605 = vcmp.ge.f32.partialorder %v343, %v4599
  %vm4606 = vcmp.ge.f32.partialorder %v343, %v4600
  %vm4607 = vcmp.ge.f32.partialorder %v347, %v4599
  %vm4608 = vcmp.ge.f32.partialorder %v347, %v4600
  %vm4609 = vcmp.ge.f32.partialorder %v351, %v4599
  %vm4610 = vcmp.ge.f32.partialorder %v351, %v4600
  %vm4611 = vcmp.ge.f32.partialorder %v355, %v4599
  %vm4612 = vcmp.ge.f32.partialorder %v355, %v4600
  %vm4613 = vcmp.ge.f32.partialorder %v359, %v4599
  %vm4614 = vcmp.ge.f32.partialorder %v359, %v4600
  %vm4615 = vcmp.ge.f32.partialorder %v363, %v4599
  %vm4616 = vcmp.ge.f32.partialorder %v363, %v4600
  %vm4617 = vcmp.lt.f32.partialorder %v391, %v4599
  %vm4618 = vcmp.lt.f32.partialorder %v391, %v4600
  %vm4619 = vcmp.lt.f32.partialorder %v395, %v4599
  %vm4620 = vcmp.lt.f32.partialorder %v395, %v4600
  %vm4621 = vcmp.lt.f32.partialorder %v399, %v4599
  %vm4622 = vcmp.lt.f32.partialorder %v399, %v4600
  %vm4623 = vcmp.lt.f32.partialorder %v403, %v4599
  %vm4624 = vcmp.lt.f32.partialorder %v403, %v4600
  %vm4625 = vcmp.lt.f32.partialorder %v407, %v4599
  %vm4626 = vcmp.lt.f32.partialorder %v407, %v4600
  %vm4627 = vcmp.lt.f32.partialorder %v411, %v4599
  %vm4628 = vcmp.lt.f32.partialorder %v411, %v4600
  %vm4629 = vcmp.lt.f32.partialorder %v415, %v4599
  %vm4630 = vcmp.lt.f32.partialorder %v415, %v4600
  %vm4631 = vcmp.lt.f32.partialorder %v419, %v4599
  %vm4632 = vcmp.lt.f32.partialorder %v419, %v4600
  %vm4633 = vmand %vm4601, %vm4617
  %vm4634 = vmand %vm4602, %vm4618
  %vm4635 = vmand %vm4603, %vm4619
  %vm4636 = vmand %vm4604, %vm4620
  %vm4637 = vmand %vm4605, %vm4621
  %vm4638 = vmand %vm4606, %vm4622
  %vm4639 = vmand %vm4607, %vm4623
  %vm4640 = vmand %vm4608, %vm4624
  %vm4641 = vmand %vm4609, %vm4625
  %vm4642 = vmand %vm4610, %vm4626
  %vm4643 = vmand %vm4611, %vm4627
  %vm4644 = vmand %vm4612, %vm4628
  %vm4645 = vmand %vm4613, %vm4629
  %vm4646 = vmand %vm4614, %vm4630
  %vm4647 = vmand %vm4615, %vm4631
  %vm4648 = vmand %vm4616, %vm4632
  %v4649 = vsel %vm4633, 1, 0
  %v4650 = vsel %vm4634, 1, 0
  %v4651 = vsel %vm4635, 1, 0
  %v4652 = vsel %vm4636, 1, 0
  %v4653 = vsel %vm4637, 1, 0
  %v4654 = vsel %vm4638, 1, 0
  %v4655 = vsel %vm4639, 1, 0
  %v4656 = vsel %vm4640, 1, 0
  %v4657 = vsel %vm4641, 1, 0
  %v4658 = vsel %vm4642, 1, 0
  %v4659 = vsel %vm4643, 1, 0
  %v4660 = vsel %vm4644, 1, 0
  %v4661 = vsel %vm4645, 1, 0
  %v4662 = vsel %vm4646, 1, 0
  %v4663 = vsel %vm4647, 1, 0
  %v4664 = vsel %vm4648, 1, 0
  %v4665 = vcvt.s32.f32 %v4649
  %v4666 = vcvt.s32.f32 %v4650
  %v4667 = vcvt.s32.f32 %v4651
  %v4668 = vcvt.s32.f32 %v4652
  %v4669 = vcvt.s32.f32 %v4653
  %v4670 = vcvt.s32.f32 %v4654
  %v4671 = vcvt.s32.f32 %v4655
  %v4672 = vcvt.s32.f32 %v4656
  %v4673 = vcvt.s32.f32 %v4657
  %v4674 = vcvt.s32.f32 %v4658
  %v4675 = vcvt.s32.f32 %v4659
  %v4676 = vcvt.s32.f32 %v4660
  %v4677 = vcvt.s32.f32 %v4661
  %v4678 = vcvt.s32.f32 %v4662
  %v4679 = vcvt.s32.f32 %v4663
  %v4680 = vcvt.s32.f32 %v4664
  %4681 = vmatprep.subr.mxu0 0.0
  %4682 = vmatpush1.msra.mxu0 %v217
  %4683 = vmatprep.subr.mxu0 0.0
  %4684 = vmatpush1.msra.mxu0 %v216
  %4685 = vmatprep.subr.mxu0 0.0
  %4686 = vmatpush1.msra.mxu0 %v215
  %4687 = vmatprep.subr.mxu0 0.0
  %4688 = vmatpush1.msra.mxu0 %v214
  %4689 = vmatprep.subr.mxu0 0.0
  %4690 = vmatpush1.msra.mxu0 %v213
  %4691 = vmatprep.subr.mxu0 0.0
  %4692 = vmatpush1.msra.mxu0 %v212
  %4693 = vmatprep.subr.mxu0 0.0
  %4694 = vmatpush1.msra.mxu0 %v211
  %4695 = vmatprep.subr.mxu0 0.0
  %4696 = vmatpush1.msra.mxu0 %v210
  %4697 = vmatprep.subr.mxu0 0.0
  %4698 = vmatpush1.msra.mxu0 %v209
  %4699 = vmatprep.subr.mxu0 0.0
  %4700 = vmatpush1.msra.mxu0 %v208
  %4701 = vmatprep.subr.mxu0 0.0
  %4702 = vmatpush1.msra.mxu0 %v207
  %4703 = vmatprep.subr.mxu0 0.0
  %4704 = vmatpush1.msra.mxu0 %v206
  %4705 = vmatprep.subr.mxu0 0.0
  %4706 = vmatpush1.msra.mxu0 %v205
  %4707 = vmatprep.subr.mxu0 0.0
  %4708 = vmatpush1.msra.mxu0 %v204
  %4709 = vmatprep.subr.mxu0 0.0
  %4710 = vmatpush1.msra.mxu0 %v203
  %4711 = vmatprep.subr.mxu0 0.0
  %4712 = vmatpush1.msra.mxu0 %v202
  %4713 = vmatprep.subr.mxu0 0.0
  %4714 = vmatpush2.msra.mxu0 0.0
  %4715 = vmatprep.subr.mxu0 0.0
  %4716 = vmatpush2.msra.mxu0 0.0
  %4717 = vmatprep.subr.mxu0 0.0
  %4718 = vmatpush2.msra.mxu0 0.0
  %4719 = vmatprep.subr.mxu0 0.0
  %4720 = vmatpush2.msra.mxu0 0.0
  %4721 = vmatprep.subr.mxu0 0.0
  %4722 = vmatpush2.msra.mxu0 0.0
  %4723 = vmatprep.subr.mxu0 0.0
  %4724 = vmatpush2.msra.mxu0 0.0
  %4725 = vmatprep.subr.mxu0 0.0
  %4726 = vmatpush2.msra.mxu0 0.0
  %4727 = vmatprep.subr.mxu0 0.0
  %4728 = vmatpush2.msra.mxu0 0.0
  %4729 = vmatprep.subr.mxu0 0.0
  %4730 = vmatpush2.msra.mxu0 0.0
  %4731 = vmatprep.subr.mxu0 0.0
  %4732 = vmatpush2.msra.mxu0 0.0
  %4733 = vmatprep.subr.mxu0 0.0
  %4734 = vmatpush2.msra.mxu0 0.0
  %4735 = vmatprep.subr.mxu0 0.0
  %4736 = vmatpush2.msra.mxu0 0.0
  %4737 = vmatprep.subr.mxu0 0.0
  %4738 = vmatpush2.msra.mxu0 0.0
  %4739 = vmatprep.subr.mxu0 0.0
  %4740 = vmatpush2.msra.mxu0 0.0
  %4741 = vmatprep.subr.mxu0 0.0
  %4742 = vmatpush2.msra.mxu0 0.0
  %4743 = vmatprep.subr.mxu0 0.0
  %4744 = vmatpush2.msra.mxu0 0.0
  %4745 = vmatprep.mubr.f32.mxu0 0.0
  %4746 = vmatmul.mubr.f32.gmra.mxu0 %v4665
  %v4747 = vpop.f32.mrf.mxu0
  %v4748 = vadd.f32 0.0, %v4747
  %v4749 = vpop.f32.mrf.mxu0
  %4750 = vmatprep.mubr.f32.mxu0 0.0
  %4751 = vmatmul.mubr.f32.gmra.mxu0 %v4666
  %v4752 = vpop.f32.mrf.mxu0
  %v4753 = vadd.f32 0.0, %v4752
  %v4754 = vpop.f32.mrf.mxu0
  %4755 = vdwg.mxu0
  %4756 = vmatprep.subr.mxu0 0.0
  %4757 = vmatpush1.msra.mxu0 %v233
  %4758 = vmatprep.subr.mxu0 0.0
  %4759 = vmatpush1.msra.mxu0 %v232
  %4760 = vmatprep.subr.mxu0 0.0
  %4761 = vmatpush1.msra.mxu0 %v231
  %4762 = vmatprep.subr.mxu0 0.0
  %4763 = vmatpush1.msra.mxu0 %v230
  %4764 = vmatprep.subr.mxu0 0.0
  %4765 = vmatpush1.msra.mxu0 %v229
  %4766 = vmatprep.subr.mxu0 0.0
  %4767 = vmatpush1.msra.mxu0 %v228
  %4768 = vmatprep.subr.mxu0 0.0
  %4769 = vmatpush1.msra.mxu0 %v227
  %4770 = vmatprep.subr.mxu0 0.0
  %4771 = vmatpush1.msra.mxu0 %v226
  %4772 = vmatprep.subr.mxu0 0.0
  %4773 = vmatpush1.msra.mxu0 %v225
  %4774 = vmatprep.subr.mxu0 0.0
  %4775 = vmatpush1.msra.mxu0 %v224
  %4776 = vmatprep.subr.mxu0 0.0
  %4777 = vmatpush1.msra.mxu0 %v223
  %4778 = vmatprep.subr.mxu0 0.0
  %4779 = vmatpush1.msra.mxu0 %v222
  %4780 = vmatprep.subr.mxu0 0.0
  %4781 = vmatpush1.msra.mxu0 %v221
  %4782 = vmatprep.subr.mxu0 0.0
  %4783 = vmatpush1.msra.mxu0 %v220
  %4784 = vmatprep.subr.mxu0 0.0
  %4785 = vmatpush1.msra.mxu0 %v219
  %4786 = vmatprep.subr.mxu0 0.0
  %4787 = vmatpush1.msra.mxu0 %v218
  %4788 = vmatprep.subr.mxu0 0.0
  %4789 = vmatpush2.msra.mxu0 0.0
  %4790 = vmatprep.subr.mxu0 0.0
  %4791 = vmatpush2.msra.mxu0 0.0
  %4792 = vmatprep.subr.mxu0 0.0
  %4793 = vmatpush2.msra.mxu0 0.0
  %4794 = vmatprep.subr.mxu0 0.0
  %4795 = vmatpush2.msra.mxu0 0.0
  %4796 = vmatprep.subr.mxu0 0.0
  %4797 = vmatpush2.msra.mxu0 0.0
  %4798 = vmatprep.subr.mxu0 0.0
  %4799 = vmatpush2.msra.mxu0 0.0
  %4800 = vmatprep.subr.mxu0 0.0
  %4801 = vmatpush2.msra.mxu0 0.0
  %4802 = vmatprep.subr.mxu0 0.0
  %4803 = vmatpush2.msra.mxu0 0.0
  %4804 = vmatprep.subr.mxu0 0.0
  %4805 = vmatpush2.msra.mxu0 0.0
  %4806 = vmatprep.subr.mxu0 0.0
  %4807 = vmatpush2.msra.mxu0 0.0
  %4808 = vmatprep.subr.mxu0 0.0
  %4809 = vmatpush2.msra.mxu0 0.0
  %4810 = vmatprep.subr.mxu0 0.0
  %4811 = vmatpush2.msra.mxu0 0.0
  %4812 = vmatprep.subr.mxu0 0.0
  %4813 = vmatpush2.msra.mxu0 0.0
  %4814 = vmatprep.subr.mxu0 0.0
  %4815 = vmatpush2.msra.mxu0 0.0
  %4816 = vmatprep.subr.mxu0 0.0
  %4817 = vmatpush2.msra.mxu0 0.0
  %4818 = vmatprep.subr.mxu0 0.0
  %4819 = vmatpush2.msra.mxu0 0.0
  %4820 = vmatprep.mubr.f32.mxu0 0.0
  %4821 = vmatmul.mubr.f32.gmra.mxu0 %v4667
  %v4822 = vpop.f32.mrf.mxu0
  %v4823 = vadd.f32 0.0, %v4822
  %v4824 = vpop.f32.mrf.mxu0
  %4825 = vmatprep.mubr.f32.mxu0 0.0
  %4826 = vmatmul.mubr.f32.gmra.mxu0 %v4668
  %v4827 = vpop.f32.mrf.mxu0
  %v4828 = vadd.f32 0.0, %v4827
  %v4829 = vpop.f32.mrf.mxu0
  %4830 = vdwg.mxu0
  %4831 = vmatprep.subr.mxu0 0.0
  %4832 = vmatpush1.msra.mxu0 %v249
  %4833 = vmatprep.subr.mxu0 0.0
  %4834 = vmatpush1.msra.mxu0 %v248
  %4835 = vmatprep.subr.mxu0 0.0
  %4836 = vmatpush1.msra.mxu0 %v247
  %4837 = vmatprep.subr.mxu0 0.0
  %4838 = vmatpush1.msra.mxu0 %v246
  %4839 = vmatprep.subr.mxu0 0.0
  %4840 = vmatpush1.msra.mxu0 %v245
  %4841 = vmatprep.subr.mxu0 0.0
  %4842 = vmatpush1.msra.mxu0 %v244
  %4843 = vmatprep.subr.mxu0 0.0
  %4844 = vmatpush1.msra.mxu0 %v243
  %4845 = vmatprep.subr.mxu0 0.0
  %4846 = vmatpush1.msra.mxu0 %v242
  %4847 = vmatprep.subr.mxu0 0.0
  %4848 = vmatpush1.msra.mxu0 %v241
  %4849 = vmatprep.subr.mxu0 0.0
  %4850 = vmatpush1.msra.mxu0 %v240
  %4851 = vmatprep.subr.mxu0 0.0
  %4852 = vmatpush1.msra.mxu0 %v239
  %4853 = vmatprep.subr.mxu0 0.0
  %4854 = vmatpush1.msra.mxu0 %v238
  %4855 = vmatprep.subr.mxu0 0.0
  %4856 = vmatpush1.msra.mxu0 %v237
  %4857 = vmatprep.subr.mxu0 0.0
  %4858 = vmatpush1.msra.mxu0 %v236
  %4859 = vmatprep.subr.mxu0 0.0
  %4860 = vmatpush1.msra.mxu0 %v235
  %4861 = vmatprep.subr.mxu0 0.0
  %4862 = vmatpush1.msra.mxu0 %v234
  %4863 = vmatprep.subr.mxu0 0.0
  %4864 = vmatpush2.msra.mxu0 0.0
  %4865 = vmatprep.subr.mxu0 0.0
  %4866 = vmatpush2.msra.mxu0 0.0
  %4867 = vmatprep.subr.mxu0 0.0
  %4868 = vmatpush2.msra.mxu0 0.0
  %4869 = vmatprep.subr.mxu0 0.0
  %4870 = vmatpush2.msra.mxu0 0.0
  %4871 = vmatprep.subr.mxu0 0.0
  %4872 = vmatpush2.msra.mxu0 0.0
  %4873 = vmatprep.subr.mxu0 0.0
  %4874 = vmatpush2.msra.mxu0 0.0
  %4875 = vmatprep.subr.mxu0 0.0
  %4876 = vmatpush2.msra.mxu0 0.0
  %4877 = vmatprep.subr.mxu0 0.0
  %4878 = vmatpush2.msra.mxu0 0.0
  %4879 = vmatprep.subr.mxu0 0.0
  %4880 = vmatpush2.msra.mxu0 0.0
  %4881 = vmatprep.subr.mxu0 0.0
  %4882 = vmatpush2.msra.mxu0 0.0
  %4883 = vmatprep.subr.mxu0 0.0
  %4884 = vmatpush2.msra.mxu0 0.0
  %4885 = vmatprep.subr.mxu0 0.0
  %4886 = vmatpush2.msra.mxu0 0.0
  %4887 = vmatprep.subr.mxu0 0.0
  %4888 = vmatpush2.msra.mxu0 0.0
  %4889 = vmatprep.subr.mxu0 0.0
  %4890 = vmatpush2.msra.mxu0 0.0
  %4891 = vmatprep.subr.mxu0 0.0
  %4892 = vmatpush2.msra.mxu0 0.0
  %4893 = vmatprep.subr.mxu0 0.0
  %4894 = vmatpush2.msra.mxu0 0.0
  %4895 = vmatprep.mubr.f32.mxu0 0.0
  %4896 = vmatmul.mubr.f32.gmra.mxu0 %v4669
  %v4897 = vpop.f32.mrf.mxu0
  %v4898 = vadd.f32 0.0, %v4897
  %v4899 = vpop.f32.mrf.mxu0
  %4900 = vmatprep.mubr.f32.mxu0 0.0
  %4901 = vmatmul.mubr.f32.gmra.mxu0 %v4670
  %v4902 = vpop.f32.mrf.mxu0
  %v4903 = vadd.f32 0.0, %v4902
  %v4904 = vpop.f32.mrf.mxu0
  %4905 = vdwg.mxu0
  %4906 = vmatprep.subr.mxu0 0.0
  %4907 = vmatpush1.msra.mxu0 %v265
  %4908 = vmatprep.subr.mxu0 0.0
  %4909 = vmatpush1.msra.mxu0 %v264
  %4910 = vmatprep.subr.mxu0 0.0
  %4911 = vmatpush1.msra.mxu0 %v263
  %4912 = vmatprep.subr.mxu0 0.0
  %4913 = vmatpush1.msra.mxu0 %v262
  %4914 = vmatprep.subr.mxu0 0.0
  %4915 = vmatpush1.msra.mxu0 %v261
  %4916 = vmatprep.subr.mxu0 0.0
  %4917 = vmatpush1.msra.mxu0 %v260
  %4918 = vmatprep.subr.mxu0 0.0
  %4919 = vmatpush1.msra.mxu0 %v259
  %4920 = vmatprep.subr.mxu0 0.0
  %4921 = vmatpush1.msra.mxu0 %v258
  %4922 = vmatprep.subr.mxu0 0.0
  %4923 = vmatpush1.msra.mxu0 %v257
  %4924 = vmatprep.subr.mxu0 0.0
  %4925 = vmatpush1.msra.mxu0 %v256
  %4926 = vmatprep.subr.mxu0 0.0
  %4927 = vmatpush1.msra.mxu0 %v255
  %4928 = vmatprep.subr.mxu0 0.0
  %4929 = vmatpush1.msra.mxu0 %v254
  %4930 = vmatprep.subr.mxu0 0.0
  %4931 = vmatpush1.msra.mxu0 %v253
  %4932 = vmatprep.subr.mxu0 0.0
  %4933 = vmatpush1.msra.mxu0 %v252
  %4934 = vmatprep.subr.mxu0 0.0
  %4935 = vmatpush1.msra.mxu0 %v251
  %4936 = vmatprep.subr.mxu0 0.0
  %4937 = vmatpush1.msra.mxu0 %v250
  %4938 = vmatprep.subr.mxu0 0.0
  %4939 = vmatpush2.msra.mxu0 0.0
  %4940 = vmatprep.subr.mxu0 0.0
  %4941 = vmatpush2.msra.mxu0 0.0
  %4942 = vmatprep.subr.mxu0 0.0
  %4943 = vmatpush2.msra.mxu0 0.0
  %4944 = vmatprep.subr.mxu0 0.0
  %4945 = vmatpush2.msra.mxu0 0.0
  %4946 = vmatprep.subr.mxu0 0.0
  %4947 = vmatpush2.msra.mxu0 0.0
  %4948 = vmatprep.subr.mxu0 0.0
  %4949 = vmatpush2.msra.mxu0 0.0
  %4950 = vmatprep.subr.mxu0 0.0
  %4951 = vmatpush2.msra.mxu0 0.0
  %4952 = vmatprep.subr.mxu0 0.0
  %4953 = vmatpush2.msra.mxu0 0.0
  %4954 = vmatprep.subr.mxu0 0.0
  %4955 = vmatpush2.msra.mxu0 0.0
  %4956 = vmatprep.subr.mxu0 0.0
  %4957 = vmatpush2.msra.mxu0 0.0
  %4958 = vmatprep.subr.mxu0 0.0
  %4959 = vmatpush2.msra.mxu0 0.0
  %4960 = vmatprep.subr.mxu0 0.0
  %4961 = vmatpush2.msra.mxu0 0.0
  %4962 = vmatprep.subr.mxu0 0.0
  %4963 = vmatpush2.msra.mxu0 0.0
  %4964 = vmatprep.subr.mxu0 0.0
  %4965 = vmatpush2.msra.mxu0 0.0
  %4966 = vmatprep.subr.mxu0 0.0
  %4967 = vmatpush2.msra.mxu0 0.0
  %4968 = vmatprep.subr.mxu0 0.0
  %4969 = vmatpush2.msra.mxu0 0.0
  %4970 = vmatprep.mubr.f32.mxu0 0.0
  %4971 = vmatmul.mubr.f32.gmra.mxu0 %v4671
  %v4972 = vpop.f32.mrf.mxu0
  %v4973 = vadd.f32 0.0, %v4972
  %v4974 = vpop.f32.mrf.mxu0
  %4975 = vmatprep.mubr.f32.mxu0 0.0
  %4976 = vmatmul.mubr.f32.gmra.mxu0 %v4672
  %v4977 = vpop.f32.mrf.mxu0
  %v4978 = vadd.f32 0.0, %v4977
  %v4979 = vpop.f32.mrf.mxu0
  %4980 = vdwg.mxu0
  %4981 = vmatprep.subr.mxu0 0.0
  %4982 = vmatpush1.msra.mxu0 %v281
  %4983 = vmatprep.subr.mxu0 0.0
  %4984 = vmatpush1.msra.mxu0 %v280
  %4985 = vmatprep.subr.mxu0 0.0
  %4986 = vmatpush1.msra.mxu0 %v279
  %4987 = vmatprep.subr.mxu0 0.0
  %4988 = vmatpush1.msra.mxu0 %v278
  %4989 = vmatprep.subr.mxu0 0.0
  %4990 = vmatpush1.msra.mxu0 %v277
  %4991 = vmatprep.subr.mxu0 0.0
  %4992 = vmatpush1.msra.mxu0 %v276
  %4993 = vmatprep.subr.mxu0 0.0
  %4994 = vmatpush1.msra.mxu0 %v275
  %4995 = vmatprep.subr.mxu0 0.0
  %4996 = vmatpush1.msra.mxu0 %v274
  %4997 = vmatprep.subr.mxu0 0.0
  %4998 = vmatpush1.msra.mxu0 %v273
  %4999 = vmatprep.subr.mxu0 0.0
  %5000 = vmatpush1.msra.mxu0 %v272
  %5001 = vmatprep.subr.mxu0 0.0
  %5002 = vmatpush1.msra.mxu0 %v271
  %5003 = vmatprep.subr.mxu0 0.0
  %5004 = vmatpush1.msra.mxu0 %v270
  %5005 = vmatprep.subr.mxu0 0.0
  %5006 = vmatpush1.msra.mxu0 %v269
  %5007 = vmatprep.subr.mxu0 0.0
  %5008 = vmatpush1.msra.mxu0 %v268
  %5009 = vmatprep.subr.mxu0 0.0
  %5010 = vmatpush1.msra.mxu0 %v267
  %5011 = vmatprep.subr.mxu0 0.0
  %5012 = vmatpush1.msra.mxu0 %v266
  %5013 = vmatprep.subr.mxu0 0.0
  %5014 = vmatpush2.msra.mxu0 0.0
  %5015 = vmatprep.subr.mxu0 0.0
  %5016 = vmatpush2.msra.mxu0 0.0
  %5017 = vmatprep.subr.mxu0 0.0
  %5018 = vmatpush2.msra.mxu0 0.0
  %5019 = vmatprep.subr.mxu0 0.0
  %5020 = vmatpush2.msra.mxu0 0.0
  %5021 = vmatprep.subr.mxu0 0.0
  %5022 = vmatpush2.msra.mxu0 0.0
  %5023 = vmatprep.subr.mxu0 0.0
  %5024 = vmatpush2.msra.mxu0 0.0
  %5025 = vmatprep.subr.mxu0 0.0
  %5026 = vmatpush2.msra.mxu0 0.0
  %5027 = vmatprep.subr.mxu0 0.0
  %5028 = vmatpush2.msra.mxu0 0.0
  %5029 = vmatprep.subr.mxu0 0.0
  %5030 = vmatpush2.msra.mxu0 0.0
  %5031 = vmatprep.subr.mxu0 0.0
  %5032 = vmatpush2.msra.mxu0 0.0
  %5033 = vmatprep.subr.mxu0 0.0
  %5034 = vmatpush2.msra.mxu0 0.0
  %5035 = vmatprep.subr.mxu0 0.0
  %5036 = vmatpush2.msra.mxu0 0.0
  %5037 = vmatprep.subr.mxu0 0.0
  %5038 = vmatpush2.msra.mxu0 0.0
  %5039 = vmatprep.subr.mxu0 0.0
  %5040 = vmatpush2.msra.mxu0 0.0
  %5041 = vmatprep.subr.mxu0 0.0
  %5042 = vmatpush2.msra.mxu0 0.0
  %5043 = vmatprep.subr.mxu0 0.0
  %5044 = vmatpush2.msra.mxu0 0.0
  %5045 = vmatprep.mubr.f32.mxu0 0.0
  %5046 = vmatmul.mubr.f32.gmra.mxu0 %v4673
  %v5047 = vpop.f32.mrf.mxu0
  %v5048 = vadd.f32 0.0, %v5047
  %v5049 = vpop.f32.mrf.mxu0
  %5050 = vmatprep.mubr.f32.mxu0 0.0
  %5051 = vmatmul.mubr.f32.gmra.mxu0 %v4674
  %v5052 = vpop.f32.mrf.mxu0
  %v5053 = vadd.f32 0.0, %v5052
  %v5054 = vpop.f32.mrf.mxu0
  %5055 = vdwg.mxu0
  %5056 = vmatprep.subr.mxu0 0.0
  %5057 = vmatpush1.msra.mxu0 %v297
  %5058 = vmatprep.subr.mxu0 0.0
  %5059 = vmatpush1.msra.mxu0 %v296
  %5060 = vmatprep.subr.mxu0 0.0
  %5061 = vmatpush1.msra.mxu0 %v295
  %5062 = vmatprep.subr.mxu0 0.0
  %5063 = vmatpush1.msra.mxu0 %v294
  %5064 = vmatprep.subr.mxu0 0.0
  %5065 = vmatpush1.msra.mxu0 %v293
  %5066 = vmatprep.subr.mxu0 0.0
  %5067 = vmatpush1.msra.mxu0 %v292
  %5068 = vmatprep.subr.mxu0 0.0
  %5069 = vmatpush1.msra.mxu0 %v291
  %5070 = vmatprep.subr.mxu0 0.0
  %5071 = vmatpush1.msra.mxu0 %v290
  %5072 = vmatprep.subr.mxu0 0.0
  %5073 = vmatpush1.msra.mxu0 %v289
  %5074 = vmatprep.subr.mxu0 0.0
  %5075 = vmatpush1.msra.mxu0 %v288
  %5076 = vmatprep.subr.mxu0 0.0
  %5077 = vmatpush1.msra.mxu0 %v287
  %5078 = vmatprep.subr.mxu0 0.0
  %5079 = vmatpush1.msra.mxu0 %v286
  %5080 = vmatprep.subr.mxu0 0.0
  %5081 = vmatpush1.msra.mxu0 %v285
  %5082 = vmatprep.subr.mxu0 0.0
  %5083 = vmatpush1.msra.mxu0 %v284
  %5084 = vmatprep.subr.mxu0 0.0
  %5085 = vmatpush1.msra.mxu0 %v283
  %5086 = vmatprep.subr.mxu0 0.0
  %5087 = vmatpush1.msra.mxu0 %v282
  %5088 = vmatprep.subr.mxu0 0.0
  %5089 = vmatpush2.msra.mxu0 0.0
  %5090 = vmatprep.subr.mxu0 0.0
  %5091 = vmatpush2.msra.mxu0 0.0
  %5092 = vmatprep.subr.mxu0 0.0
  %5093 = vmatpush2.msra.mxu0 0.0
  %5094 = vmatprep.subr.mxu0 0.0
  %5095 = vmatpush2.msra.mxu0 0.0
  %5096 = vmatprep.subr.mxu0 0.0
  %5097 = vmatpush2.msra.mxu0 0.0
  %5098 = vmatprep.subr.mxu0 0.0
  %5099 = vmatpush2.msra.mxu0 0.0
  %5100 = vmatprep.subr.mxu0 0.0
  %5101 = vmatpush2.msra.mxu0 0.0
  %5102 = vmatprep.subr.mxu0 0.0
  %5103 = vmatpush2.msra.mxu0 0.0
  %5104 = vmatprep.subr.mxu0 0.0
  %5105 = vmatpush2.msra.mxu0 0.0
  %5106 = vmatprep.subr.mxu0 0.0
  %5107 = vmatpush2.msra.mxu0 0.0
  %5108 = vmatprep.subr.mxu0 0.0
  %5109 = vmatpush2.msra.mxu0 0.0
  %5110 = vmatprep.subr.mxu0 0.0
  %5111 = vmatpush2.msra.mxu0 0.0
  %5112 = vmatprep.subr.mxu0 0.0
  %5113 = vmatpush2.msra.mxu0 0.0
  %5114 = vmatprep.subr.mxu0 0.0
  %5115 = vmatpush2.msra.mxu0 0.0
  %5116 = vmatprep.subr.mxu0 0.0
  %5117 = vmatpush2.msra.mxu0 0.0
  %5118 = vmatprep.subr.mxu0 0.0
  %5119 = vmatpush2.msra.mxu0 0.0
  %5120 = vmatprep.mubr.f32.mxu0 0.0
  %5121 = vmatmul.mubr.f32.gmra.mxu0 %v4675
  %v5122 = vpop.f32.mrf.mxu0
  %v5123 = vadd.f32 0.0, %v5122
  %v5124 = vpop.f32.mrf.mxu0
  %5125 = vmatprep.mubr.f32.mxu0 0.0
  %5126 = vmatmul.mubr.f32.gmra.mxu0 %v4676
  %v5127 = vpop.f32.mrf.mxu0
  %v5128 = vadd.f32 0.0, %v5127
  %v5129 = vpop.f32.mrf.mxu0
  %5130 = vdwg.mxu0
  %5131 = vmatprep.subr.mxu0 0.0
  %5132 = vmatpush1.msra.mxu0 %v313
  %5133 = vmatprep.subr.mxu0 0.0
  %5134 = vmatpush1.msra.mxu0 %v312
  %5135 = vmatprep.subr.mxu0 0.0
  %5136 = vmatpush1.msra.mxu0 %v311
  %5137 = vmatprep.subr.mxu0 0.0
  %5138 = vmatpush1.msra.mxu0 %v310
  %5139 = vmatprep.subr.mxu0 0.0
  %5140 = vmatpush1.msra.mxu0 %v309
  %5141 = vmatprep.subr.mxu0 0.0
  %5142 = vmatpush1.msra.mxu0 %v308
  %5143 = vmatprep.subr.mxu0 0.0
  %5144 = vmatpush1.msra.mxu0 %v307
  %5145 = vmatprep.subr.mxu0 0.0
  %5146 = vmatpush1.msra.mxu0 %v306
  %5147 = vmatprep.subr.mxu0 0.0
  %5148 = vmatpush1.msra.mxu0 %v305
  %5149 = vmatprep.subr.mxu0 0.0
  %5150 = vmatpush1.msra.mxu0 %v304
  %5151 = vmatprep.subr.mxu0 0.0
  %5152 = vmatpush1.msra.mxu0 %v303
  %5153 = vmatprep.subr.mxu0 0.0
  %5154 = vmatpush1.msra.mxu0 %v302
  %5155 = vmatprep.subr.mxu0 0.0
  %5156 = vmatpush1.msra.mxu0 %v301
  %5157 = vmatprep.subr.mxu0 0.0
  %5158 = vmatpush1.msra.mxu0 %v300
  %5159 = vmatprep.subr.mxu0 0.0
  %5160 = vmatpush1.msra.mxu0 %v299
  %5161 = vmatprep.subr.mxu0 0.0
  %5162 = vmatpush1.msra.mxu0 %v298
  %5163 = vmatprep.subr.mxu0 0.0
  %5164 = vmatpush2.msra.mxu0 0.0
  %5165 = vmatprep.subr.mxu0 0.0
  %5166 = vmatpush2.msra.mxu0 0.0
  %5167 = vmatprep.subr.mxu0 0.0
  %5168 = vmatpush2.msra.mxu0 0.0
  %5169 = vmatprep.subr.mxu0 0.0
  %5170 = vmatpush2.msra.mxu0 0.0
  %5171 = vmatprep.subr.mxu0 0.0
  %5172 = vmatpush2.msra.mxu0 0.0
  %5173 = vmatprep.subr.mxu0 0.0
  %5174 = vmatpush2.msra.mxu0 0.0
  %5175 = vmatprep.subr.mxu0 0.0
  %5176 = vmatpush2.msra.mxu0 0.0
  %5177 = vmatprep.subr.mxu0 0.0
  %5178 = vmatpush2.msra.mxu0 0.0
  %5179 = vmatprep.subr.mxu0 0.0
  %5180 = vmatpush2.msra.mxu0 0.0
  %5181 = vmatprep.subr.mxu0 0.0
  %5182 = vmatpush2.msra.mxu0 0.0
  %5183 = vmatprep.subr.mxu0 0.0
  %5184 = vmatpush2.msra.mxu0 0.0
  %5185 = vmatprep.subr.mxu0 0.0
  %5186 = vmatpush2.msra.mxu0 0.0
  %5187 = vmatprep.subr.mxu0 0.0
  %5188 = vmatpush2.msra.mxu0 0.0
  %5189 = vmatprep.subr.mxu0 0.0
  %5190 = vmatpush2.msra.mxu0 0.0
  %5191 = vmatprep.subr.mxu0 0.0
  %5192 = vmatpush2.msra.mxu0 0.0
  %5193 = vmatprep.subr.mxu0 0.0
  %5194 = vmatpush2.msra.mxu0 0.0
  %5195 = vmatprep.mubr.f32.mxu0 0.0
  %5196 = vmatmul.mubr.f32.gmra.mxu0 %v4677
  %v5197 = vpop.f32.mrf.mxu0
  %v5198 = vadd.f32 0.0, %v5197
  %v5199 = vpop.f32.mrf.mxu0
  %5200 = vmatprep.mubr.f32.mxu0 0.0
  %5201 = vmatmul.mubr.f32.gmra.mxu0 %v4678
  %v5202 = vpop.f32.mrf.mxu0
  %v5203 = vadd.f32 0.0, %v5202
  %v5204 = vpop.f32.mrf.mxu0
  %5205 = vdwg.mxu0
  %5206 = vmatprep.subr.mxu0 0.0
  %5207 = vmatpush1.msra.mxu0 %v329
  %5208 = vmatprep.subr.mxu0 0.0
  %5209 = vmatpush1.msra.mxu0 %v328
  %5210 = vmatprep.subr.mxu0 0.0
  %5211 = vmatpush1.msra.mxu0 %v327
  %5212 = vmatprep.subr.mxu0 0.0
  %5213 = vmatpush1.msra.mxu0 %v326
  %5214 = vmatprep.subr.mxu0 0.0
  %5215 = vmatpush1.msra.mxu0 %v325
  %5216 = vmatprep.subr.mxu0 0.0
  %5217 = vmatpush1.msra.mxu0 %v324
  %5218 = vmatprep.subr.mxu0 0.0
  %5219 = vmatpush1.msra.mxu0 %v323
  %5220 = vmatprep.subr.mxu0 0.0
  %5221 = vmatpush1.msra.mxu0 %v322
  %5222 = vmatprep.subr.mxu0 0.0
  %5223 = vmatpush1.msra.mxu0 %v321
  %5224 = vmatprep.subr.mxu0 0.0
  %5225 = vmatpush1.msra.mxu0 %v320
  %5226 = vmatprep.subr.mxu0 0.0
  %5227 = vmatpush1.msra.mxu0 %v319
  %5228 = vmatprep.subr.mxu0 0.0
  %5229 = vmatpush1.msra.mxu0 %v318
  %5230 = vmatprep.subr.mxu0 0.0
  %5231 = vmatpush1.msra.mxu0 %v317
  %5232 = vmatprep.subr.mxu0 0.0
  %5233 = vmatpush1.msra.mxu0 %v316
  %5234 = vmatprep.subr.mxu0 0.0
  %5235 = vmatpush1.msra.mxu0 %v315
  %5236 = vmatprep.subr.mxu0 0.0
  %5237 = vmatpush1.msra.mxu0 %v314
  %5238 = vmatprep.subr.mxu0 0.0
  %5239 = vmatpush2.msra.mxu0 0.0
  %5240 = vmatprep.subr.mxu0 0.0
  %5241 = vmatpush2.msra.mxu0 0.0
  %5242 = vmatprep.subr.mxu0 0.0
  %5243 = vmatpush2.msra.mxu0 0.0
  %5244 = vmatprep.subr.mxu0 0.0
  %5245 = vmatpush2.msra.mxu0 0.0
  %5246 = vmatprep.subr.mxu0 0.0
  %5247 = vmatpush2.msra.mxu0 0.0
  %5248 = vmatprep.subr.mxu0 0.0
  %5249 = vmatpush2.msra.mxu0 0.0
  %5250 = vmatprep.subr.mxu0 0.0
  %5251 = vmatpush2.msra.mxu0 0.0
  %5252 = vmatprep.subr.mxu0 0.0
  %5253 = vmatpush2.msra.mxu0 0.0
  %5254 = vmatprep.subr.mxu0 0.0
  %5255 = vmatpush2.msra.mxu0 0.0
  %5256 = vmatprep.subr.mxu0 0.0
  %5257 = vmatpush2.msra.mxu0 0.0
  %5258 = vmatprep.subr.mxu0 0.0
  %5259 = vmatpush2.msra.mxu0 0.0
  %5260 = vmatprep.subr.mxu0 0.0
  %5261 = vmatpush2.msra.mxu0 0.0
  %5262 = vmatprep.subr.mxu0 0.0
  %5263 = vmatpush2.msra.mxu0 0.0
  %5264 = vmatprep.subr.mxu0 0.0
  %5265 = vmatpush2.msra.mxu0 0.0
  %5266 = vmatprep.subr.mxu0 0.0
  %5267 = vmatpush2.msra.mxu0 0.0
  %5268 = vmatprep.subr.mxu0 0.0
  %5269 = vmatpush2.msra.mxu0 0.0
  %5270 = vmatprep.mubr.f32.mxu0 0.0
  %5271 = vmatmul.mubr.f32.gmra.mxu0 %v4679
  %v5272 = vpop.f32.mrf.mxu0
  %v5273 = vadd.f32 0.0, %v5272
  %v5274 = vpop.f32.mrf.mxu0
  %5275 = vmatprep.mubr.f32.mxu0 0.0
  %5276 = vmatmul.mubr.f32.gmra.mxu0 %v4680
  %v5277 = vpop.f32.mrf.mxu0
  %v5278 = vadd.f32 0.0, %v5277
  %v5279 = vpop.f32.mrf.mxu0
  %5280 = vdwg.mxu0
  %5281 = vst.msk [vmem:[%s3 + $0x60] sm:$0xff] %vm1092, %v4748
  %5282 = vst.msk [vmem:[%s3 + $0x68] sm:$0xff] %vm1092, %v4753
  %5283 = vst.msk [vmem:[%s3 + $0xe0] sm:$0xff] %vm1092, %v4823
  %5284 = vst.msk [vmem:[%s3 + $0xe8] sm:$0xff] %vm1092, %v4828
  %5285 = vst.msk [vmem:[%s3 + $0x160] sm:$0xff] %vm1092, %v4898
  %5286 = vst.msk [vmem:[%s3 + $0x168] sm:$0xff] %vm1092, %v4903
  %5287 = vst.msk [vmem:[%s3 + $0x1e0] sm:$0xff] %vm1092, %v4973
  %5288 = vst.msk [vmem:[%s3 + $0x1e8] sm:$0xff] %vm1092, %v4978
  %5289 = vst.msk [vmem:[%s3 + $0x260] sm:$0xff] %vm1092, %v5048
  %5290 = vst.msk [vmem:[%s3 + $0x268] sm:$0xff] %vm1092, %v5053
  %5291 = vst.msk [vmem:[%s3 + $0x2e0] sm:$0xff] %vm1092, %v5123
  %5292 = vst.msk [vmem:[%s3 + $0x2e8] sm:$0xff] %vm1092, %v5128
  %5293 = vst.msk [vmem:[%s3 + $0x360] sm:$0xff] %vm1092, %v5198
  %5294 = vst.msk [vmem:[%s3 + $0x368] sm:$0xff] %vm1092, %v5203
  %5295 = vst.msk [vmem:[%s3 + $0x3e0] sm:$0xff] %vm1092, %v5273
  %5296 = vst.msk [vmem:[%s3 + $0x3e8] sm:$0xff] %vm1092, %v5278
  %v5297 = vadd.f32 %v200, 112.0
  %v5298 = vadd.f32 %v201, 112.0
  %vm5299 = vcmp.ge.f32.partialorder %v335, %v5297
  %vm5300 = vcmp.ge.f32.partialorder %v335, %v5298
  %vm5301 = vcmp.ge.f32.partialorder %v339, %v5297
  %vm5302 = vcmp.ge.f32.partialorder %v339, %v5298
  %vm5303 = vcmp.ge.f32.partialorder %v343, %v5297
  %vm5304 = vcmp.ge.f32.partialorder %v343, %v5298
  %vm5305 = vcmp.ge.f32.partialorder %v347, %v5297
  %vm5306 = vcmp.ge.f32.partialorder %v347, %v5298
  %vm5307 = vcmp.ge.f32.partialorder %v351, %v5297
  %vm5308 = vcmp.ge.f32.partialorder %v351, %v5298
  %vm5309 = vcmp.ge.f32.partialorder %v355, %v5297
  %vm5310 = vcmp.ge.f32.partialorder %v355, %v5298
  %vm5311 = vcmp.ge.f32.partialorder %v359, %v5297
  %vm5312 = vcmp.ge.f32.partialorder %v359, %v5298
  %vm5313 = vcmp.ge.f32.partialorder %v363, %v5297
  %vm5314 = vcmp.ge.f32.partialorder %v363, %v5298
  %vm5315 = vcmp.lt.f32.partialorder %v391, %v5297
  %vm5316 = vcmp.lt.f32.partialorder %v391, %v5298
  %vm5317 = vcmp.lt.f32.partialorder %v395, %v5297
  %vm5318 = vcmp.lt.f32.partialorder %v395, %v5298
  %vm5319 = vcmp.lt.f32.partialorder %v399, %v5297
  %vm5320 = vcmp.lt.f32.partialorder %v399, %v5298
  %vm5321 = vcmp.lt.f32.partialorder %v403, %v5297
  %vm5322 = vcmp.lt.f32.partialorder %v403, %v5298
  %vm5323 = vcmp.lt.f32.partialorder %v407, %v5297
  %vm5324 = vcmp.lt.f32.partialorder %v407, %v5298
  %vm5325 = vcmp.lt.f32.partialorder %v411, %v5297
  %vm5326 = vcmp.lt.f32.partialorder %v411, %v5298
  %vm5327 = vcmp.lt.f32.partialorder %v415, %v5297
  %vm5328 = vcmp.lt.f32.partialorder %v415, %v5298
  %vm5329 = vcmp.lt.f32.partialorder %v419, %v5297
  %vm5330 = vcmp.lt.f32.partialorder %v419, %v5298
  %vm5331 = vmand %vm5299, %vm5315
  %vm5332 = vmand %vm5300, %vm5316
  %vm5333 = vmand %vm5301, %vm5317
  %vm5334 = vmand %vm5302, %vm5318
  %vm5335 = vmand %vm5303, %vm5319
  %vm5336 = vmand %vm5304, %vm5320
  %vm5337 = vmand %vm5305, %vm5321
  %vm5338 = vmand %vm5306, %vm5322
  %vm5339 = vmand %vm5307, %vm5323
  %vm5340 = vmand %vm5308, %vm5324
  %vm5341 = vmand %vm5309, %vm5325
  %vm5342 = vmand %vm5310, %vm5326
  %vm5343 = vmand %vm5311, %vm5327
  %vm5344 = vmand %vm5312, %vm5328
  %vm5345 = vmand %vm5313, %vm5329
  %vm5346 = vmand %vm5314, %vm5330
  %v5347 = vsel %vm5331, 1, 0
  %v5348 = vsel %vm5332, 1, 0
  %v5349 = vsel %vm5333, 1, 0
  %v5350 = vsel %vm5334, 1, 0
  %v5351 = vsel %vm5335, 1, 0
  %v5352 = vsel %vm5336, 1, 0
  %v5353 = vsel %vm5337, 1, 0
  %v5354 = vsel %vm5338, 1, 0
  %v5355 = vsel %vm5339, 1, 0
  %v5356 = vsel %vm5340, 1, 0
  %v5357 = vsel %vm5341, 1, 0
  %v5358 = vsel %vm5342, 1, 0
  %v5359 = vsel %vm5343, 1, 0
  %v5360 = vsel %vm5344, 1, 0
  %v5361 = vsel %vm5345, 1, 0
  %v5362 = vsel %vm5346, 1, 0
  %v5363 = vcvt.s32.f32 %v5347
  %v5364 = vcvt.s32.f32 %v5348
  %v5365 = vcvt.s32.f32 %v5349
  %v5366 = vcvt.s32.f32 %v5350
  %v5367 = vcvt.s32.f32 %v5351
  %v5368 = vcvt.s32.f32 %v5352
  %v5369 = vcvt.s32.f32 %v5353
  %v5370 = vcvt.s32.f32 %v5354
  %v5371 = vcvt.s32.f32 %v5355
  %v5372 = vcvt.s32.f32 %v5356
  %v5373 = vcvt.s32.f32 %v5357
  %v5374 = vcvt.s32.f32 %v5358
  %v5375 = vcvt.s32.f32 %v5359
  %v5376 = vcvt.s32.f32 %v5360
  %v5377 = vcvt.s32.f32 %v5361
  %v5378 = vcvt.s32.f32 %v5362
  %5379 = vmatprep.subr.mxu0 0.0
  %5380 = vmatpush1.msra.mxu0 %v217
  %5381 = vmatprep.subr.mxu0 0.0
  %5382 = vmatpush1.msra.mxu0 %v216
  %5383 = vmatprep.subr.mxu0 0.0
  %5384 = vmatpush1.msra.mxu0 %v215
  %5385 = vmatprep.subr.mxu0 0.0
  %5386 = vmatpush1.msra.mxu0 %v214
  %5387 = vmatprep.subr.mxu0 0.0
  %5388 = vmatpush1.msra.mxu0 %v213
  %5389 = vmatprep.subr.mxu0 0.0
  %5390 = vmatpush1.msra.mxu0 %v212
  %5391 = vmatprep.subr.mxu0 0.0
  %5392 = vmatpush1.msra.mxu0 %v211
  %5393 = vmatprep.subr.mxu0 0.0
  %5394 = vmatpush1.msra.mxu0 %v210
  %5395 = vmatprep.subr.mxu0 0.0
  %5396 = vmatpush1.msra.mxu0 %v209
  %5397 = vmatprep.subr.mxu0 0.0
  %5398 = vmatpush1.msra.mxu0 %v208
  %5399 = vmatprep.subr.mxu0 0.0
  %5400 = vmatpush1.msra.mxu0 %v207
  %5401 = vmatprep.subr.mxu0 0.0
  %5402 = vmatpush1.msra.mxu0 %v206
  %5403 = vmatprep.subr.mxu0 0.0
  %5404 = vmatpush1.msra.mxu0 %v205
  %5405 = vmatprep.subr.mxu0 0.0
  %5406 = vmatpush1.msra.mxu0 %v204
  %5407 = vmatprep.subr.mxu0 0.0
  %5408 = vmatpush1.msra.mxu0 %v203
  %5409 = vmatprep.subr.mxu0 0.0
  %5410 = vmatpush1.msra.mxu0 %v202
  %5411 = vmatprep.subr.mxu0 0.0
  %5412 = vmatpush2.msra.mxu0 0.0
  %5413 = vmatprep.subr.mxu0 0.0
  %5414 = vmatpush2.msra.mxu0 0.0
  %5415 = vmatprep.subr.mxu0 0.0
  %5416 = vmatpush2.msra.mxu0 0.0
  %5417 = vmatprep.subr.mxu0 0.0
  %5418 = vmatpush2.msra.mxu0 0.0
  %5419 = vmatprep.subr.mxu0 0.0
  %5420 = vmatpush2.msra.mxu0 0.0
  %5421 = vmatprep.subr.mxu0 0.0
  %5422 = vmatpush2.msra.mxu0 0.0
  %5423 = vmatprep.subr.mxu0 0.0
  %5424 = vmatpush2.msra.mxu0 0.0
  %5425 = vmatprep.subr.mxu0 0.0
  %5426 = vmatpush2.msra.mxu0 0.0
  %5427 = vmatprep.subr.mxu0 0.0
  %5428 = vmatpush2.msra.mxu0 0.0
  %5429 = vmatprep.subr.mxu0 0.0
  %5430 = vmatpush2.msra.mxu0 0.0
  %5431 = vmatprep.subr.mxu0 0.0
  %5432 = vmatpush2.msra.mxu0 0.0
  %5433 = vmatprep.subr.mxu0 0.0
  %5434 = vmatpush2.msra.mxu0 0.0
  %5435 = vmatprep.subr.mxu0 0.0
  %5436 = vmatpush2.msra.mxu0 0.0
  %5437 = vmatprep.subr.mxu0 0.0
  %5438 = vmatpush2.msra.mxu0 0.0
  %5439 = vmatprep.subr.mxu0 0.0
  %5440 = vmatpush2.msra.mxu0 0.0
  %5441 = vmatprep.subr.mxu0 0.0
  %5442 = vmatpush2.msra.mxu0 0.0
  %5443 = vmatprep.mubr.f32.mxu0 0.0
  %5444 = vmatmul.mubr.f32.gmra.mxu0 %v5363
  %v5445 = vpop.f32.mrf.mxu0
  %v5446 = vadd.f32 0.0, %v5445
  %v5447 = vpop.f32.mrf.mxu0
  %5448 = vmatprep.mubr.f32.mxu0 0.0
  %5449 = vmatmul.mubr.f32.gmra.mxu0 %v5364
  %v5450 = vpop.f32.mrf.mxu0
  %v5451 = vadd.f32 0.0, %v5450
  %v5452 = vpop.f32.mrf.mxu0
  %5453 = vdwg.mxu0
  %5454 = vmatprep.subr.mxu0 0.0
  %5455 = vmatpush1.msra.mxu0 %v233
  %5456 = vmatprep.subr.mxu0 0.0
  %5457 = vmatpush1.msra.mxu0 %v232
  %5458 = vmatprep.subr.mxu0 0.0
  %5459 = vmatpush1.msra.mxu0 %v231
  %5460 = vmatprep.subr.mxu0 0.0
  %5461 = vmatpush1.msra.mxu0 %v230
  %5462 = vmatprep.subr.mxu0 0.0
  %5463 = vmatpush1.msra.mxu0 %v229
  %5464 = vmatprep.subr.mxu0 0.0
  %5465 = vmatpush1.msra.mxu0 %v228
  %5466 = vmatprep.subr.mxu0 0.0
  %5467 = vmatpush1.msra.mxu0 %v227
  %5468 = vmatprep.subr.mxu0 0.0
  %5469 = vmatpush1.msra.mxu0 %v226
  %5470 = vmatprep.subr.mxu0 0.0
  %5471 = vmatpush1.msra.mxu0 %v225
  %5472 = vmatprep.subr.mxu0 0.0
  %5473 = vmatpush1.msra.mxu0 %v224
  %5474 = vmatprep.subr.mxu0 0.0
  %5475 = vmatpush1.msra.mxu0 %v223
  %5476 = vmatprep.subr.mxu0 0.0
  %5477 = vmatpush1.msra.mxu0 %v222
  %5478 = vmatprep.subr.mxu0 0.0
  %5479 = vmatpush1.msra.mxu0 %v221
  %5480 = vmatprep.subr.mxu0 0.0
  %5481 = vmatpush1.msra.mxu0 %v220
  %5482 = vmatprep.subr.mxu0 0.0
  %5483 = vmatpush1.msra.mxu0 %v219
  %5484 = vmatprep.subr.mxu0 0.0
  %5485 = vmatpush1.msra.mxu0 %v218
  %5486 = vmatprep.subr.mxu0 0.0
  %5487 = vmatpush2.msra.mxu0 0.0
  %5488 = vmatprep.subr.mxu0 0.0
  %5489 = vmatpush2.msra.mxu0 0.0
  %5490 = vmatprep.subr.mxu0 0.0
  %5491 = vmatpush2.msra.mxu0 0.0
  %5492 = vmatprep.subr.mxu0 0.0
  %5493 = vmatpush2.msra.mxu0 0.0
  %5494 = vmatprep.subr.mxu0 0.0
  %5495 = vmatpush2.msra.mxu0 0.0
  %5496 = vmatprep.subr.mxu0 0.0
  %5497 = vmatpush2.msra.mxu0 0.0
  %5498 = vmatprep.subr.mxu0 0.0
  %5499 = vmatpush2.msra.mxu0 0.0
  %5500 = vmatprep.subr.mxu0 0.0
  %5501 = vmatpush2.msra.mxu0 0.0
  %5502 = vmatprep.subr.mxu0 0.0
  %5503 = vmatpush2.msra.mxu0 0.0
  %5504 = vmatprep.subr.mxu0 0.0
  %5505 = vmatpush2.msra.mxu0 0.0
  %5506 = vmatprep.subr.mxu0 0.0
  %5507 = vmatpush2.msra.mxu0 0.0
  %5508 = vmatprep.subr.mxu0 0.0
  %5509 = vmatpush2.msra.mxu0 0.0
  %5510 = vmatprep.subr.mxu0 0.0
  %5511 = vmatpush2.msra.mxu0 0.0
  %5512 = vmatprep.subr.mxu0 0.0
  %5513 = vmatpush2.msra.mxu0 0.0
  %5514 = vmatprep.subr.mxu0 0.0
  %5515 = vmatpush2.msra.mxu0 0.0
  %5516 = vmatprep.subr.mxu0 0.0
  %5517 = vmatpush2.msra.mxu0 0.0
  %5518 = vmatprep.mubr.f32.mxu0 0.0
  %5519 = vmatmul.mubr.f32.gmra.mxu0 %v5365
  %v5520 = vpop.f32.mrf.mxu0
  %v5521 = vadd.f32 0.0, %v5520
  %v5522 = vpop.f32.mrf.mxu0
  %5523 = vmatprep.mubr.f32.mxu0 0.0
  %5524 = vmatmul.mubr.f32.gmra.mxu0 %v5366
  %v5525 = vpop.f32.mrf.mxu0
  %v5526 = vadd.f32 0.0, %v5525
  %v5527 = vpop.f32.mrf.mxu0
  %5528 = vdwg.mxu0
  %5529 = vmatprep.subr.mxu0 0.0
  %5530 = vmatpush1.msra.mxu0 %v249
  %5531 = vmatprep.subr.mxu0 0.0
  %5532 = vmatpush1.msra.mxu0 %v248
  %5533 = vmatprep.subr.mxu0 0.0
  %5534 = vmatpush1.msra.mxu0 %v247
  %5535 = vmatprep.subr.mxu0 0.0
  %5536 = vmatpush1.msra.mxu0 %v246
  %5537 = vmatprep.subr.mxu0 0.0
  %5538 = vmatpush1.msra.mxu0 %v245
  %5539 = vmatprep.subr.mxu0 0.0
  %5540 = vmatpush1.msra.mxu0 %v244
  %5541 = vmatprep.subr.mxu0 0.0
  %5542 = vmatpush1.msra.mxu0 %v243
  %5543 = vmatprep.subr.mxu0 0.0
  %5544 = vmatpush1.msra.mxu0 %v242
  %5545 = vmatprep.subr.mxu0 0.0
  %5546 = vmatpush1.msra.mxu0 %v241
  %5547 = vmatprep.subr.mxu0 0.0
  %5548 = vmatpush1.msra.mxu0 %v240
  %5549 = vmatprep.subr.mxu0 0.0
  %5550 = vmatpush1.msra.mxu0 %v239
  %5551 = vmatprep.subr.mxu0 0.0
  %5552 = vmatpush1.msra.mxu0 %v238
  %5553 = vmatprep.subr.mxu0 0.0
  %5554 = vmatpush1.msra.mxu0 %v237
  %5555 = vmatprep.subr.mxu0 0.0
  %5556 = vmatpush1.msra.mxu0 %v236
  %5557 = vmatprep.subr.mxu0 0.0
  %5558 = vmatpush1.msra.mxu0 %v235
  %5559 = vmatprep.subr.mxu0 0.0
  %5560 = vmatpush1.msra.mxu0 %v234
  %5561 = vmatprep.subr.mxu0 0.0
  %5562 = vmatpush2.msra.mxu0 0.0
  %5563 = vmatprep.subr.mxu0 0.0
  %5564 = vmatpush2.msra.mxu0 0.0
  %5565 = vmatprep.subr.mxu0 0.0
  %5566 = vmatpush2.msra.mxu0 0.0
  %5567 = vmatprep.subr.mxu0 0.0
  %5568 = vmatpush2.msra.mxu0 0.0
  %5569 = vmatprep.subr.mxu0 0.0
  %5570 = vmatpush2.msra.mxu0 0.0
  %5571 = vmatprep.subr.mxu0 0.0
  %5572 = vmatpush2.msra.mxu0 0.0
  %5573 = vmatprep.subr.mxu0 0.0
  %5574 = vmatpush2.msra.mxu0 0.0
  %5575 = vmatprep.subr.mxu0 0.0
  %5576 = vmatpush2.msra.mxu0 0.0
  %5577 = vmatprep.subr.mxu0 0.0
  %5578 = vmatpush2.msra.mxu0 0.0
  %5579 = vmatprep.subr.mxu0 0.0
  %5580 = vmatpush2.msra.mxu0 0.0
  %5581 = vmatprep.subr.mxu0 0.0
  %5582 = vmatpush2.msra.mxu0 0.0
  %5583 = vmatprep.subr.mxu0 0.0
  %5584 = vmatpush2.msra.mxu0 0.0
  %5585 = vmatprep.subr.mxu0 0.0
  %5586 = vmatpush2.msra.mxu0 0.0
  %5587 = vmatprep.subr.mxu0 0.0
  %5588 = vmatpush2.msra.mxu0 0.0
  %5589 = vmatprep.subr.mxu0 0.0
  %5590 = vmatpush2.msra.mxu0 0.0
  %5591 = vmatprep.subr.mxu0 0.0
  %5592 = vmatpush2.msra.mxu0 0.0
  %5593 = vmatprep.mubr.f32.mxu0 0.0
  %5594 = vmatmul.mubr.f32.gmra.mxu0 %v5367
  %v5595 = vpop.f32.mrf.mxu0
  %v5596 = vadd.f32 0.0, %v5595
  %v5597 = vpop.f32.mrf.mxu0
  %5598 = vmatprep.mubr.f32.mxu0 0.0
  %5599 = vmatmul.mubr.f32.gmra.mxu0 %v5368
  %v5600 = vpop.f32.mrf.mxu0
  %v5601 = vadd.f32 0.0, %v5600
  %v5602 = vpop.f32.mrf.mxu0
  %5603 = vdwg.mxu0
  %5604 = vmatprep.subr.mxu0 0.0
  %5605 = vmatpush1.msra.mxu0 %v265
  %5606 = vmatprep.subr.mxu0 0.0
  %5607 = vmatpush1.msra.mxu0 %v264
  %5608 = vmatprep.subr.mxu0 0.0
  %5609 = vmatpush1.msra.mxu0 %v263
  %5610 = vmatprep.subr.mxu0 0.0
  %5611 = vmatpush1.msra.mxu0 %v262
  %5612 = vmatprep.subr.mxu0 0.0
  %5613 = vmatpush1.msra.mxu0 %v261
  %5614 = vmatprep.subr.mxu0 0.0
  %5615 = vmatpush1.msra.mxu0 %v260
  %5616 = vmatprep.subr.mxu0 0.0
  %5617 = vmatpush1.msra.mxu0 %v259
  %5618 = vmatprep.subr.mxu0 0.0
  %5619 = vmatpush1.msra.mxu0 %v258
  %5620 = vmatprep.subr.mxu0 0.0
  %5621 = vmatpush1.msra.mxu0 %v257
  %5622 = vmatprep.subr.mxu0 0.0
  %5623 = vmatpush1.msra.mxu0 %v256
  %5624 = vmatprep.subr.mxu0 0.0
  %5625 = vmatpush1.msra.mxu0 %v255
  %5626 = vmatprep.subr.mxu0 0.0
  %5627 = vmatpush1.msra.mxu0 %v254
  %5628 = vmatprep.subr.mxu0 0.0
  %5629 = vmatpush1.msra.mxu0 %v253
  %5630 = vmatprep.subr.mxu0 0.0
  %5631 = vmatpush1.msra.mxu0 %v252
  %5632 = vmatprep.subr.mxu0 0.0
  %5633 = vmatpush1.msra.mxu0 %v251
  %5634 = vmatprep.subr.mxu0 0.0
  %5635 = vmatpush1.msra.mxu0 %v250
  %5636 = vmatprep.subr.mxu0 0.0
  %5637 = vmatpush2.msra.mxu0 0.0
  %5638 = vmatprep.subr.mxu0 0.0
  %5639 = vmatpush2.msra.mxu0 0.0
  %5640 = vmatprep.subr.mxu0 0.0
  %5641 = vmatpush2.msra.mxu0 0.0
  %5642 = vmatprep.subr.mxu0 0.0
  %5643 = vmatpush2.msra.mxu0 0.0
  %5644 = vmatprep.subr.mxu0 0.0
  %5645 = vmatpush2.msra.mxu0 0.0
  %5646 = vmatprep.subr.mxu0 0.0
  %5647 = vmatpush2.msra.mxu0 0.0
  %5648 = vmatprep.subr.mxu0 0.0
  %5649 = vmatpush2.msra.mxu0 0.0
  %5650 = vmatprep.subr.mxu0 0.0
  %5651 = vmatpush2.msra.mxu0 0.0
  %5652 = vmatprep.subr.mxu0 0.0
  %5653 = vmatpush2.msra.mxu0 0.0
  %5654 = vmatprep.subr.mxu0 0.0
  %5655 = vmatpush2.msra.mxu0 0.0
  %5656 = vmatprep.subr.mxu0 0.0
  %5657 = vmatpush2.msra.mxu0 0.0
  %5658 = vmatprep.subr.mxu0 0.0
  %5659 = vmatpush2.msra.mxu0 0.0
  %5660 = vmatprep.subr.mxu0 0.0
  %5661 = vmatpush2.msra.mxu0 0.0
  %5662 = vmatprep.subr.mxu0 0.0
  %5663 = vmatpush2.msra.mxu0 0.0
  %5664 = vmatprep.subr.mxu0 0.0
  %5665 = vmatpush2.msra.mxu0 0.0
  %5666 = vmatprep.subr.mxu0 0.0
  %5667 = vmatpush2.msra.mxu0 0.0
  %5668 = vmatprep.mubr.f32.mxu0 0.0
  %5669 = vmatmul.mubr.f32.gmra.mxu0 %v5369
  %v5670 = vpop.f32.mrf.mxu0
  %v5671 = vadd.f32 0.0, %v5670
  %v5672 = vpop.f32.mrf.mxu0
  %5673 = vmatprep.mubr.f32.mxu0 0.0
  %5674 = vmatmul.mubr.f32.gmra.mxu0 %v5370
  %v5675 = vpop.f32.mrf.mxu0
  %v5676 = vadd.f32 0.0, %v5675
  %v5677 = vpop.f32.mrf.mxu0
  %5678 = vdwg.mxu0
  %5679 = vmatprep.subr.mxu0 0.0
  %5680 = vmatpush1.msra.mxu0 %v281
  %5681 = vmatprep.subr.mxu0 0.0
  %5682 = vmatpush1.msra.mxu0 %v280
  %5683 = vmatprep.subr.mxu0 0.0
  %5684 = vmatpush1.msra.mxu0 %v279
  %5685 = vmatprep.subr.mxu0 0.0
  %5686 = vmatpush1.msra.mxu0 %v278
  %5687 = vmatprep.subr.mxu0 0.0
  %5688 = vmatpush1.msra.mxu0 %v277
  %5689 = vmatprep.subr.mxu0 0.0
  %5690 = vmatpush1.msra.mxu0 %v276
  %5691 = vmatprep.subr.mxu0 0.0
  %5692 = vmatpush1.msra.mxu0 %v275
  %5693 = vmatprep.subr.mxu0 0.0
  %5694 = vmatpush1.msra.mxu0 %v274
  %5695 = vmatprep.subr.mxu0 0.0
  %5696 = vmatpush1.msra.mxu0 %v273
  %5697 = vmatprep.subr.mxu0 0.0
  %5698 = vmatpush1.msra.mxu0 %v272
  %5699 = vmatprep.subr.mxu0 0.0
  %5700 = vmatpush1.msra.mxu0 %v271
  %5701 = vmatprep.subr.mxu0 0.0
  %5702 = vmatpush1.msra.mxu0 %v270
  %5703 = vmatprep.subr.mxu0 0.0
  %5704 = vmatpush1.msra.mxu0 %v269
  %5705 = vmatprep.subr.mxu0 0.0
  %5706 = vmatpush1.msra.mxu0 %v268
  %5707 = vmatprep.subr.mxu0 0.0
  %5708 = vmatpush1.msra.mxu0 %v267
  %5709 = vmatprep.subr.mxu0 0.0
  %5710 = vmatpush1.msra.mxu0 %v266
  %5711 = vmatprep.subr.mxu0 0.0
  %5712 = vmatpush2.msra.mxu0 0.0
  %5713 = vmatprep.subr.mxu0 0.0
  %5714 = vmatpush2.msra.mxu0 0.0
  %5715 = vmatprep.subr.mxu0 0.0
  %5716 = vmatpush2.msra.mxu0 0.0
  %5717 = vmatprep.subr.mxu0 0.0
  %5718 = vmatpush2.msra.mxu0 0.0
  %5719 = vmatprep.subr.mxu0 0.0
  %5720 = vmatpush2.msra.mxu0 0.0
  %5721 = vmatprep.subr.mxu0 0.0
  %5722 = vmatpush2.msra.mxu0 0.0
  %5723 = vmatprep.subr.mxu0 0.0
  %5724 = vmatpush2.msra.mxu0 0.0
  %5725 = vmatprep.subr.mxu0 0.0
  %5726 = vmatpush2.msra.mxu0 0.0
  %5727 = vmatprep.subr.mxu0 0.0
  %5728 = vmatpush2.msra.mxu0 0.0
  %5729 = vmatprep.subr.mxu0 0.0
  %5730 = vmatpush2.msra.mxu0 0.0
  %5731 = vmatprep.subr.mxu0 0.0
  %5732 = vmatpush2.msra.mxu0 0.0
  %5733 = vmatprep.subr.mxu0 0.0
  %5734 = vmatpush2.msra.mxu0 0.0
  %5735 = vmatprep.subr.mxu0 0.0
  %5736 = vmatpush2.msra.mxu0 0.0
  %5737 = vmatprep.subr.mxu0 0.0
  %5738 = vmatpush2.msra.mxu0 0.0
  %5739 = vmatprep.subr.mxu0 0.0
  %5740 = vmatpush2.msra.mxu0 0.0
  %5741 = vmatprep.subr.mxu0 0.0
  %5742 = vmatpush2.msra.mxu0 0.0
  %5743 = vmatprep.mubr.f32.mxu0 0.0
  %5744 = vmatmul.mubr.f32.gmra.mxu0 %v5371
  %v5745 = vpop.f32.mrf.mxu0
  %v5746 = vadd.f32 0.0, %v5745
  %v5747 = vpop.f32.mrf.mxu0
  %5748 = vmatprep.mubr.f32.mxu0 0.0
  %5749 = vmatmul.mubr.f32.gmra.mxu0 %v5372
  %v5750 = vpop.f32.mrf.mxu0
  %v5751 = vadd.f32 0.0, %v5750
  %v5752 = vpop.f32.mrf.mxu0
  %5753 = vdwg.mxu0
  %5754 = vmatprep.subr.mxu0 0.0
  %5755 = vmatpush1.msra.mxu0 %v297
  %5756 = vmatprep.subr.mxu0 0.0
  %5757 = vmatpush1.msra.mxu0 %v296
  %5758 = vmatprep.subr.mxu0 0.0
  %5759 = vmatpush1.msra.mxu0 %v295
  %5760 = vmatprep.subr.mxu0 0.0
  %5761 = vmatpush1.msra.mxu0 %v294
  %5762 = vmatprep.subr.mxu0 0.0
  %5763 = vmatpush1.msra.mxu0 %v293
  %5764 = vmatprep.subr.mxu0 0.0
  %5765 = vmatpush1.msra.mxu0 %v292
  %5766 = vmatprep.subr.mxu0 0.0
  %5767 = vmatpush1.msra.mxu0 %v291
  %5768 = vmatprep.subr.mxu0 0.0
  %5769 = vmatpush1.msra.mxu0 %v290
  %5770 = vmatprep.subr.mxu0 0.0
  %5771 = vmatpush1.msra.mxu0 %v289
  %5772 = vmatprep.subr.mxu0 0.0
  %5773 = vmatpush1.msra.mxu0 %v288
  %5774 = vmatprep.subr.mxu0 0.0
  %5775 = vmatpush1.msra.mxu0 %v287
  %5776 = vmatprep.subr.mxu0 0.0
  %5777 = vmatpush1.msra.mxu0 %v286
  %5778 = vmatprep.subr.mxu0 0.0
  %5779 = vmatpush1.msra.mxu0 %v285
  %5780 = vmatprep.subr.mxu0 0.0
  %5781 = vmatpush1.msra.mxu0 %v284
  %5782 = vmatprep.subr.mxu0 0.0
  %5783 = vmatpush1.msra.mxu0 %v283
  %5784 = vmatprep.subr.mxu0 0.0
  %5785 = vmatpush1.msra.mxu0 %v282
  %5786 = vmatprep.subr.mxu0 0.0
  %5787 = vmatpush2.msra.mxu0 0.0
  %5788 = vmatprep.subr.mxu0 0.0
  %5789 = vmatpush2.msra.mxu0 0.0
  %5790 = vmatprep.subr.mxu0 0.0
  %5791 = vmatpush2.msra.mxu0 0.0
  %5792 = vmatprep.subr.mxu0 0.0
  %5793 = vmatpush2.msra.mxu0 0.0
  %5794 = vmatprep.subr.mxu0 0.0
  %5795 = vmatpush2.msra.mxu0 0.0
  %5796 = vmatprep.subr.mxu0 0.0
  %5797 = vmatpush2.msra.mxu0 0.0
  %5798 = vmatprep.subr.mxu0 0.0
  %5799 = vmatpush2.msra.mxu0 0.0
  %5800 = vmatprep.subr.mxu0 0.0
  %5801 = vmatpush2.msra.mxu0 0.0
  %5802 = vmatprep.subr.mxu0 0.0
  %5803 = vmatpush2.msra.mxu0 0.0
  %5804 = vmatprep.subr.mxu0 0.0
  %5805 = vmatpush2.msra.mxu0 0.0
  %5806 = vmatprep.subr.mxu0 0.0
  %5807 = vmatpush2.msra.mxu0 0.0
  %5808 = vmatprep.subr.mxu0 0.0
  %5809 = vmatpush2.msra.mxu0 0.0
  %5810 = vmatprep.subr.mxu0 0.0
  %5811 = vmatpush2.msra.mxu0 0.0
  %5812 = vmatprep.subr.mxu0 0.0
  %5813 = vmatpush2.msra.mxu0 0.0
  %5814 = vmatprep.subr.mxu0 0.0
  %5815 = vmatpush2.msra.mxu0 0.0
  %5816 = vmatprep.subr.mxu0 0.0
  %5817 = vmatpush2.msra.mxu0 0.0
  %5818 = vmatprep.mubr.f32.mxu0 0.0
  %5819 = vmatmul.mubr.f32.gmra.mxu0 %v5373
  %v5820 = vpop.f32.mrf.mxu0
  %v5821 = vadd.f32 0.0, %v5820
  %v5822 = vpop.f32.mrf.mxu0
  %5823 = vmatprep.mubr.f32.mxu0 0.0
  %5824 = vmatmul.mubr.f32.gmra.mxu0 %v5374
  %v5825 = vpop.f32.mrf.mxu0
  %v5826 = vadd.f32 0.0, %v5825
  %v5827 = vpop.f32.mrf.mxu0
  %5828 = vdwg.mxu0
  %5829 = vmatprep.subr.mxu0 0.0
  %5830 = vmatpush1.msra.mxu0 %v313
  %5831 = vmatprep.subr.mxu0 0.0
  %5832 = vmatpush1.msra.mxu0 %v312
  %5833 = vmatprep.subr.mxu0 0.0
  %5834 = vmatpush1.msra.mxu0 %v311
  %5835 = vmatprep.subr.mxu0 0.0
  %5836 = vmatpush1.msra.mxu0 %v310
  %5837 = vmatprep.subr.mxu0 0.0
  %5838 = vmatpush1.msra.mxu0 %v309
  %5839 = vmatprep.subr.mxu0 0.0
  %5840 = vmatpush1.msra.mxu0 %v308
  %5841 = vmatprep.subr.mxu0 0.0
  %5842 = vmatpush1.msra.mxu0 %v307
  %5843 = vmatprep.subr.mxu0 0.0
  %5844 = vmatpush1.msra.mxu0 %v306
  %5845 = vmatprep.subr.mxu0 0.0
  %5846 = vmatpush1.msra.mxu0 %v305
  %5847 = vmatprep.subr.mxu0 0.0
  %5848 = vmatpush1.msra.mxu0 %v304
  %5849 = vmatprep.subr.mxu0 0.0
  %5850 = vmatpush1.msra.mxu0 %v303
  %5851 = vmatprep.subr.mxu0 0.0
  %5852 = vmatpush1.msra.mxu0 %v302
  %5853 = vmatprep.subr.mxu0 0.0
  %5854 = vmatpush1.msra.mxu0 %v301
  %5855 = vmatprep.subr.mxu0 0.0
  %5856 = vmatpush1.msra.mxu0 %v300
  %5857 = vmatprep.subr.mxu0 0.0
  %5858 = vmatpush1.msra.mxu0 %v299
  %5859 = vmatprep.subr.mxu0 0.0
  %5860 = vmatpush1.msra.mxu0 %v298
  %5861 = vmatprep.subr.mxu0 0.0
  %5862 = vmatpush2.msra.mxu0 0.0
  %5863 = vmatprep.subr.mxu0 0.0
  %5864 = vmatpush2.msra.mxu0 0.0
  %5865 = vmatprep.subr.mxu0 0.0
  %5866 = vmatpush2.msra.mxu0 0.0
  %5867 = vmatprep.subr.mxu0 0.0
  %5868 = vmatpush2.msra.mxu0 0.0
  %5869 = vmatprep.subr.mxu0 0.0
  %5870 = vmatpush2.msra.mxu0 0.0
  %5871 = vmatprep.subr.mxu0 0.0
  %5872 = vmatpush2.msra.mxu0 0.0
  %5873 = vmatprep.subr.mxu0 0.0
  %5874 = vmatpush2.msra.mxu0 0.0
  %5875 = vmatprep.subr.mxu0 0.0
  %5876 = vmatpush2.msra.mxu0 0.0
  %5877 = vmatprep.subr.mxu0 0.0
  %5878 = vmatpush2.msra.mxu0 0.0
  %5879 = vmatprep.subr.mxu0 0.0
  %5880 = vmatpush2.msra.mxu0 0.0
  %5881 = vmatprep.subr.mxu0 0.0
  %5882 = vmatpush2.msra.mxu0 0.0
  %5883 = vmatprep.subr.mxu0 0.0
  %5884 = vmatpush2.msra.mxu0 0.0
  %5885 = vmatprep.subr.mxu0 0.0
  %5886 = vmatpush2.msra.mxu0 0.0
  %5887 = vmatprep.subr.mxu0 0.0
  %5888 = vmatpush2.msra.mxu0 0.0
  %5889 = vmatprep.subr.mxu0 0.0
  %5890 = vmatpush2.msra.mxu0 0.0
  %5891 = vmatprep.subr.mxu0 0.0
  %5892 = vmatpush2.msra.mxu0 0.0
  %5893 = vmatprep.mubr.f32.mxu0 0.0
  %5894 = vmatmul.mubr.f32.gmra.mxu0 %v5375
  %v5895 = vpop.f32.mrf.mxu0
  %v5896 = vadd.f32 0.0, %v5895
  %v5897 = vpop.f32.mrf.mxu0
  %5898 = vmatprep.mubr.f32.mxu0 0.0
  %5899 = vmatmul.mubr.f32.gmra.mxu0 %v5376
  %v5900 = vpop.f32.mrf.mxu0
  %v5901 = vadd.f32 0.0, %v5900
  %v5902 = vpop.f32.mrf.mxu0
  %5903 = vdwg.mxu0
  %5904 = vmatprep.subr.mxu0 0.0
  %5905 = vmatpush1.msra.mxu0 %v329
  %5906 = vmatprep.subr.mxu0 0.0
  %5907 = vmatpush1.msra.mxu0 %v328
  %5908 = vmatprep.subr.mxu0 0.0
  %5909 = vmatpush1.msra.mxu0 %v327
  %5910 = vmatprep.subr.mxu0 0.0
  %5911 = vmatpush1.msra.mxu0 %v326
  %5912 = vmatprep.subr.mxu0 0.0
  %5913 = vmatpush1.msra.mxu0 %v325
  %5914 = vmatprep.subr.mxu0 0.0
  %5915 = vmatpush1.msra.mxu0 %v324
  %5916 = vmatprep.subr.mxu0 0.0
  %5917 = vmatpush1.msra.mxu0 %v323
  %5918 = vmatprep.subr.mxu0 0.0
  %5919 = vmatpush1.msra.mxu0 %v322
  %5920 = vmatprep.subr.mxu0 0.0
  %5921 = vmatpush1.msra.mxu0 %v321
  %5922 = vmatprep.subr.mxu0 0.0
  %5923 = vmatpush1.msra.mxu0 %v320
  %5924 = vmatprep.subr.mxu0 0.0
  %5925 = vmatpush1.msra.mxu0 %v319
  %5926 = vmatprep.subr.mxu0 0.0
  %5927 = vmatpush1.msra.mxu0 %v318
  %5928 = vmatprep.subr.mxu0 0.0
  %5929 = vmatpush1.msra.mxu0 %v317
  %5930 = vmatprep.subr.mxu0 0.0
  %5931 = vmatpush1.msra.mxu0 %v316
  %5932 = vmatprep.subr.mxu0 0.0
  %5933 = vmatpush1.msra.mxu0 %v315
  %5934 = vmatprep.subr.mxu0 0.0
  %5935 = vmatpush1.msra.mxu0 %v314
  %5936 = vmatprep.subr.mxu0 0.0
  %5937 = vmatpush2.msra.mxu0 0.0
  %5938 = vmatprep.subr.mxu0 0.0
  %5939 = vmatpush2.msra.mxu0 0.0
  %5940 = vmatprep.subr.mxu0 0.0
  %5941 = vmatpush2.msra.mxu0 0.0
  %5942 = vmatprep.subr.mxu0 0.0
  %5943 = vmatpush2.msra.mxu0 0.0
  %5944 = vmatprep.subr.mxu0 0.0
  %5945 = vmatpush2.msra.mxu0 0.0
  %5946 = vmatprep.subr.mxu0 0.0
  %5947 = vmatpush2.msra.mxu0 0.0
  %5948 = vmatprep.subr.mxu0 0.0
  %5949 = vmatpush2.msra.mxu0 0.0
  %5950 = vmatprep.subr.mxu0 0.0
  %5951 = vmatpush2.msra.mxu0 0.0
  %5952 = vmatprep.subr.mxu0 0.0
  %5953 = vmatpush2.msra.mxu0 0.0
  %5954 = vmatprep.subr.mxu0 0.0
  %5955 = vmatpush2.msra.mxu0 0.0
  %5956 = vmatprep.subr.mxu0 0.0
  %5957 = vmatpush2.msra.mxu0 0.0
  %5958 = vmatprep.subr.mxu0 0.0
  %5959 = vmatpush2.msra.mxu0 0.0
  %5960 = vmatprep.subr.mxu0 0.0
  %5961 = vmatpush2.msra.mxu0 0.0
  %5962 = vmatprep.subr.mxu0 0.0
  %5963 = vmatpush2.msra.mxu0 0.0
  %5964 = vmatprep.subr.mxu0 0.0
  %5965 = vmatpush2.msra.mxu0 0.0
  %5966 = vmatprep.subr.mxu0 0.0
  %5967 = vmatpush2.msra.mxu0 0.0
  %5968 = vmatprep.mubr.f32.mxu0 0.0
  %5969 = vmatmul.mubr.f32.gmra.mxu0 %v5377
  %v5970 = vpop.f32.mrf.mxu0
  %v5971 = vadd.f32 0.0, %v5970
  %v5972 = vpop.f32.mrf.mxu0
  %5973 = vmatprep.mubr.f32.mxu0 0.0
  %5974 = vmatmul.mubr.f32.gmra.mxu0 %v5378
  %v5975 = vpop.f32.mrf.mxu0
  %v5976 = vadd.f32 0.0, %v5975
  %v5977 = vpop.f32.mrf.mxu0
  %5978 = vdwg.mxu0
  %5979 = vst.msk [vmem:[%s3 + $0x70] sm:$0xff] %vm1092, %v5446
  %5980 = vst.msk [vmem:[%s3 + $0x78] sm:$0xff] %vm1092, %v5451
  %5981 = vst.msk [vmem:[%s3 + $0xf0] sm:$0xff] %vm1092, %v5521
  %5982 = vst.msk [vmem:[%s3 + $0xf8] sm:$0xff] %vm1092, %v5526
  %5983 = vst.msk [vmem:[%s3 + $0x170] sm:$0xff] %vm1092, %v5596
  %5984 = vst.msk [vmem:[%s3 + $0x178] sm:$0xff] %vm1092, %v5601
  %5985 = vst.msk [vmem:[%s3 + $0x1f0] sm:$0xff] %vm1092, %v5671
  %5986 = vst.msk [vmem:[%s3 + $0x1f8] sm:$0xff] %vm1092, %v5676
  %5987 = vst.msk [vmem:[%s3 + $0x270] sm:$0xff] %vm1092, %v5746
  %5988 = vst.msk [vmem:[%s3 + $0x278] sm:$0xff] %vm1092, %v5751
  %5989 = vst.msk [vmem:[%s3 + $0x2f0] sm:$0xff] %vm1092, %v5821
  %5990 = vst.msk [vmem:[%s3 + $0x2f8] sm:$0xff] %vm1092, %v5826
  %5991 = vst.msk [vmem:[%s3 + $0x370] sm:$0xff] %vm1092, %v5896
  %5992 = vst.msk [vmem:[%s3 + $0x378] sm:$0xff] %vm1092, %v5901
  %5993 = vst.msk [vmem:[%s3 + $0x3f0] sm:$0xff] %vm1092, %v5971
  %5994 = vst.msk [vmem:[%s3 + $0x3f8] sm:$0xff] %vm1092, %v5976
  // Predicated region
  $region14: #{tpu_custom_call.1} parent=0 // pred_check
    _
  $region15: #{tpu_custom_call.1} parent=0 // pred_check_branch
    %5996 = sbr.rel (0) target = $region17
  $region16: #{tpu_custom_call.1} parent=0 // pred_region
    _
  $region17: #{tpu_custom_call.1} parent=0 // pred_fallthru
    _
  // Predicated region
  $region18: #{tpu_custom_call.1} parent=0 // pred_check
    _
  $region19: #{tpu_custom_call.1} parent=0 // pred_check_branch
    %5998 = sbr.rel (0) target = $region21
  $region20: #{tpu_custom_call.1} parent=0 // pred_region
    _
  $region21: #{tpu_custom_call.1} parent=0 // pred_fallthru
    _

</llo_original>
